<compile_context>
chip_gen: v7x
topology: tpu7x:2x2x1
jax: 0.10.0
libtpu: 0.0.40
codegen_flags: <defaults>
</compile_context>

<pallas_src>
import functools
import math

import jax
import jax.numpy as jnp
from jax.experimental import pallas as pl
from jax.experimental.pallas import tpu as pltpu


# ----------------------- capability / VMEM-budget helpers -------------------


def _vmem_capacity_bytes():
    """Physical per-core VMEM; conservative 64 MiB (v7x-sized) fallback."""
    try:
        return int(pltpu.get_tpu_info().vmem_capacity_bytes)
    except Exception:
        return 64 * 1024 * 1024


def _buffered_probe_kernel(w_ref, o_ref):
    o_ref[...] = w_ref[...] * 2.0


def _probe_buffered_weights():
    """True iff single-buffered (pl.Buffered(1)) grid-invariant blocks lower cleanly."""
    if not hasattr(pl, "Buffered"):
        return False
    try:
        spec = pl.BlockSpec((8, 128), lambda i: (0, 0), pipeline_mode=pl.Buffered(1))
        fn = pl.pallas_call(
            _buffered_probe_kernel,
            out_shape=jax.ShapeDtypeStruct((16, 128), jnp.float32),
            grid=(2,),
            in_specs=[spec],
            out_specs=pl.BlockSpec((8, 128), lambda i: (i, 0)),
        )
        out = jax.block_until_ready(fn(jnp.ones((8, 128), jnp.float32)))
        return bool(jnp.all(out == 2.0))
    except Exception:
        return False


_USE_BUFFERED_WEIGHTS = _probe_buffered_weights()


def _const_spec(shape):
    """BlockSpec for a grid-invariant operand (constant index_map).

    Double-buffering such blocks only doubles their VMEM residency for zero benefit,
    so request a single buffer when supported.
    """
    index_map = lambda i: (0,) * len(shape)
    if _USE_BUFFERED_WEIGHTS:
        return pl.BlockSpec(shape, index_map, pipeline_mode=pl.Buffered(1))
    return pl.BlockSpec(shape, index_map)


def _block_vmem_estimate(nb, S, D, hidden, H):
    """Rough live-bytes estimate for one grid step of _block_kernel."""
    M = nb * S
    hd = D // H
    weights = 2 * (4 * D * D + 2 * D * hidden)            # bf16, single-buffered
    io = 2 * 2 * 4 * M * D                                 # double-buffered f32 x / o blocks
    resident = 4 * M * D                                   # f32 residual stream
    act = 2 * M * D + 3 * 2 * M * D + 2 * M * D + 4 * M * D  # xn, q/k/v (bf16), attn scratch, attn f32
    head = 8 * nb * S * S + 4 * nb * S * hd                # one head's f32 scores + output
    ffn = 4 * M * hidden + 2 * M * hidden                  # h1 f32 + bf16 copy
    return weights + io + int(1.25 * (resident + act + head + ffn))


def _pick_seq_batch(N, S, D, hidden, H, budget):
    """Largest divisor of N whose per-step VMEM estimate fits the budget."""
    best = 1
    for nb in range(1, N + 1):
        if N % nb == 0 and _block_vmem_estimate(nb, S, D, hidden, H) <= budget:
            best = nb
    return best


# ----------------------------- Pallas kernels ------------------------------


def _dense_bias_kernel(x_ref, w_ref, b_ref, o_ref):
    # x: (tm, K) bf16, w: (K, D) bf16, b: (1, D) f32 -> o: (tm, D) f32
    o_ref[...] = (
        jnp.dot(x_ref[...], w_ref[...], preferred_element_type=jnp.float32)
        + b_ref[...]
    )


def _layernorm_kernel(x_ref, g_ref, b_ref, o_ref, *, eps):
    x = x_ref[...]                                  # (tm, D) f32
    mu = jnp.mean(x, axis=-1, keepdims=True)
    var = jnp.mean(jnp.square(x - mu), axis=-1, keepdims=True)
    o_ref[...] = (x - mu) * jax.lax.rsqrt(var + eps) * g_ref[...] + b_ref[...]


def _block_kernel(x_ref, ln1g, ln1b, wq, wk, wv, bq, bk, bv, wo, bo,
                  ln2g, ln2b, w1, b1, w2, b2, o_ref, attn_scr,
                  *, num_heads, eps, s_valid):
    """One pre-norm transformer block (MHSA + FFN) for Nb sequences at once."""
    Nb, S, D = x_ref.shape
    H = num_heads
    hd = D // H
    scale = 1.0 / math.sqrt(hd)
    M = Nb * S
    bf16 = jnp.bfloat16

    # Fold the Nb sequences into one (M, D) slab (lane dim D unchanged -> cheap).
    x = x_ref[...].reshape(M, D)                    # f32 residual stream

    # --- pre-norm LN1 (f32 statistics) ---
    mu = jnp.mean(x, axis=-1, keepdims=True)
    var = jnp.mean(jnp.square(x - mu), axis=-1, keepdims=True)
    xn = ((x - mu) * jax.lax.rsqrt(var + eps) * ln1g[...] + ln1b[...]).astype(bf16)

    # --- QKV: lane-aligned (D, D) projections; cast to bf16 right after the bias
    # add so no f32 copies stay live (review item). ---
    q = (jnp.dot(xn, wq[...], preferred_element_type=jnp.float32) + bq[...]).astype(bf16)
    k = (jnp.dot(xn, wk[...], preferred_element_type=jnp.float32) + bk[...]).astype(bf16)
    v = (jnp.dot(xn, wv[...], preferred_element_type=jnp.float32) + bv[...]).astype(bf16)

    # Additive key-padding mask for padded columns (S is padded to a multiple of 8).
    if s_valid < S:
        col = jax.lax.broadcasted_iota(jnp.int32, (1, 1, S), 2)
        key_bias = jnp.where(col < s_valid, 0.0, -1e30).astype(jnp.float32)
    else:
        key_bias = None

    # --- multi-head self-attention (heads statically unrolled).  Each head's output
    # is written into an (M, D) bf16 VMEM scratch at its lane offset; the output
    # projection is then a single full-width (M,D)x(D,D) MXU matmul (review item:
    # no K=head_dim matmuls, no per-head f32 accumulator adds). ---
    for h in range(H):
        lo = h * hd
        qh = q[:, lo:lo + hd].reshape(Nb, S, hd)
        kh = k[:, lo:lo + hd].reshape(Nb, S, hd)
        vh = v[:, lo:lo + hd].reshape(Nb, S, hd)
        s = jnp.einsum('nqd,nkd->nqk', qh, kh,
                       preferred_element_type=jnp.float32) * scale
        if key_bias is not None:
            s = s + key_bias
        s = s - jnp.max(s, axis=-1, keepdims=True)
        p = jnp.exp(s)                              # f32 softmax numerator
        inv = pl.reciprocal(jnp.sum(p, axis=-1, keepdims=True), approx=True)
        oh = jnp.einsum('nqk,nkd->nqd', p.astype(bf16), vh,
                        preferred_element_type=jnp.float32) * inv
        attn_scr[:, lo:lo + hd] = oh.reshape(M, hd).astype(bf16)

    attn = jnp.dot(attn_scr[...], wo[...], preferred_element_type=jnp.float32)
    x = x + attn + bo[...]                          # residual (f32), b_o added once

    # --- pre-norm FFN ---
    mu = jnp.mean(x, axis=-1, keepdims=True)
    var = jnp.mean(jnp.square(x - mu), axis=-1, keepdims=True)
    xn = ((x - mu) * jax.lax.rsqrt(var + eps) * ln2g[...] + ln2b[...]).astype(bf16)
    h1 = jnp.dot(xn, w1[...], preferred_element_type=jnp.float32) + b1[...]
    # tanh-approx GELU -> EUP slot (review item); inference-grade approximation.
    h1 = jax.nn.gelu(h1, approximate=True)
    y = jnp.dot(h1.astype(bf16), w2[...], preferred_element_type=jnp.float32) + b2[...]
    o_ref[...] = (x + y).reshape(Nb, S, D)          # residual (f32)


# ----------------------------- Pallas wrappers ------------------------------


def dense_bias(x2d, w, b, *, tile_rows=512):
    """(M, K) @ (K, D) + b with a row-tiled, parallel grid; bf16 MXU operands."""
    M, K = x2d.shape
    D = w.shape[1]
    tm = M if M <= tile_rows else tile_rows          # full dim or multiple-of-8 tile
    Mp = -(-M // tm) * tm
    xb = x2d.astype(jnp.bfloat16)
    if Mp != M:
        xb = jnp.pad(xb, ((0, Mp - M), (0, 0)))
    out = pl.pallas_call(
        _dense_bias_kernel,
        out_shape=jax.ShapeDtypeStruct((Mp, D), jnp.float32),
        grid=(Mp // tm,),
        in_specs=[
            pl.BlockSpec((tm, K), lambda i: (i, 0)),
            _const_spec((K, D)),
            _const_spec((1, D)),
        ],
        out_specs=pl.BlockSpec((tm, D), lambda i: (i, 0)),
        compiler_params=pltpu.CompilerParams(dimension_semantics=("parallel",)),
    )(xb, w.astype(jnp.bfloat16), b.reshape(1, D))
    return out[:M] if Mp != M else out


def layernorm(x2d, g, b, eps, *, tile_rows=1024):
    """Row-tiled LayerNorm over the last dim (f32 statistics)."""
    M, D = x2d.shape
    tm = M if M <= tile_rows else tile_rows
    Mp = -(-M // tm) * tm
    xi = jnp.pad(x2d, ((0, Mp - M), (0, 0))) if Mp != M else x2d
    out = pl.pallas_call(
        functools.partial(_layernorm_kernel, eps=eps),
        out_shape=jax.ShapeDtypeStruct((Mp, D), jnp.float32),
        grid=(Mp // tm,),
        in_specs=[
            pl.BlockSpec((tm, D), lambda i: (i, 0)),
            _const_spec((1, D)),
            _const_spec((1, D)),
        ],
        out_specs=pl.BlockSpec((tm, D), lambda i: (i, 0)),
        compiler_params=pltpu.CompilerParams(dimension_semantics=("parallel",)),
    )(xi, g, b)
    return out[:M] if Mp != M else out


def transformer_block(x, p, num_heads, *, s_valid=None, eps=1e-5):
    """x: (N, S, D) -> (N, S, D); S must already be a multiple of 8 (padded)."""
    N, S, D = x.shape
    hidden = p['w1'].shape[1]
    if s_valid is None:
        s_valid = S
    bf16 = jnp.bfloat16

    # VMEM budget per TPU generation: ~48 MiB scoped limit on 64 MiB parts (v7x),
    # ~96 MiB on 128 MiB parts (v5e/v6e).  Nb is the largest divisor of N that fits.
    cap = _vmem_capacity_bytes()
    vmem_limit = max(32 * 1024 * 1024, min(cap * 3 // 4, 96 * 1024 * 1024))
    budget = int(vmem_limit * 0.85)
    Nb = _pick_seq_batch(N, S, D, hidden, num_heads, budget)

    def var_spec():
        return pl.BlockSpec((Nb, S, D), lambda n: (n, 0, 0))

    return pl.pallas_call(
        functools.partial(_block_kernel, num_heads=num_heads, eps=eps, s_valid=s_valid),
        out_shape=jax.ShapeDtypeStruct((N, S, D), jnp.float32),
        grid=(N // Nb,),
        in_specs=[
            var_spec(),
            _const_spec((1, D)), _const_spec((1, D)),                       # ln1 g/b
            _const_spec((D, D)), _const_spec((D, D)), _const_spec((D, D)),  # wq wk wv (bf16)
            _const_spec((1, D)), _const_spec((1, D)), _const_spec((1, D)),  # bq bk bv
            _const_spec((D, D)), _const_spec((1, D)),                       # wo (bf16), bo
            _const_spec((1, D)), _const_spec((1, D)),                       # ln2 g/b
            _const_spec((D, hidden)), _const_spec((1, hidden)),             # w1 (bf16), b1
            _const_spec((hidden, D)), _const_spec((1, D)),                  # w2 (bf16), b2
        ],
        out_specs=var_spec(),
        scratch_shapes=[pltpu.VMEM((Nb * S, D), bf16)],                     # head-output slab
        compiler_params=pltpu.CompilerParams(
            dimension_semantics=("parallel",),
            vmem_limit_bytes=int(vmem_limit),
        ),
    )(x,
      p['ln1_g'], p['ln1_b'],
      p['w_q'].astype(bf16), p['w_k'].astype(bf16), p['w_v'].astype(bf16),
      p['b_q'], p['b_k'], p['b_v'],
      p['w_o'].astype(bf16), p['b_o'],
      p['ln2_g'], p['ln2_b'],
      p['w1'].astype(bf16), p['b1'],
      p['w2'].astype(bf16), p['b2'])


def _run_blocks(x, blocks, num_heads, eps=1e-5):
    """Pad S to a multiple of 8 once, run all blocks with a key-padding mask, unpad."""
    N, S, D = x.shape
    Sp = -(-S // 8) * 8
    if Sp != S:
        x = jnp.pad(x, ((0, 0), (0, Sp - S), (0, 0)))
    for blk in blocks:
        x = transformer_block(x, blk, num_heads, s_valid=S, eps=eps)
    return x[:, :S, :] if Sp != S else x


# ----------------------------- parameter init ------------------------------


def init_block_params(key, D, hidden):
    ks = jax.random.split(key, 6)
    return {
        'ln1_g': jnp.ones((1, D), jnp.float32),
        'ln1_b': jnp.zeros((1, D), jnp.float32),
        'w_q': 0.02 * jax.random.normal(ks[0], (D, D), jnp.float32),
        'w_k': 0.02 * jax.random.normal(ks[1], (D, D), jnp.float32),
        'w_v': 0.02 * jax.random.normal(ks[2], (D, D), jnp.float32),
        'b_q': jnp.zeros((1, D), jnp.float32),
        'b_k': jnp.zeros((1, D), jnp.float32),
        'b_v': jnp.zeros((1, D), jnp.float32),
        'w_o': 0.02 * jax.random.normal(ks[3], (D, D), jnp.float32),
        'b_o': jnp.zeros((1, D), jnp.float32),
        'ln2_g': jnp.ones((1, D), jnp.float32),
        'ln2_b': jnp.zeros((1, D), jnp.float32),
        'w1': 0.02 * jax.random.normal(ks[4], (D, hidden), jnp.float32),
        'b1': jnp.zeros((1, hidden), jnp.float32),
        'w2': 0.02 * jax.random.normal(ks[5], (hidden, D), jnp.float32),
        'b2': jnp.zeros((1, D), jnp.float32),
    }


def init_vivit_params(key, cfg):
    D = cfg['embed_dims']
    tube, ps, C = cfg['tube_size'], cfg['patch_size'], cfg['in_channels']
    t = cfg['num_frames'] // tube
    hp = cfg['img_size'] // ps
    num_patches = hp * hp
    K = C * tube * ps * ps
    hidden = 4 * D
    keys = jax.random.split(key, 6)
    # trunc_normal_(std=0.02) approximated by scaled normal (synthetic init).
    params = {
        'patch_w': 0.02 * jax.random.normal(keys[0], (K, D), jnp.float32),
        'patch_b': jnp.zeros((D,), jnp.float32),
        'cls_token': 0.02 * jax.random.normal(keys[1], (1, 1, D), jnp.float32),
        'pos_embed': 0.02 * jax.random.normal(keys[2], (1, num_patches + 1, D), jnp.float32),
        'time_embed': 0.02 * jax.random.normal(keys[3], (1, t + 1, D), jnp.float32),
        'norm_g': jnp.ones((1, D), jnp.float32),
        'norm_b': jnp.zeros((1, D), jnp.float32),
        'spatial_blocks': [
            init_block_params(jax.random.fold_in(keys[4], i), D, hidden)
            for i in range(cfg['num_transformer_layers'])
        ],
        'temporal_blocks': [
            init_block_params(jax.random.fold_in(keys[5], i), D, hidden)
            for i in range(cfg['num_time_transformer_layers'])
        ],
    }
    return params


# ----------------------------- forward pass ---------------------------------


def vivit_forward(x, params, cfg):
    """Forward pass (attention_type='fact_encoder', return_cls_token=True)."""
    b, T, C, H, W = x.shape
    tube, ps = cfg['tube_size'], cfg['patch_size']
    D = cfg['embed_dims']
    t = T // tube
    hp, wp = H // ps, W // ps

    # --- patch embedding: Conv3d(kernel=stride=(tube, ps, ps)) as a matmul ---
    # column order (c, dt, dh, dw) matches PyTorch weight (D, C, tube, ps, ps).
    # TODO(synk): fold this gather into the pallas_call (index_map over (b,t,hp,wp) tiles
    # or memory_space=pl.ANY + manual DMA) so the rearranged (M, K) array is never
    # materialized in HBM — biggest payoff on bandwidth-poor v5e.
    xp = x.astype(jnp.bfloat16).reshape(b, t, tube, C, hp, ps, wp, ps)
    xp = xp.transpose(0, 1, 4, 6, 3, 2, 5, 7)            # (b,t,hp,wp,C,tube,ps,ps)
    xp = xp.reshape(b * t * hp * wp, C * tube * ps * ps)
    tokens = dense_bias(xp, params['patch_w'], params['patch_b'])
    tokens = tokens.reshape(b * t, hp * wp, D)            # '(b t) (h w) c'

    # --- prepend cls token, add spatial pos embedding (dropout p=0 -> identity) ---
    cls = jnp.broadcast_to(params['cls_token'], (b * t, 1, D))
    xx = jnp.concatenate([cls, tokens], axis=1) + params['pos_embed']

    # --- spatial transformer (sequence padded to a multiple of 8 + key mask) ---
    xx = _run_blocks(xx, params['spatial_blocks'], cfg['num_heads'], eps=1e-5)

    # --- fact_encoder temporal aggregation ---
    cls_tok = xx[:b, 0:1, :]                              # (b, 1, D)
    xs = xx[:, 1:, :].reshape(b, t, hp * wp, D).mean(axis=2)   # (b, t, D)
    xx = jnp.concatenate([cls_tok, xs], axis=1) + params['time_embed']

    # --- temporal transformer ---
    xx = _run_blocks(xx, params['temporal_blocks'], cfg['num_heads'], eps=1e-5)

    # --- final LayerNorm (eps=1e-6) on the cls tokens only (rows 1.. are unused) ---
    cls_out = layernorm(xx[:, 0, :], params['norm_g'], params['norm_b'], eps=1e-6)
    return cls_out                                        # (b, D)


# --------------------------------- main -------------------------------------


if __name__ == "__main__":
    cfg = dict(
        num_frames=4,          # -> t' = num_frames // tube_size = 2
        img_size=16,
        patch_size=8,          # -> 2x2 = 4 patches per frame
        tube_size=2,
        in_channels=3,
        embed_dims=32,
        num_heads=4,
        num_transformer_layers=2,       # spatial depth (small demo)
        num_time_transformer_layers=4,  # temporal depth (fact_encoder)
    )
    key = jax.random.PRNGKey(0)
    params = init_vivit_params(key, cfg)
    x = jax.random.normal(jax.random.fold_in(key, 123),
                          (2, cfg['num_frames'], cfg['in_channels'],
                           cfg['img_size'], cfg['img_size']), jnp.float32)

    out = jax.jit(lambda v: vivit_forward(v, params, cfg))(x)
    out = jax.block_until_ready(out)
    assert out.shape == (2, cfg['embed_dims']), out.shape
    assert jnp.all(jnp.isfinite(out))
    print("KERNEL_OK")
</pallas_src>

<mosaic_0001>
module attributes {stable_mosaic.version = 11 : i64} {
  func.func @_buffered_probe_kernel(%arg0: i32, %arg1: memref<8x128xf32, #tpu.memory_space<vmem>>, %arg2: memref<8x128xf32, #tpu.memory_space<vmem>>) attributes {dimension_semantics = [#tpu.dimension_semantics<arbitrary>], iteration_bounds = array<i64: 2>, scalar_prefetch = 0 : i64, scratch_operands = 0 : i64, tpu.core_type = #tpu.core_type<tc>, window_params = [{pipeline_mode = #tpu.pipeline_mode<synchronous>, transform_indices = @transform_0, window_bounds = array<i64: 8, 128>}, {transform_indices = @transform_1, window_bounds = array<i64: 8, 128>}]} {
    %c0 = arith.constant 0 : index
    %c0_0 = arith.constant 0 : index
    %0 = vector.load %arg1[%c0, %c0_0] : memref<8x128xf32, #tpu.memory_space<vmem>>, vector<8x128xf32>
    %cst = arith.constant 2.000000e+00 : f32
    %1 = vector.broadcast %cst : f32 to vector<8x128xf32>
    %2 = arith.mulf %0, %1 : vector<8x128xf32>
    %c0_1 = arith.constant 0 : index
    %c0_2 = arith.constant 0 : index
    %3 = vector.load %arg2[%c0_1, %c0_2] : memref<8x128xf32, #tpu.memory_space<vmem>>, vector<8x128xf32>
    tpu.vector_store %arg2[%c0_1, %c0_2], %2 {strides = array<i32>} : memref<8x128xf32, #tpu.memory_space<vmem>>, vector<8x128xf32>,
    return
  }
  func.func @transform_0(%arg0: i32) -> (i32, i32) {
    %c0_i32 = arith.constant 0 : i32
    %c0_i32_0 = arith.constant 0 : i32
    %c0_i32_1 = arith.constant 0 : i32
    return %c0_i32, %c0_i32_0 : i32, i32
  }
  func.func @transform_1(%arg0: i32) -> (i32, i32) {
    %c0_i32 = arith.constant 0 : i32
    %c0_i32_0 = arith.constant 0 : i32
    return %arg0, %c0_i32 : i32, i32
  }
}

module attributes {stable_mosaic.version = 11 : i64} {
  func.func @_dense_bias_kernel(%arg0: i32, %arg1: memref<16x384xbf16, #tpu.memory_space<vmem>>, %arg2: memref<384x32xbf16, #tpu.memory_space<vmem>>, %arg3: memref<1x32xf32, #tpu.memory_space<vmem>>, %arg4: memref<16x32xf32, #tpu.memory_space<vmem>>) attributes {dimension_semantics = [#tpu.dimension_semantics<parallel>], iteration_bounds = array<i64: 1>, scalar_prefetch = 0 : i64, scratch_operands = 0 : i64, tpu.core_type = #tpu.core_type<tc>, window_params = [{transform_indices = @transform_0, window_bounds = array<i64: 16, 384>}, {pipeline_mode = #tpu.pipeline_mode<synchronous>, transform_indices = @transform_1, window_bounds = array<i64: 384, 32>}, {pipeline_mode = #tpu.pipeline_mode<synchronous>, transform_indices = @transform_2, window_bounds = array<i64: 1, 32>}, {transform_indices = @transform_3, window_bounds = array<i64: 16, 32>}]} {
    %c0 = arith.constant 0 : index
    %c0_0 = arith.constant 0 : index
    %0 = vector.load %arg1[%c0, %c0_0] : memref<16x384xbf16, #tpu.memory_space<vmem>>, vector<16x384xbf16>
    %c0_1 = arith.constant 0 : index
    %c0_2 = arith.constant 0 : index
    %1 = vector.load %arg2[%c0_1, %c0_2] : memref<384x32xbf16, #tpu.memory_space<vmem>>, vector<384x32xbf16>
    %cst = arith.constant dense<0.000000e+00> : vector<16x32xf32>
    %2 = tpu.matmul %0, %1, %cst {dimension_numbers = #tpu.dot_dimension_numbers<[1], [0], [0], [1], [0, 0, 1, 1], [], []>} : vector<16x384xbf16>, vector<384x32xbf16>, vector<16x32xf32> -> vector<16x32xf32>
    %c0_3 = arith.constant 0 : index
    %c0_4 = arith.constant 0 : index
    %3 = vector.load %arg3[%c0_3, %c0_4] : memref<1x32xf32, #tpu.memory_space<vmem>>, vector<1x32xf32>
    %4 = vector.broadcast %3 : vector<1x32xf32> to vector<16x32xf32>
    %5 = arith.addf %2, %4 : vector<16x32xf32>
    %c0_5 = arith.constant 0 : index
    %c0_6 = arith.constant 0 : index
    %6 = vector.load %arg4[%c0_5, %c0_6] : memref<16x32xf32, #tpu.memory_space<vmem>>, vector<16x32xf32>
    tpu.vector_store %arg4[%c0_5, %c0_6], %5 {strides = array<i32>} : memref<16x32xf32, #tpu.memory_space<vmem>>, vector<16x32xf32>,
    return
  }
  func.func @transform_0(%arg0: i32) -> (i32, i32) {
    %c0_i32 = arith.constant 0 : i32
    %c0_i32_0 = arith.constant 0 : i32
    return %arg0, %c0_i32 : i32, i32
  }
  func.func @transform_1(%arg0: i32) -> (i32, i32) {
    %c0_i32 = arith.constant 0 : i32
    %c0_i32_0 = arith.constant 0 : i32
    %c0_i32_1 = arith.constant 0 : i32
    return %c0_i32, %c0_i32_0 : i32, i32
  }
  func.func @transform_2(%arg0: i32) -> (i32, i32) {
    %c0_i32 = arith.constant 0 : i32
    %c0_i32_0 = arith.constant 0 : i32
    %c0_i32_1 = arith.constant 0 : i32
    return %c0_i32, %c0_i32_0 : i32, i32
  }
  func.func @transform_3(%arg0: i32) -> (i32, i32) {
    %c0_i32 = arith.constant 0 : i32
    %c0_i32_0 = arith.constant 0 : i32
    return %arg0, %c0_i32 : i32, i32
  }
}

module attributes {stable_mosaic.version = 11 : i64} {
  func.func @_block_kernel(%arg0: i32, %arg1: memref<4x8x32xf32, #tpu.memory_space<vmem>>, %arg2: memref<1x32xf32, #tpu.memory_space<vmem>>, %arg3: memref<1x32xf32, #tpu.memory_space<vmem>>, %arg4: memref<32x32xbf16, #tpu.memory_space<vmem>>, %arg5: memref<32x32xbf16, #tpu.memory_space<vmem>>, %arg6: memref<32x32xbf16, #tpu.memory_space<vmem>>, %arg7: memref<1x32xf32, #tpu.memory_space<vmem>>, %arg8: memref<1x32xf32, #tpu.memory_space<vmem>>, %arg9: memref<1x32xf32, #tpu.memory_space<vmem>>, %arg10: memref<32x32xbf16, #tpu.memory_space<vmem>>, %arg11: memref<1x32xf32, #tpu.memory_space<vmem>>, %arg12: memref<1x32xf32, #tpu.memory_space<vmem>>, %arg13: memref<1x32xf32, #tpu.memory_space<vmem>>, %arg14: memref<32x128xbf16, #tpu.memory_space<vmem>>, %arg15: memref<1x128xf32, #tpu.memory_space<vmem>>, %arg16: memref<128x32xbf16, #tpu.memory_space<vmem>>, %arg17: memref<1x32xf32, #tpu.memory_space<vmem>>, %arg18: memref<4x8x32xf32, #tpu.memory_space<vmem>>, %arg19: memref<32x32xbf16, #tpu.memory_space<vmem>>) attributes {dimension_semantics = [#tpu.dimension_semantics<parallel>], iteration_bounds = array<i64: 1>, scalar_prefetch = 0 : i64, scratch_operands = 1 : i64, tpu.core_type = #tpu.core_type<tc>, window_params = [{transform_indices = @transform_0, window_bounds = array<i64: 4, 8, 32>}, {pipeline_mode = #tpu.pipeline_mode<synchronous>, transform_indices = @transform_1, window_bounds = array<i64: 1, 32>}, {pipeline_mode = #tpu.pipeline_mode<synchronous>, transform_indices = @transform_2, window_bounds = array<i64: 1, 32>}, {pipeline_mode = #tpu.pipeline_mode<synchronous>, transform_indices = @transform_3, window_bounds = array<i64: 32, 32>}, {pipeline_mode = #tpu.pipeline_mode<synchronous>, transform_indices = @transform_4, window_bounds = array<i64: 32, 32>}, {pipeline_mode = #tpu.pipeline_mode<synchronous>, transform_indices = @transform_5, window_bounds = array<i64: 32, 32>}, {pipeline_mode = #tpu.pipeline_mode<synchronous>, transform_indices = @transform_6, window_bounds = array<i64: 1, 32>}, {pipeline_mode = #tpu.pipeline_mode<synchronous>, transform_indices = @transform_7, window_bounds = array<i64: 1, 32>}, {pipeline_mode = #tpu.pipeline_mode<synchronous>, transform_indices = @transform_8, window_bounds = array<i64: 1, 32>}, {pipeline_mode = #tpu.pipeline_mode<synchronous>, transform_indices = @transform_9, window_bounds = array<i64: 32, 32>}, {pipeline_mode = #tpu.pipeline_mode<synchronous>, transform_indices = @transform_10, window_bounds = array<i64: 1, 32>}, {pipeline_mode = #tpu.pipeline_mode<synchronous>, transform_indices = @transform_11, window_bounds = array<i64: 1, 32>}, {pipeline_mode = #tpu.pipeline_mode<synchronous>, transform_indices = @transform_12, window_bounds = array<i64: 1, 32>}, {pipeline_mode = #tpu.pipeline_mode<synchronous>, transform_indices = @transform_13, window_bounds = array<i64: 32, 128>}, {pipeline_mode = #tpu.pipeline_mode<synchronous>, transform_indices = @transform_14, window_bounds = array<i64: 1, 128>}, {pipeline_mode = #tpu.pipeline_mode<synchronous>, transform_indices = @transform_15, window_bounds = array<i64: 128, 32>}, {pipeline_mode = #tpu.pipeline_mode<synchronous>, transform_indices = @transform_16, window_bounds = array<i64: 1, 32>}, {transform_indices = @transform_17, window_bounds = array<i64: 4, 8, 32>}]} {
    %c0 = arith.constant 0 : index
    %c0_0 = arith.constant 0 : index
    %c0_1 = arith.constant 0 : index
    %0 = vector.load %arg1[%c0, %c0_0, %c0_1] : memref<4x8x32xf32, #tpu.memory_space<vmem>>, vector<4x8x32xf32>
    %1 = vector.shape_cast %0 : vector<4x8x32xf32> to vector<32x32xf32>
    %cst = arith.constant dense<0.000000e+00> : vector<32xf32>
    %2 = vector.multi_reduction <add>, %1, %cst [1] : vector<32x32xf32> to vector<32xf32>
    %3 = vector.shape_cast %2 : vector<32xf32> to vector<32x1xf32>
    %cst_2 = arith.constant 3.200000e+01 : f32
    %4 = vector.broadcast %cst_2 : f32 to vector<32x1xf32>
    %5 = arith.divf %3, %4 : vector<32x1xf32>
    %6 = vector.broadcast %5 : vector<32x1xf32> to vector<32x32xf32>
    %7 = arith.subf %1, %6 : vector<32x32xf32>
    %8 = arith.mulf %7, %7 : vector<32x32xf32>
    %cst_3 = arith.constant dense<0.000000e+00> : vector<32xf32>
    %9 = vector.multi_reduction <add>, %8, %cst_3 [1] : vector<32x32xf32> to vector<32xf32>
    %10 = vector.shape_cast %9 : vector<32xf32> to vector<32x1xf32>
    %cst_4 = arith.constant 3.200000e+01 : f32
    %11 = vector.broadcast %cst_4 : f32 to vector<32x1xf32>
    %12 = arith.divf %10, %11 : vector<32x1xf32>
    %13 = vector.broadcast %5 : vector<32x1xf32> to vector<32x32xf32>
    %14 = arith.subf %1, %13 : vector<32x32xf32>
    %cst_5 = arith.constant 9.99999974E-6 : f32
    %15 = vector.broadcast %cst_5 : f32 to vector<32x1xf32>
    %16 = arith.addf %12, %15 : vector<32x1xf32>
    %17 = math.rsqrt %16 : vector<32x1xf32>
    %18 = vector.broadcast %17 : vector<32x1xf32> to vector<32x32xf32>
    %19 = arith.mulf %14, %18 : vector<32x32xf32>
    %c0_6 = arith.constant 0 : index
    %c0_7 = arith.constant 0 : index
    %20 = vector.load %arg2[%c0_6, %c0_7] : memref<1x32xf32, #tpu.memory_space<vmem>>, vector<1x32xf32>
    %21 = vector.broadcast %20 : vector<1x32xf32> to vector<32x32xf32>
    %22 = arith.mulf %19, %21 : vector<32x32xf32>
    %c0_8 = arith.constant 0 : index
    %c0_9 = arith.constant 0 : index
    %23 = vector.load %arg3[%c0_8, %c0_9] : memref<1x32xf32, #tpu.memory_space<vmem>>, vector<1x32xf32>
    %24 = vector.broadcast %23 : vector<1x32xf32> to vector<32x32xf32>
    %25 = arith.addf %22, %24 : vector<32x32xf32>
    %26 = arith.truncf %25 : vector<32x32xf32> to vector<32x32xbf16>
    %c0_10 = arith.constant 0 : index
    %c0_11 = arith.constant 0 : index
    %27 = vector.load %arg4[%c0_10, %c0_11] : memref<32x32xbf16, #tpu.memory_space<vmem>>, vector<32x32xbf16>
    %cst_12 = arith.constant dense<0.000000e+00> : vector<32x32xf32>
    %28 = tpu.matmul %26, %27, %cst_12 {dimension_numbers = #tpu.dot_dimension_numbers<[1], [0], [0], [1], [0, 0, 1, 1], [], []>} : vector<32x32xbf16>, vector<32x32xbf16>, vector<32x32xf32> -> vector<32x32xf32>
    %c0_13 = arith.constant 0 : index
    %c0_14 = arith.constant 0 : index
    %29 = vector.load %arg7[%c0_13, %c0_14] : memref<1x32xf32, #tpu.memory_space<vmem>>, vector<1x32xf32>
    %30 = vector.broadcast %29 : vector<1x32xf32> to vector<32x32xf32>
    %31 = arith.addf %28, %30 : vector<32x32xf32>
    %32 = arith.truncf %31 : vector<32x32xf32> to vector<32x32xbf16>
    %c0_15 = arith.constant 0 : index
    %c0_16 = arith.constant 0 : index
    %33 = vector.load %arg5[%c0_15, %c0_16] : memref<32x32xbf16, #tpu.memory_space<vmem>>, vector<32x32xbf16>
    %cst_17 = arith.constant dense<0.000000e+00> : vector<32x32xf32>
    %34 = tpu.matmul %26, %33, %cst_17 {dimension_numbers = #tpu.dot_dimension_numbers<[1], [0], [0], [1], [0, 0, 1, 1], [], []>} : vector<32x32xbf16>, vector<32x32xbf16>, vector<32x32xf32> -> vector<32x32xf32>
    %c0_18 = arith.constant 0 : index
    %c0_19 = arith.constant 0 : index
    %35 = vector.load %arg8[%c0_18, %c0_19] : memref<1x32xf32, #tpu.memory_space<vmem>>, vector<1x32xf32>
    %36 = vector.broadcast %35 : vector<1x32xf32> to vector<32x32xf32>
    %37 = arith.addf %34, %36 : vector<32x32xf32>
    %38 = arith.truncf %37 : vector<32x32xf32> to vector<32x32xbf16>
    %c0_20 = arith.constant 0 : index
    %c0_21 = arith.constant 0 : index
    %39 = vector.load %arg6[%c0_20, %c0_21] : memref<32x32xbf16, #tpu.memory_space<vmem>>, vector<32x32xbf16>
    %cst_22 = arith.constant dense<0.000000e+00> : vector<32x32xf32>
    %40 = tpu.matmul %26, %39, %cst_22 {dimension_numbers = #tpu.dot_dimension_numbers<[1], [0], [0], [1], [0, 0, 1, 1], [], []>} : vector<32x32xbf16>, vector<32x32xbf16>, vector<32x32xf32> -> vector<32x32xf32>
    %c0_23 = arith.constant 0 : index
    %c0_24 = arith.constant 0 : index
    %41 = vector.load %arg9[%c0_23, %c0_24] : memref<1x32xf32, #tpu.memory_space<vmem>>, vector<1x32xf32>
    %42 = vector.broadcast %41 : vector<1x32xf32> to vector<32x32xf32>
    %43 = arith.addf %40, %42 : vector<32x32xf32>
    %44 = arith.truncf %43 : vector<32x32xf32> to vector<32x32xbf16>
    %45 = tpu.iota {dimensions = array<i32: 2>} : vector<1x1x8xi32>
    %c5_i32 = arith.constant 5 : i32
    %46 = vector.broadcast %c5_i32 : i32 to vector<1x1x8xi32>
    %47 = arith.cmpi slt, %45, %46 : vector<1x1x8xi32>
    %cst_25 = arith.constant 0.000000e+00 : f32
    %cst_26 = arith.constant -1.000000e+30 : f32
    %48 = vector.broadcast %cst_25 : f32 to vector<1x1x8xf32>
    %49 = vector.broadcast %cst_26 : f32 to vector<1x1x8xf32>
    %50 = arith.select %47, %48, %49 : vector<1x1x8xi1>, vector<1x1x8xf32>
    %51 = vector.extract_strided_slice %32 {offsets = [0, 0], sizes = [32, 8], strides = [1, 1]} : vector<32x32xbf16> to vector<32x8xbf16>
    %52 = vector.shape_cast %51 : vector<32x8xbf16> to vector<4x8x8xbf16>
    %53 = vector.extract_strided_slice %38 {offsets = [0, 0], sizes = [32, 8], strides = [1, 1]} : vector<32x32xbf16> to vector<32x8xbf16>
    %54 = vector.shape_cast %53 : vector<32x8xbf16> to vector<4x8x8xbf16>
    %55 = vector.extract_strided_slice %44 {offsets = [0, 0], sizes = [32, 8], strides = [1, 1]} : vector<32x32xbf16> to vector<32x8xbf16>
    %56 = vector.shape_cast %55 : vector<32x8xbf16> to vector<4x8x8xbf16>
    "tpu.trace_start"() <{level = 10 : i32, message = "nqd,nkd->nqk"}> : () -> ()
    %cst_27 = arith.constant dense<0.000000e+00> : vector<4x8x8xf32>
    %57 = tpu.matmul %52, %54, %cst_27 {dimension_numbers = #tpu.dot_dimension_numbers<[2], [2], [1], [1], [0, 0, 0, 1, 1, 1], [0], [0]>} : vector<4x8x8xbf16>, vector<4x8x8xbf16>, vector<4x8x8xf32> -> vector<4x8x8xf32>
    "tpu.trace_stop"() : () -> ()
    %cst_28 = arith.constant 0.353553385 : f32
    %58 = vector.broadcast %cst_28 : f32 to vector<4x8x8xf32>
    %59 = arith.mulf %57, %58 : vector<4x8x8xf32>
    %60 = vector.broadcast %50 : vector<1x1x8xf32> to vector<4x8x8xf32>
    %61 = arith.addf %59, %60 : vector<4x8x8xf32>
    %cst_29 = arith.constant dense<0xFF800000> : vector<4x8xf32>
    %62 = vector.multi_reduction <maximumf>, %61, %cst_29 [2] : vector<4x8x8xf32> to vector<4x8xf32>
    %63 = vector.shape_cast %62 : vector<4x8xf32> to vector<4x8x1xf32>
    %64 = vector.broadcast %63 : vector<4x8x1xf32> to vector<4x8x8xf32>
    %65 = arith.subf %61, %64 : vector<4x8x8xf32>
    %66 = math.exp %65 : vector<4x8x8xf32>
    %cst_30 = arith.constant dense<0.000000e+00> : vector<4x8xf32>
    %67 = vector.multi_reduction <add>, %66, %cst_30 [2] : vector<4x8x8xf32> to vector<4x8xf32>
    %68 = vector.shape_cast %67 : vector<4x8xf32> to vector<4x8x1xf32>
    %69 = tpu.reciprocal %68 {approx = true} : vector<4x8x1xf32> -> vector<4x8x1xf32>
    %70 = arith.truncf %66 : vector<4x8x8xf32> to vector<4x8x8xbf16>
    "tpu.trace_start"() <{level = 10 : i32, message = "nqk,nkd->nqd"}> : () -> ()
    %cst_31 = arith.constant dense<0.000000e+00> : vector<4x8x8xf32>
    %71 = tpu.matmul %70, %56, %cst_31 {dimension_numbers = #tpu.dot_dimension_numbers<[2], [1], [1], [2], [0, 0, 0, 1, 1, 2], [0], [0]>} : vector<4x8x8xbf16>, vector<4x8x8xbf16>, vector<4x8x8xf32> -> vector<4x8x8xf32>
    "tpu.trace_stop"() : () -> ()
    %72 = vector.broadcast %69 : vector<4x8x1xf32> to vector<4x8x8xf32>
    %73 = arith.mulf %71, %72 : vector<4x8x8xf32>
    %74 = vector.shape_cast %73 : vector<4x8x8xf32> to vector<32x8xf32>
    %75 = arith.truncf %74 : vector<32x8xf32> to vector<32x8xbf16>
    %c0_32 = arith.constant 0 : index
    %c0_33 = arith.constant 0 : index
    %76 = vector.load %arg19[%c0_32, %c0_33] : memref<32x32xbf16, #tpu.memory_space<vmem>>, vector<32x8xbf16>
    tpu.vector_store %arg19[%c0_32, %c0_33], %75 {strides = array<i32>} : memref<32x32xbf16, #tpu.memory_space<vmem>>, vector<32x8xbf16>,
    %77 = vector.extract_strided_slice %32 {offsets = [0, 8], sizes = [32, 8], strides = [1, 1]} : vector<32x32xbf16> to vector<32x8xbf16>
    %78 = vector.shape_cast %77 : vector<32x8xbf16> to vector<4x8x8xbf16>
    %79 = vector.extract_strided_slice %38 {offsets = [0, 8], sizes = [32, 8], strides = [1, 1]} : vector<32x32xbf16> to vector<32x8xbf16>
    %80 = vector.shape_cast %79 : vector<32x8xbf16> to vector<4x8x8xbf16>
    %81 = vector.extract_strided_slice %44 {offsets = [0, 8], sizes = [32, 8], strides = [1, 1]} : vector<32x32xbf16> to vector<32x8xbf16>
    %82 = vector.shape_cast %81 : vector<32x8xbf16> to vector<4x8x8xbf16>
    "tpu.trace_start"() <{level = 10 : i32, message = "nqd,nkd->nqk"}> : () -> ()
    %cst_34 = arith.constant dense<0.000000e+00> : vector<4x8x8xf32>
    %83 = tpu.matmul %78, %80, %cst_34 {dimension_numbers = #tpu.dot_dimension_numbers<[2], [2], [1], [1], [0, 0, 0, 1, 1, 1], [0], [0]>} : vector<4x8x8xbf16>, vector<4x8x8xbf16>, vector<4x8x8xf32> -> vector<4x8x8xf32>
    "tpu.trace_stop"() : () -> ()
    %cst_35 = arith.constant 0.353553385 : f32
    %84 = vector.broadcast %cst_35 : f32 to vector<4x8x8xf32>
    %85 = arith.mulf %83, %84 : vector<4x8x8xf32>
    %86 = vector.broadcast %50 : vector<1x1x8xf32> to vector<4x8x8xf32>
    %87 = arith.addf %85, %86 : vector<4x8x8xf32>
    %cst_36 = arith.constant dense<0xFF800000> : vector<4x8xf32>
    %88 = vector.multi_reduction <maximumf>, %87, %cst_36 [2] : vector<4x8x8xf32> to vector<4x8xf32>
    %89 = vector.shape_cast %88 : vector<4x8xf32> to vector<4x8x1xf32>
    %90 = vector.broadcast %89 : vector<4x8x1xf32> to vector<4x8x8xf32>
    %91 = arith.subf %87, %90 : vector<4x8x8xf32>
    %92 = math.exp %91 : vector<4x8x8xf32>
    %cst_37 = arith.constant dense<0.000000e+00> : vector<4x8xf32>
    %93 = vector.multi_reduction <add>, %92, %cst_37 [2] : vector<4x8x8xf32> to vector<4x8xf32>
    %94 = vector.shape_cast %93 : vector<4x8xf32> to vector<4x8x1xf32>
    %95 = tpu.reciprocal %94 {approx = true} : vector<4x8x1xf32> -> vector<4x8x1xf32>
    %96 = arith.truncf %92 : vector<4x8x8xf32> to vector<4x8x8xbf16>
    "tpu.trace_start"() <{level = 10 : i32, message = "nqk,nkd->nqd"}> : () -> ()
    %cst_38 = arith.constant dense<0.000000e+00> : vector<4x8x8xf32>
    %97 = tpu.matmul %96, %82, %cst_38 {dimension_numbers = #tpu.dot_dimension_numbers<[2], [1], [1], [2], [0, 0, 0, 1, 1, 2], [0], [0]>} : vector<4x8x8xbf16>, vector<4x8x8xbf16>, vector<4x8x8xf32> -> vector<4x8x8xf32>
    "tpu.trace_stop"() : () -> ()
    %98 = vector.broadcast %95 : vector<4x8x1xf32> to vector<4x8x8xf32>
    %99 = arith.mulf %97, %98 : vector<4x8x8xf32>
    %100 = vector.shape_cast %99 : vector<4x8x8xf32> to vector<32x8xf32>
    %101 = arith.truncf %100 : vector<32x8xf32> to vector<32x8xbf16>
    %c0_39 = arith.constant 0 : index
    %c8 = arith.constant 8 : index
    %102 = vector.load %arg19[%c0_39, %c8] : memref<32x32xbf16, #tpu.memory_space<vmem>>, vector<32x8xbf16>
    tpu.vector_store %arg19[%c0_39, %c8], %101 {strides = array<i32>} : memref<32x32xbf16, #tpu.memory_space<vmem>>, vector<32x8xbf16>,
    %103 = vector.extract_strided_slice %32 {offsets = [0, 16], sizes = [32, 8], strides = [1, 1]} : vector<32x32xbf16> to vector<32x8xbf16>
    %104 = vector.shape_cast %103 : vector<32x8xbf16> to vector<4x8x8xbf16>
    %105 = vector.extract_strided_slice %38 {offsets = [0, 16], sizes = [32, 8], strides = [1, 1]} : vector<32x32xbf16> to vector<32x8xbf16>
    %106 = vector.shape_cast %105 : vector<32x8xbf16> to vector<4x8x8xbf16>
    %107 = vector.extract_strided_slice %44 {offsets = [0, 16], sizes = [32, 8], strides = [1, 1]} : vector<32x32xbf16> to vector<32x8xbf16>
    %108 = vector.shape_cast %107 : vector<32x8xbf16> to vector<4x8x8xbf16>
    "tpu.trace_start"() <{level = 10 : i32, message = "nqd,nkd->nqk"}> : () -> ()
    %cst_40 = arith.constant dense<0.000000e+00> : vector<4x8x8xf32>
    %109 = tpu.matmul %104, %106, %cst_40 {dimension_numbers = #tpu.dot_dimension_numbers<[2], [2], [1], [1], [0, 0, 0, 1, 1, 1], [0], [0]>} : vector<4x8x8xbf16>, vector<4x8x8xbf16>, vector<4x8x8xf32> -> vector<4x8x8xf32>
    "tpu.trace_stop"() : () -> ()
    %cst_41 = arith.constant 0.353553385 : f32
    %110 = vector.broadcast %cst_41 : f32 to vector<4x8x8xf32>
    %111 = arith.mulf %109, %110 : vector<4x8x8xf32>
    %112 = vector.broadcast %50 : vector<1x1x8xf32> to vector<4x8x8xf32>
    %113 = arith.addf %111, %112 : vector<4x8x8xf32>
    %cst_42 = arith.constant dense<0xFF800000> : vector<4x8xf32>
    %114 = vector.multi_reduction <maximumf>, %113, %cst_42 [2] : vector<4x8x8xf32> to vector<4x8xf32>
    %115 = vector.shape_cast %114 : vector<4x8xf32> to vector<4x8x1xf32>
    %116 = vector.broadcast %115 : vector<4x8x1xf32> to vector<4x8x8xf32>
    %117 = arith.subf %113, %116 : vector<4x8x8xf32>
    %118 = math.exp %117 : vector<4x8x8xf32>
    %cst_43 = arith.constant dense<0.000000e+00> : vector<4x8xf32>
    %119 = vector.multi_reduction <add>, %118, %cst_43 [2] : vector<4x8x8xf32> to vector<4x8xf32>
    %120 = vector.shape_cast %119 : vector<4x8xf32> to vector<4x8x1xf32>
    %121 = tpu.reciprocal %120 {approx = true} : vector<4x8x1xf32> -> vector<4x8x1xf32>
    %122 = arith.truncf %118 : vector<4x8x8xf32> to vector<4x8x8xbf16>
    "tpu.trace_start"() <{level = 10 : i32, message = "nqk,nkd->nqd"}> : () -> ()
    %cst_44 = arith.constant dense<0.000000e+00> : vector<4x8x8xf32>
    %123 = tpu.matmul %122, %108, %cst_44 {dimension_numbers = #tpu.dot_dimension_numbers<[2], [1], [1], [2], [0, 0, 0, 1, 1, 2], [0], [0]>} : vector<4x8x8xbf16>, vector<4x8x8xbf16>, vector<4x8x8xf32> -> vector<4x8x8xf32>
    "tpu.trace_stop"() : () -> ()
    %124 = vector.broadcast %121 : vector<4x8x1xf32> to vector<4x8x8xf32>
    %125 = arith.mulf %123, %124 : vector<4x8x8xf32>
    %126 = vector.shape_cast %125 : vector<4x8x8xf32> to vector<32x8xf32>
    %127 = arith.truncf %126 : vector<32x8xf32> to vector<32x8xbf16>
    %c0_45 = arith.constant 0 : index
    %c16 = arith.constant 16 : index
    %128 = vector.load %arg19[%c0_45, %c16] : memref<32x32xbf16, #tpu.memory_space<vmem>>, vector<32x8xbf16>
    tpu.vector_store %arg19[%c0_45, %c16], %127 {strides = array<i32>} : memref<32x32xbf16, #tpu.memory_space<vmem>>, vector<32x8xbf16>,
    %129 = vector.extract_strided_slice %32 {offsets = [0, 24], sizes = [32, 8], strides = [1, 1]} : vector<32x32xbf16> to vector<32x8xbf16>
    %130 = vector.shape_cast %129 : vector<32x8xbf16> to vector<4x8x8xbf16>
    %131 = vector.extract_strided_slice %38 {offsets = [0, 24], sizes = [32, 8], strides = [1, 1]} : vector<32x32xbf16> to vector<32x8xbf16>
    %132 = vector.shape_cast %131 : vector<32x8xbf16> to vector<4x8x8xbf16>
    %133 = vector.extract_strided_slice %44 {offsets = [0, 24], sizes = [32, 8], strides = [1, 1]} : vector<32x32xbf16> to vector<32x8xbf16>
    %134 = vector.shape_cast %133 : vector<32x8xbf16> to vector<4x8x8xbf16>
    "tpu.trace_start"() <{level = 10 : i32, message = "nqd,nkd->nqk"}> : () -> ()
    %cst_46 = arith.constant dense<0.000000e+00> : vector<4x8x8xf32>
    %135 = tpu.matmul %130, %132, %cst_46 {dimension_numbers = #tpu.dot_dimension_numbers<[2], [2], [1], [1], [0, 0, 0, 1, 1, 1], [0], [0]>} : vector<4x8x8xbf16>, vector<4x8x8xbf16>, vector<4x8x8xf32> -> vector<4x8x8xf32>
    "tpu.trace_stop"() : () -> ()
    %cst_47 = arith.constant 0.353553385 : f32
    %136 = vector.broadcast %cst_47 : f32 to vector<4x8x8xf32>
    %137 = arith.mulf %135, %136 : vector<4x8x8xf32>
    %138 = vector.broadcast %50 : vector<1x1x8xf32> to vector<4x8x8xf32>
    %139 = arith.addf %137, %138 : vector<4x8x8xf32>
    %cst_48 = arith.constant dense<0xFF800000> : vector<4x8xf32>
    %140 = vector.multi_reduction <maximumf>, %139, %cst_48 [2] : vector<4x8x8xf32> to vector<4x8xf32>
    %141 = vector.shape_cast %140 : vector<4x8xf32> to vector<4x8x1xf32>
    %142 = vector.broadcast %141 : vector<4x8x1xf32> to vector<4x8x8xf32>
    %143 = arith.subf %139, %142 : vector<4x8x8xf32>
    %144 = math.exp %143 : vector<4x8x8xf32>
    %cst_49 = arith.constant dense<0.000000e+00> : vector<4x8xf32>
    %145 = vector.multi_reduction <add>, %144, %cst_49 [2] : vector<4x8x8xf32> to vector<4x8xf32>
    %146 = vector.shape_cast %145 : vector<4x8xf32> to vector<4x8x1xf32>
    %147 = tpu.reciprocal %146 {approx = true} : vector<4x8x1xf32> -> vector<4x8x1xf32>
    %148 = arith.truncf %144 : vector<4x8x8xf32> to vector<4x8x8xbf16>
    "tpu.trace_start"() <{level = 10 : i32, message = "nqk,nkd->nqd"}> : () -> ()
    %cst_50 = arith.constant dense<0.000000e+00> : vector<4x8x8xf32>
    %149 = tpu.matmul %148, %134, %cst_50 {dimension_numbers = #tpu.dot_dimension_numbers<[2], [1], [1], [2], [0, 0, 0, 1, 1, 2], [0], [0]>} : vector<4x8x8xbf16>, vector<4x8x8xbf16>, vector<4x8x8xf32> -> vector<4x8x8xf32>
    "tpu.trace_stop"() : () -> ()
    %150 = vector.broadcast %147 : vector<4x8x1xf32> to vector<4x8x8xf32>
    %151 = arith.mulf %149, %150 : vector<4x8x8xf32>
    %152 = vector.shape_cast %151 : vector<4x8x8xf32> to vector<32x8xf32>
    %153 = arith.truncf %152 : vector<32x8xf32> to vector<32x8xbf16>
    %c0_51 = arith.constant 0 : index
    %c24 = arith.constant 24 : index
    %154 = vector.load %arg19[%c0_51, %c24] : memref<32x32xbf16, #tpu.memory_space<vmem>>, vector<32x8xbf16>
    tpu.vector_store %arg19[%c0_51, %c24], %153 {strides = array<i32>} : memref<32x32xbf16, #tpu.memory_space<vmem>>, vector<32x8xbf16>,
    %c0_52 = arith.constant 0 : index
    %c0_53 = arith.constant 0 : index
    %155 = vector.load %arg19[%c0_52, %c0_53] : memref<32x32xbf16, #tpu.memory_space<vmem>>, vector<32x32xbf16>
    %c0_54 = arith.constant 0 : index
    %c0_55 = arith.constant 0 : index
    %156 = vector.load %arg10[%c0_54, %c0_55] : memref<32x32xbf16, #tpu.memory_space<vmem>>, vector<32x32xbf16>
    %cst_56 = arith.constant dense<0.000000e+00> : vector<32x32xf32>
    %157 = tpu.matmul %155, %156, %cst_56 {dimension_numbers = #tpu.dot_dimension_numbers<[1], [0], [0], [1], [0, 0, 1, 1], [], []>} : vector<32x32xbf16>, vector<32x32xbf16>, vector<32x32xf32> -> vector<32x32xf32>
    %158 = arith.addf %1, %157 : vector<32x32xf32>
    %c0_57 = arith.constant 0 : index
    %c0_58 = arith.constant 0 : index
    %159 = vector.load %arg11[%c0_57, %c0_58] : memref<1x32xf32, #tpu.memory_space<vmem>>, vector<1x32xf32>
    %160 = vector.broadcast %159 : vector<1x32xf32> to vector<32x32xf32>
    %161 = arith.addf %158, %160 : vector<32x32xf32>
    %cst_59 = arith.constant dense<0.000000e+00> : vector<32xf32>
    %162 = vector.multi_reduction <add>, %161, %cst_59 [1] : vector<32x32xf32> to vector<32xf32>
    %163 = vector.shape_cast %162 : vector<32xf32> to vector<32x1xf32>
    %cst_60 = arith.constant 3.200000e+01 : f32
    %164 = vector.broadcast %cst_60 : f32 to vector<32x1xf32>
    %165 = arith.divf %163, %164 : vector<32x1xf32>
    %166 = vector.broadcast %165 : vector<32x1xf32> to vector<32x32xf32>
    %167 = arith.subf %161, %166 : vector<32x32xf32>
    %168 = arith.mulf %167, %167 : vector<32x32xf32>
    %cst_61 = arith.constant dense<0.000000e+00> : vector<32xf32>
    %169 = vector.multi_reduction <add>, %168, %cst_61 [1] : vector<32x32xf32> to vector<32xf32>
    %170 = vector.shape_cast %169 : vector<32xf32> to vector<32x1xf32>
    %cst_62 = arith.constant 3.200000e+01 : f32
    %171 = vector.broadcast %cst_62 : f32 to vector<32x1xf32>
    %172 = arith.divf %170, %171 : vector<32x1xf32>
    %173 = vector.broadcast %165 : vector<32x1xf32> to vector<32x32xf32>
    %174 = arith.subf %161, %173 : vector<32x32xf32>
    %cst_63 = arith.constant 9.99999974E-6 : f32
    %175 = vector.broadcast %cst_63 : f32 to vector<32x1xf32>
    %176 = arith.addf %172, %175 : vector<32x1xf32>
    %177 = math.rsqrt %176 : vector<32x1xf32>
    %178 = vector.broadcast %177 : vector<32x1xf32> to vector<32x32xf32>
    %179 = arith.mulf %174, %178 : vector<32x32xf32>
    %c0_64 = arith.constant 0 : index
    %c0_65 = arith.constant 0 : index
    %180 = vector.load %arg12[%c0_64, %c0_65] : memref<1x32xf32, #tpu.memory_space<vmem>>, vector<1x32xf32>
    %181 = vector.broadcast %180 : vector<1x32xf32> to vector<32x32xf32>
    %182 = arith.mulf %179, %181 : vector<32x32xf32>
    %c0_66 = arith.constant 0 : index
    %c0_67 = arith.constant 0 : index
    %183 = vector.load %arg13[%c0_66, %c0_67] : memref<1x32xf32, #tpu.memory_space<vmem>>, vector<1x32xf32>
    %184 = vector.broadcast %183 : vector<1x32xf32> to vector<32x32xf32>
    %185 = arith.addf %182, %184 : vector<32x32xf32>
    %186 = arith.truncf %185 : vector<32x32xf32> to vector<32x32xbf16>
    %c0_68 = arith.constant 0 : index
    %c0_69 = arith.constant 0 : index
    %187 = vector.load %arg14[%c0_68, %c0_69] : memref<32x128xbf16, #tpu.memory_space<vmem>>, vector<32x128xbf16>
    %cst_70 = arith.constant dense<0.000000e+00> : vector<32x128xf32>
    %188 = tpu.matmul %186, %187, %cst_70 {dimension_numbers = #tpu.dot_dimension_numbers<[1], [0], [0], [1], [0, 0, 1, 1], [], []>} : vector<32x32xbf16>, vector<32x128xbf16>, vector<32x128xf32> -> vector<32x128xf32>
    %c0_71 = arith.constant 0 : index
    %c0_72 = arith.constant 0 : index
    %189 = vector.load %arg15[%c0_71, %c0_72] : memref<1x128xf32, #tpu.memory_space<vmem>>, vector<1x128xf32>
    %190 = vector.broadcast %189 : vector<1x128xf32> to vector<32x128xf32>
    %191 = arith.addf %188, %190 : vector<32x128xf32>
    %192 = arith.mulf %191, %191 : vector<32x128xf32>
    %193 = arith.mulf %191, %192 : vector<32x128xf32>
    %cst_73 = arith.constant 4.471500e-02 : f32
    %194 = vector.broadcast %cst_73 : f32 to vector<32x128xf32>
    %195 = arith.mulf %194, %193 : vector<32x128xf32>
    %196 = arith.addf %191, %195 : vector<32x128xf32>
    %cst_74 = arith.constant 0.797884583 : f32
    %197 = vector.broadcast %cst_74 : f32 to vector<32x128xf32>
    %198 = arith.mulf %197, %196 : vector<32x128xf32>
    %199 = math.tanh %198 : vector<32x128xf32>
    %cst_75 = arith.constant 1.000000e+00 : f32
    %200 = vector.broadcast %cst_75 : f32 to vector<32x128xf32>
    %201 = arith.addf %200, %199 : vector<32x128xf32>
    %cst_76 = arith.constant 5.000000e-01 : f32
    %202 = vector.broadcast %cst_76 : f32 to vector<32x128xf32>
    %203 = arith.mulf %202, %201 : vector<32x128xf32>
    %204 = arith.mulf %191, %203 : vector<32x128xf32>
    %205 = arith.truncf %204 : vector<32x128xf32> to vector<32x128xbf16>
    %c0_77 = arith.constant 0 : index
    %c0_78 = arith.constant 0 : index
    %206 = vector.load %arg16[%c0_77, %c0_78] : memref<128x32xbf16, #tpu.memory_space<vmem>>, vector<128x32xbf16>
    %cst_79 = arith.constant dense<0.000000e+00> : vector<32x32xf32>
    %207 = tpu.matmul %205, %206, %cst_79 {dimension_numbers = #tpu.dot_dimension_numbers<[1], [0], [0], [1], [0, 0, 1, 1], [], []>} : vector<32x128xbf16>, vector<128x32xbf16>, vector<32x32xf32> -> vector<32x32xf32>
    %c0_80 = arith.constant 0 : index
    %c0_81 = arith.constant 0 : index
    %208 = vector.load %arg17[%c0_80, %c0_81] : memref<1x32xf32, #tpu.memory_space<vmem>>, vector<1x32xf32>
    %209 = vector.broadcast %208 : vector<1x32xf32> to vector<32x32xf32>
    %210 = arith.addf %207, %209 : vector<32x32xf32>
    %211 = arith.addf %161, %210 : vector<32x32xf32>
    %212 = vector.shape_cast %211 : vector<32x32xf32> to vector<4x8x32xf32>
    %c0_82 = arith.constant 0 : index
    %c0_83 = arith.constant 0 : index
    %c0_84 = arith.constant 0 : index
    %213 = vector.load %arg18[%c0_82, %c0_83, %c0_84] : memref<4x8x32xf32, #tpu.memory_space<vmem>>, vector<4x8x32xf32>
    tpu.vector_store %arg18[%c0_82, %c0_83, %c0_84], %212 {strides = array<i32>} : memref<4x8x32xf32, #tpu.memory_space<vmem>>, vector<4x8x32xf32>,
    return
  }
  func.func @transform_0(%arg0: i32) -> (i32, i32, i32) {
    %c0_i32 = arith.constant 0 : i32
    %c0_i32_0 = arith.constant 0 : i32
    %c0_i32_1 = arith.constant 0 : i32
    return %arg0, %c0_i32, %c0_i32_0 : i32, i32, i32
  }
  func.func @transform_1(%arg0: i32) -> (i32, i32) {
    %c0_i32 = arith.constant 0 : i32
    %c0_i32_0 = arith.constant 0 : i32
    %c0_i32_1 = arith.constant 0 : i32
    return %c0_i32, %c0_i32_0 : i32, i32
  }
  func.func @transform_2(%arg0: i32) -> (i32, i32) {
    %c0_i32 = arith.constant 0 : i32
    %c0_i32_0 = arith.constant 0 : i32
    %c0_i32_1 = arith.constant 0 : i32
    return %c0_i32, %c0_i32_0 : i32, i32
  }
  func.func @transform_3(%arg0: i32) -> (i32, i32) {
    %c0_i32 = arith.constant 0 : i32
    %c0_i32_0 = arith.constant 0 : i32
    %c0_i32_1 = arith.constant 0 : i32
    return %c0_i32, %c0_i32_0 : i32, i32
  }
  func.func @transform_4(%arg0: i32) -> (i32, i32) {
    %c0_i32 = arith.constant 0 : i32
    %c0_i32_0 = arith.constant 0 : i32
    %c0_i32_1 = arith.constant 0 : i32
    return %c0_i32, %c0_i32_0 : i32, i32
  }
  func.func @transform_5(%arg0: i32) -> (i32, i32) {
    %c0_i32 = arith.constant 0 : i32
    %c0_i32_0 = arith.constant 0 : i32
    %c0_i32_1 = arith.constant 0 : i32
    return %c0_i32, %c0_i32_0 : i32, i32
  }
  func.func @transform_6(%arg0: i32) -> (i32, i32) {
    %c0_i32 = arith.constant 0 : i32
    %c0_i32_0 = arith.constant 0 : i32
    %c0_i32_1 = arith.constant 0 : i32
    return %c0_i32, %c0_i32_0 : i32, i32
  }
  func.func @transform_7(%arg0: i32) -> (i32, i32) {
    %c0_i32 = arith.constant 0 : i32
    %c0_i32_0 = arith.constant 0 : i32
    %c0_i32_1 = arith.constant 0 : i32
    return %c0_i32, %c0_i32_0 : i32, i32
  }
  func.func @transform_8(%arg0: i32) -> (i32, i32) {
    %c0_i32 = arith.constant 0 : i32
    %c0_i32_0 = arith.constant 0 : i32
    %c0_i32_1 = arith.constant 0 : i32
    return %c0_i32, %c0_i32_0 : i32, i32
  }
  func.func @transform_9(%arg0: i32) -> (i32, i32) {
    %c0_i32 = arith.constant 0 : i32
    %c0_i32_0 = arith.constant 0 : i32
    %c0_i32_1 = arith.constant 0 : i32
    return %c0_i32, %c0_i32_0 : i32, i32
  }
  func.func @transform_10(%arg0: i32) -> (i32, i32) {
    %c0_i32 = arith.constant 0 : i32
    %c0_i32_0 = arith.constant 0 : i32
    %c0_i32_1 = arith.constant 0 : i32
    return %c0_i32, %c0_i32_0 : i32, i32
  }
  func.func @transform_11(%arg0: i32) -> (i32, i32) {
    %c0_i32 = arith.constant 0 : i32
    %c0_i32_0 = arith.constant 0 : i32
    %c0_i32_1 = arith.constant 0 : i32
    return %c0_i32, %c0_i32_0 : i32, i32
  }
  func.func @transform_12(%arg0: i32) -> (i32, i32) {
    %c0_i32 = arith.constant 0 : i32
    %c0_i32_0 = arith.constant 0 : i32
    %c0_i32_1 = arith.constant 0 : i32
    return %c0_i32, %c0_i32_0 : i32, i32
  }
  func.func @transform_13(%arg0: i32) -> (i32, i32) {
    %c0_i32 = arith.constant 0 : i32
    %c0_i32_0 = arith.constant 0 : i32
    %c0_i32_1 = arith.constant 0 : i32
    return %c0_i32, %c0_i32_0 : i32, i32
  }
  func.func @transform_14(%arg0: i32) -> (i32, i32) {
    %c0_i32 = arith.constant 0 : i32
    %c0_i32_0 = arith.constant 0 : i32
    %c0_i32_1 = arith.constant 0 : i32
    return %c0_i32, %c0_i32_0 : i32, i32
  }
  func.func @transform_15(%arg0: i32) -> (i32, i32) {
    %c0_i32 = arith.constant 0 : i32
    %c0_i32_0 = arith.constant 0 : i32
    %c0_i32_1 = arith.constant 0 : i32
    return %c0_i32, %c0_i32_0 : i32, i32
  }
  func.func @transform_16(%arg0: i32) -> (i32, i32) {
    %c0_i32 = arith.constant 0 : i32
    %c0_i32_0 = arith.constant 0 : i32
    %c0_i32_1 = arith.constant 0 : i32
    return %c0_i32, %c0_i32_0 : i32, i32
  }
  func.func @transform_17(%arg0: i32) -> (i32, i32, i32) {
    %c0_i32 = arith.constant 0 : i32
    %c0_i32_0 = arith.constant 0 : i32
    %c0_i32_1 = arith.constant 0 : i32
    return %arg0, %c0_i32, %c0_i32_0 : i32, i32, i32
  }
}

module attributes {stable_mosaic.version = 11 : i64} {
  func.func @_block_kernel(%arg0: i32, %arg1: memref<2x8x32xf32, #tpu.memory_space<vmem>>, %arg2: memref<1x32xf32, #tpu.memory_space<vmem>>, %arg3: memref<1x32xf32, #tpu.memory_space<vmem>>, %arg4: memref<32x32xbf16, #tpu.memory_space<vmem>>, %arg5: memref<32x32xbf16, #tpu.memory_space<vmem>>, %arg6: memref<32x32xbf16, #tpu.memory_space<vmem>>, %arg7: memref<1x32xf32, #tpu.memory_space<vmem>>, %arg8: memref<1x32xf32, #tpu.memory_space<vmem>>, %arg9: memref<1x32xf32, #tpu.memory_space<vmem>>, %arg10: memref<32x32xbf16, #tpu.memory_space<vmem>>, %arg11: memref<1x32xf32, #tpu.memory_space<vmem>>, %arg12: memref<1x32xf32, #tpu.memory_space<vmem>>, %arg13: memref<1x32xf32, #tpu.memory_space<vmem>>, %arg14: memref<32x128xbf16, #tpu.memory_space<vmem>>, %arg15: memref<1x128xf32, #tpu.memory_space<vmem>>, %arg16: memref<128x32xbf16, #tpu.memory_space<vmem>>, %arg17: memref<1x32xf32, #tpu.memory_space<vmem>>, %arg18: memref<2x8x32xf32, #tpu.memory_space<vmem>>, %arg19: memref<16x32xbf16, #tpu.memory_space<vmem>>) attributes {dimension_semantics = [#tpu.dimension_semantics<parallel>], iteration_bounds = array<i64: 1>, scalar_prefetch = 0 : i64, scratch_operands = 1 : i64, tpu.core_type = #tpu.core_type<tc>, window_params = [{transform_indices = @transform_0, window_bounds = array<i64: 2, 8, 32>}, {pipeline_mode = #tpu.pipeline_mode<synchronous>, transform_indices = @transform_1, window_bounds = array<i64: 1, 32>}, {pipeline_mode = #tpu.pipeline_mode<synchronous>, transform_indices = @transform_2, window_bounds = array<i64: 1, 32>}, {pipeline_mode = #tpu.pipeline_mode<synchronous>, transform_indices = @transform_3, window_bounds = array<i64: 32, 32>}, {pipeline_mode = #tpu.pipeline_mode<synchronous>, transform_indices = @transform_4, window_bounds = array<i64: 32, 32>}, {pipeline_mode = #tpu.pipeline_mode<synchronous>, transform_indices = @transform_5, window_bounds = array<i64: 32, 32>}, {pipeline_mode = #tpu.pipeline_mode<synchronous>, transform_indices = @transform_6, window_bounds = array<i64: 1, 32>}, {pipeline_mode = #tpu.pipeline_mode<synchronous>, transform_indices = @transform_7, window_bounds = array<i64: 1, 32>}, {pipeline_mode = #tpu.pipeline_mode<synchronous>, transform_indices = @transform_8, window_bounds = array<i64: 1, 32>}, {pipeline_mode = #tpu.pipeline_mode<synchronous>, transform_indices = @transform_9, window_bounds = array<i64: 32, 32>}, {pipeline_mode = #tpu.pipeline_mode<synchronous>, transform_indices = @transform_10, window_bounds = array<i64: 1, 32>}, {pipeline_mode = #tpu.pipeline_mode<synchronous>, transform_indices = @transform_11, window_bounds = array<i64: 1, 32>}, {pipeline_mode = #tpu.pipeline_mode<synchronous>, transform_indices = @transform_12, window_bounds = array<i64: 1, 32>}, {pipeline_mode = #tpu.pipeline_mode<synchronous>, transform_indices = @transform_13, window_bounds = array<i64: 32, 128>}, {pipeline_mode = #tpu.pipeline_mode<synchronous>, transform_indices = @transform_14, window_bounds = array<i64: 1, 128>}, {pipeline_mode = #tpu.pipeline_mode<synchronous>, transform_indices = @transform_15, window_bounds = array<i64: 128, 32>}, {pipeline_mode = #tpu.pipeline_mode<synchronous>, transform_indices = @transform_16, window_bounds = array<i64: 1, 32>}, {transform_indices = @transform_17, window_bounds = array<i64: 2, 8, 32>}]} {
    %c0 = arith.constant 0 : index
    %c0_0 = arith.constant 0 : index
    %c0_1 = arith.constant 0 : index
    %0 = vector.load %arg1[%c0, %c0_0, %c0_1] : memref<2x8x32xf32, #tpu.memory_space<vmem>>, vector<2x8x32xf32>
    %1 = vector.shape_cast %0 : vector<2x8x32xf32> to vector<16x32xf32>
    %cst = arith.constant dense<0.000000e+00> : vector<16xf32>
    %2 = vector.multi_reduction <add>, %1, %cst [1] : vector<16x32xf32> to vector<16xf32>
    %3 = vector.shape_cast %2 : vector<16xf32> to vector<16x1xf32>
    %cst_2 = arith.constant 3.200000e+01 : f32
    %4 = vector.broadcast %cst_2 : f32 to vector<16x1xf32>
    %5 = arith.divf %3, %4 : vector<16x1xf32>
    %6 = vector.broadcast %5 : vector<16x1xf32> to vector<16x32xf32>
    %7 = arith.subf %1, %6 : vector<16x32xf32>
    %8 = arith.mulf %7, %7 : vector<16x32xf32>
    %cst_3 = arith.constant dense<0.000000e+00> : vector<16xf32>
    %9 = vector.multi_reduction <add>, %8, %cst_3 [1] : vector<16x32xf32> to vector<16xf32>
    %10 = vector.shape_cast %9 : vector<16xf32> to vector<16x1xf32>
    %cst_4 = arith.constant 3.200000e+01 : f32
    %11 = vector.broadcast %cst_4 : f32 to vector<16x1xf32>
    %12 = arith.divf %10, %11 : vector<16x1xf32>
    %13 = vector.broadcast %5 : vector<16x1xf32> to vector<16x32xf32>
    %14 = arith.subf %1, %13 : vector<16x32xf32>
    %cst_5 = arith.constant 9.99999974E-6 : f32
    %15 = vector.broadcast %cst_5 : f32 to vector<16x1xf32>
    %16 = arith.addf %12, %15 : vector<16x1xf32>
    %17 = math.rsqrt %16 : vector<16x1xf32>
    %18 = vector.broadcast %17 : vector<16x1xf32> to vector<16x32xf32>
    %19 = arith.mulf %14, %18 : vector<16x32xf32>
    %c0_6 = arith.constant 0 : index
    %c0_7 = arith.constant 0 : index
    %20 = vector.load %arg2[%c0_6, %c0_7] : memref<1x32xf32, #tpu.memory_space<vmem>>, vector<1x32xf32>
    %21 = vector.broadcast %20 : vector<1x32xf32> to vector<16x32xf32>
    %22 = arith.mulf %19, %21 : vector<16x32xf32>
    %c0_8 = arith.constant 0 : index
    %c0_9 = arith.constant 0 : index
    %23 = vector.load %arg3[%c0_8, %c0_9] : memref<1x32xf32, #tpu.memory_space<vmem>>, vector<1x32xf32>
    %24 = vector.broadcast %23 : vector<1x32xf32> to vector<16x32xf32>
    %25 = arith.addf %22, %24 : vector<16x32xf32>
    %26 = arith.truncf %25 : vector<16x32xf32> to vector<16x32xbf16>
    %c0_10 = arith.constant 0 : index
    %c0_11 = arith.constant 0 : index
    %27 = vector.load %arg4[%c0_10, %c0_11] : memref<32x32xbf16, #tpu.memory_space<vmem>>, vector<32x32xbf16>
    %cst_12 = arith.constant dense<0.000000e+00> : vector<16x32xf32>
    %28 = tpu.matmul %26, %27, %cst_12 {dimension_numbers = #tpu.dot_dimension_numbers<[1], [0], [0], [1], [0, 0, 1, 1], [], []>} : vector<16x32xbf16>, vector<32x32xbf16>, vector<16x32xf32> -> vector<16x32xf32>
    %c0_13 = arith.constant 0 : index
    %c0_14 = arith.constant 0 : index
    %29 = vector.load %arg7[%c0_13, %c0_14] : memref<1x32xf32, #tpu.memory_space<vmem>>, vector<1x32xf32>
    %30 = vector.broadcast %29 : vector<1x32xf32> to vector<16x32xf32>
    %31 = arith.addf %28, %30 : vector<16x32xf32>
    %32 = arith.truncf %31 : vector<16x32xf32> to vector<16x32xbf16>
    %c0_15 = arith.constant 0 : index
    %c0_16 = arith.constant 0 : index
    %33 = vector.load %arg5[%c0_15, %c0_16] : memref<32x32xbf16, #tpu.memory_space<vmem>>, vector<32x32xbf16>
    %cst_17 = arith.constant dense<0.000000e+00> : vector<16x32xf32>
    %34 = tpu.matmul %26, %33, %cst_17 {dimension_numbers = #tpu.dot_dimension_numbers<[1], [0], [0], [1], [0, 0, 1, 1], [], []>} : vector<16x32xbf16>, vector<32x32xbf16>, vector<16x32xf32> -> vector<16x32xf32>
    %c0_18 = arith.constant 0 : index
    %c0_19 = arith.constant 0 : index
    %35 = vector.load %arg8[%c0_18, %c0_19] : memref<1x32xf32, #tpu.memory_space<vmem>>, vector<1x32xf32>
    %36 = vector.broadcast %35 : vector<1x32xf32> to vector<16x32xf32>
    %37 = arith.addf %34, %36 : vector<16x32xf32>
    %38 = arith.truncf %37 : vector<16x32xf32> to vector<16x32xbf16>
    %c0_20 = arith.constant 0 : index
    %c0_21 = arith.constant 0 : index
    %39 = vector.load %arg6[%c0_20, %c0_21] : memref<32x32xbf16, #tpu.memory_space<vmem>>, vector<32x32xbf16>
    %cst_22 = arith.constant dense<0.000000e+00> : vector<16x32xf32>
    %40 = tpu.matmul %26, %39, %cst_22 {dimension_numbers = #tpu.dot_dimension_numbers<[1], [0], [0], [1], [0, 0, 1, 1], [], []>} : vector<16x32xbf16>, vector<32x32xbf16>, vector<16x32xf32> -> vector<16x32xf32>
    %c0_23 = arith.constant 0 : index
    %c0_24 = arith.constant 0 : index
    %41 = vector.load %arg9[%c0_23, %c0_24] : memref<1x32xf32, #tpu.memory_space<vmem>>, vector<1x32xf32>
    %42 = vector.broadcast %41 : vector<1x32xf32> to vector<16x32xf32>
    %43 = arith.addf %40, %42 : vector<16x32xf32>
    %44 = arith.truncf %43 : vector<16x32xf32> to vector<16x32xbf16>
    %45 = tpu.iota {dimensions = array<i32: 2>} : vector<1x1x8xi32>
    %c3_i32 = arith.constant 3 : i32
    %46 = vector.broadcast %c3_i32 : i32 to vector<1x1x8xi32>
    %47 = arith.cmpi slt, %45, %46 : vector<1x1x8xi32>
    %cst_25 = arith.constant 0.000000e+00 : f32
    %cst_26 = arith.constant -1.000000e+30 : f32
    %48 = vector.broadcast %cst_25 : f32 to vector<1x1x8xf32>
    %49 = vector.broadcast %cst_26 : f32 to vector<1x1x8xf32>
    %50 = arith.select %47, %48, %49 : vector<1x1x8xi1>, vector<1x1x8xf32>
    %51 = vector.extract_strided_slice %32 {offsets = [0, 0], sizes = [16, 8], strides = [1, 1]} : vector<16x32xbf16> to vector<16x8xbf16>
    %52 = vector.shape_cast %51 : vector<16x8xbf16> to vector<2x8x8xbf16>
    %53 = vector.extract_strided_slice %38 {offsets = [0, 0], sizes = [16, 8], strides = [1, 1]} : vector<16x32xbf16> to vector<16x8xbf16>
    %54 = vector.shape_cast %53 : vector<16x8xbf16> to vector<2x8x8xbf16>
    %55 = vector.extract_strided_slice %44 {offsets = [0, 0], sizes = [16, 8], strides = [1, 1]} : vector<16x32xbf16> to vector<16x8xbf16>
    %56 = vector.shape_cast %55 : vector<16x8xbf16> to vector<2x8x8xbf16>
    "tpu.trace_start"() <{level = 10 : i32, message = "nqd,nkd->nqk"}> : () -> ()
    %cst_27 = arith.constant dense<0.000000e+00> : vector<2x8x8xf32>
    %57 = tpu.matmul %52, %54, %cst_27 {dimension_numbers = #tpu.dot_dimension_numbers<[2], [2], [1], [1], [0, 0, 0, 1, 1, 1], [0], [0]>} : vector<2x8x8xbf16>, vector<2x8x8xbf16>, vector<2x8x8xf32> -> vector<2x8x8xf32>
    "tpu.trace_stop"() : () -> ()
    %cst_28 = arith.constant 0.353553385 : f32
    %58 = vector.broadcast %cst_28 : f32 to vector<2x8x8xf32>
    %59 = arith.mulf %57, %58 : vector<2x8x8xf32>
    %60 = vector.broadcast %50 : vector<1x1x8xf32> to vector<2x8x8xf32>
    %61 = arith.addf %59, %60 : vector<2x8x8xf32>
    %cst_29 = arith.constant dense<0xFF800000> : vector<2x8xf32>
    %62 = vector.multi_reduction <maximumf>, %61, %cst_29 [2] : vector<2x8x8xf32> to vector<2x8xf32>
    %63 = vector.shape_cast %62 : vector<2x8xf32> to vector<2x8x1xf32>
    %64 = vector.broadcast %63 : vector<2x8x1xf32> to vector<2x8x8xf32>
    %65 = arith.subf %61, %64 : vector<2x8x8xf32>
    %66 = math.exp %65 : vector<2x8x8xf32>
    %cst_30 = arith.constant dense<0.000000e+00> : vector<2x8xf32>
    %67 = vector.multi_reduction <add>, %66, %cst_30 [2] : vector<2x8x8xf32> to vector<2x8xf32>
    %68 = vector.shape_cast %67 : vector<2x8xf32> to vector<2x8x1xf32>
    %69 = tpu.reciprocal %68 {approx = true} : vector<2x8x1xf32> -> vector<2x8x1xf32>
    %70 = arith.truncf %66 : vector<2x8x8xf32> to vector<2x8x8xbf16>
    "tpu.trace_start"() <{level = 10 : i32, message = "nqk,nkd->nqd"}> : () -> ()
    %cst_31 = arith.constant dense<0.000000e+00> : vector<2x8x8xf32>
    %71 = tpu.matmul %70, %56, %cst_31 {dimension_numbers = #tpu.dot_dimension_numbers<[2], [1], [1], [2], [0, 0, 0, 1, 1, 2], [0], [0]>} : vector<2x8x8xbf16>, vector<2x8x8xbf16>, vector<2x8x8xf32> -> vector<2x8x8xf32>
    "tpu.trace_stop"() : () -> ()
    %72 = vector.broadcast %69 : vector<2x8x1xf32> to vector<2x8x8xf32>
    %73 = arith.mulf %71, %72 : vector<2x8x8xf32>
    %74 = vector.shape_cast %73 : vector<2x8x8xf32> to vector<16x8xf32>
    %75 = arith.truncf %74 : vector<16x8xf32> to vector<16x8xbf16>
    %c0_32 = arith.constant 0 : index
    %c0_33 = arith.constant 0 : index
    %76 = vector.load %arg19[%c0_32, %c0_33] : memref<16x32xbf16, #tpu.memory_space<vmem>>, vector<16x8xbf16>
    tpu.vector_store %arg19[%c0_32, %c0_33], %75 {strides = array<i32>} : memref<16x32xbf16, #tpu.memory_space<vmem>>, vector<16x8xbf16>,
    %77 = vector.extract_strided_slice %32 {offsets = [0, 8], sizes = [16, 8], strides = [1, 1]} : vector<16x32xbf16> to vector<16x8xbf16>
    %78 = vector.shape_cast %77 : vector<16x8xbf16> to vector<2x8x8xbf16>
    %79 = vector.extract_strided_slice %38 {offsets = [0, 8], sizes = [16, 8], strides = [1, 1]} : vector<16x32xbf16> to vector<16x8xbf16>
    %80 = vector.shape_cast %79 : vector<16x8xbf16> to vector<2x8x8xbf16>
    %81 = vector.extract_strided_slice %44 {offsets = [0, 8], sizes = [16, 8], strides = [1, 1]} : vector<16x32xbf16> to vector<16x8xbf16>
    %82 = vector.shape_cast %81 : vector<16x8xbf16> to vector<2x8x8xbf16>
    "tpu.trace_start"() <{level = 10 : i32, message = "nqd,nkd->nqk"}> : () -> ()
    %cst_34 = arith.constant dense<0.000000e+00> : vector<2x8x8xf32>
    %83 = tpu.matmul %78, %80, %cst_34 {dimension_numbers = #tpu.dot_dimension_numbers<[2], [2], [1], [1], [0, 0, 0, 1, 1, 1], [0], [0]>} : vector<2x8x8xbf16>, vector<2x8x8xbf16>, vector<2x8x8xf32> -> vector<2x8x8xf32>
    "tpu.trace_stop"() : () -> ()
    %cst_35 = arith.constant 0.353553385 : f32
    %84 = vector.broadcast %cst_35 : f32 to vector<2x8x8xf32>
    %85 = arith.mulf %83, %84 : vector<2x8x8xf32>
    %86 = vector.broadcast %50 : vector<1x1x8xf32> to vector<2x8x8xf32>
    %87 = arith.addf %85, %86 : vector<2x8x8xf32>
    %cst_36 = arith.constant dense<0xFF800000> : vector<2x8xf32>
    %88 = vector.multi_reduction <maximumf>, %87, %cst_36 [2] : vector<2x8x8xf32> to vector<2x8xf32>
    %89 = vector.shape_cast %88 : vector<2x8xf32> to vector<2x8x1xf32>
    %90 = vector.broadcast %89 : vector<2x8x1xf32> to vector<2x8x8xf32>
    %91 = arith.subf %87, %90 : vector<2x8x8xf32>
    %92 = math.exp %91 : vector<2x8x8xf32>
    %cst_37 = arith.constant dense<0.000000e+00> : vector<2x8xf32>
    %93 = vector.multi_reduction <add>, %92, %cst_37 [2] : vector<2x8x8xf32> to vector<2x8xf32>
    %94 = vector.shape_cast %93 : vector<2x8xf32> to vector<2x8x1xf32>
    %95 = tpu.reciprocal %94 {approx = true} : vector<2x8x1xf32> -> vector<2x8x1xf32>
    %96 = arith.truncf %92 : vector<2x8x8xf32> to vector<2x8x8xbf16>
    "tpu.trace_start"() <{level = 10 : i32, message = "nqk,nkd->nqd"}> : () -> ()
    %cst_38 = arith.constant dense<0.000000e+00> : vector<2x8x8xf32>
    %97 = tpu.matmul %96, %82, %cst_38 {dimension_numbers = #tpu.dot_dimension_numbers<[2], [1], [1], [2], [0, 0, 0, 1, 1, 2], [0], [0]>} : vector<2x8x8xbf16>, vector<2x8x8xbf16>, vector<2x8x8xf32> -> vector<2x8x8xf32>
    "tpu.trace_stop"() : () -> ()
    %98 = vector.broadcast %95 : vector<2x8x1xf32> to vector<2x8x8xf32>
    %99 = arith.mulf %97, %98 : vector<2x8x8xf32>
    %100 = vector.shape_cast %99 : vector<2x8x8xf32> to vector<16x8xf32>
    %101 = arith.truncf %100 : vector<16x8xf32> to vector<16x8xbf16>
    %c0_39 = arith.constant 0 : index
    %c8 = arith.constant 8 : index
    %102 = vector.load %arg19[%c0_39, %c8] : memref<16x32xbf16, #tpu.memory_space<vmem>>, vector<16x8xbf16>
    tpu.vector_store %arg19[%c0_39, %c8], %101 {strides = array<i32>} : memref<16x32xbf16, #tpu.memory_space<vmem>>, vector<16x8xbf16>,
    %103 = vector.extract_strided_slice %32 {offsets = [0, 16], sizes = [16, 8], strides = [1, 1]} : vector<16x32xbf16> to vector<16x8xbf16>
    %104 = vector.shape_cast %103 : vector<16x8xbf16> to vector<2x8x8xbf16>
    %105 = vector.extract_strided_slice %38 {offsets = [0, 16], sizes = [16, 8], strides = [1, 1]} : vector<16x32xbf16> to vector<16x8xbf16>
    %106 = vector.shape_cast %105 : vector<16x8xbf16> to vector<2x8x8xbf16>
    %107 = vector.extract_strided_slice %44 {offsets = [0, 16], sizes = [16, 8], strides = [1, 1]} : vector<16x32xbf16> to vector<16x8xbf16>
    %108 = vector.shape_cast %107 : vector<16x8xbf16> to vector<2x8x8xbf16>
    "tpu.trace_start"() <{level = 10 : i32, message = "nqd,nkd->nqk"}> : () -> ()
    %cst_40 = arith.constant dense<0.000000e+00> : vector<2x8x8xf32>
    %109 = tpu.matmul %104, %106, %cst_40 {dimension_numbers = #tpu.dot_dimension_numbers<[2], [2], [1], [1], [0, 0, 0, 1, 1, 1], [0], [0]>} : vector<2x8x8xbf16>, vector<2x8x8xbf16>, vector<2x8x8xf32> -> vector<2x8x8xf32>
    "tpu.trace_stop"() : () -> ()
    %cst_41 = arith.constant 0.353553385 : f32
    %110 = vector.broadcast %cst_41 : f32 to vector<2x8x8xf32>
    %111 = arith.mulf %109, %110 : vector<2x8x8xf32>
    %112 = vector.broadcast %50 : vector<1x1x8xf32> to vector<2x8x8xf32>
    %113 = arith.addf %111, %112 : vector<2x8x8xf32>
    %cst_42 = arith.constant dense<0xFF800000> : vector<2x8xf32>
    %114 = vector.multi_reduction <maximumf>, %113, %cst_42 [2] : vector<2x8x8xf32> to vector<2x8xf32>
    %115 = vector.shape_cast %114 : vector<2x8xf32> to vector<2x8x1xf32>
    %116 = vector.broadcast %115 : vector<2x8x1xf32> to vector<2x8x8xf32>
    %117 = arith.subf %113, %116 : vector<2x8x8xf32>
    %118 = math.exp %117 : vector<2x8x8xf32>
    %cst_43 = arith.constant dense<0.000000e+00> : vector<2x8xf32>
    %119 = vector.multi_reduction <add>, %118, %cst_43 [2] : vector<2x8x8xf32> to vector<2x8xf32>
    %120 = vector.shape_cast %119 : vector<2x8xf32> to vector<2x8x1xf32>
    %121 = tpu.reciprocal %120 {approx = true} : vector<2x8x1xf32> -> vector<2x8x1xf32>
    %122 = arith.truncf %118 : vector<2x8x8xf32> to vector<2x8x8xbf16>
    "tpu.trace_start"() <{level = 10 : i32, message = "nqk,nkd->nqd"}> : () -> ()
    %cst_44 = arith.constant dense<0.000000e+00> : vector<2x8x8xf32>
    %123 = tpu.matmul %122, %108, %cst_44 {dimension_numbers = #tpu.dot_dimension_numbers<[2], [1], [1], [2], [0, 0, 0, 1, 1, 2], [0], [0]>} : vector<2x8x8xbf16>, vector<2x8x8xbf16>, vector<2x8x8xf32> -> vector<2x8x8xf32>
    "tpu.trace_stop"() : () -> ()
    %124 = vector.broadcast %121 : vector<2x8x1xf32> to vector<2x8x8xf32>
    %125 = arith.mulf %123, %124 : vector<2x8x8xf32>
    %126 = vector.shape_cast %125 : vector<2x8x8xf32> to vector<16x8xf32>
    %127 = arith.truncf %126 : vector<16x8xf32> to vector<16x8xbf16>
    %c0_45 = arith.constant 0 : index
    %c16 = arith.constant 16 : index
    %128 = vector.load %arg19[%c0_45, %c16] : memref<16x32xbf16, #tpu.memory_space<vmem>>, vector<16x8xbf16>
    tpu.vector_store %arg19[%c0_45, %c16], %127 {strides = array<i32>} : memref<16x32xbf16, #tpu.memory_space<vmem>>, vector<16x8xbf16>,
    %129 = vector.extract_strided_slice %32 {offsets = [0, 24], sizes = [16, 8], strides = [1, 1]} : vector<16x32xbf16> to vector<16x8xbf16>
    %130 = vector.shape_cast %129 : vector<16x8xbf16> to vector<2x8x8xbf16>
    %131 = vector.extract_strided_slice %38 {offsets = [0, 24], sizes = [16, 8], strides = [1, 1]} : vector<16x32xbf16> to vector<16x8xbf16>
    %132 = vector.shape_cast %131 : vector<16x8xbf16> to vector<2x8x8xbf16>
    %133 = vector.extract_strided_slice %44 {offsets = [0, 24], sizes = [16, 8], strides = [1, 1]} : vector<16x32xbf16> to vector<16x8xbf16>
    %134 = vector.shape_cast %133 : vector<16x8xbf16> to vector<2x8x8xbf16>
    "tpu.trace_start"() <{level = 10 : i32, message = "nqd,nkd->nqk"}> : () -> ()
    %cst_46 = arith.constant dense<0.000000e+00> : vector<2x8x8xf32>
    %135 = tpu.matmul %130, %132, %cst_46 {dimension_numbers = #tpu.dot_dimension_numbers<[2], [2], [1], [1], [0, 0, 0, 1, 1, 1], [0], [0]>} : vector<2x8x8xbf16>, vector<2x8x8xbf16>, vector<2x8x8xf32> -> vector<2x8x8xf32>
    "tpu.trace_stop"() : () -> ()
    %cst_47 = arith.constant 0.353553385 : f32
    %136 = vector.broadcast %cst_47 : f32 to vector<2x8x8xf32>
    %137 = arith.mulf %135, %136 : vector<2x8x8xf32>
    %138 = vector.broadcast %50 : vector<1x1x8xf32> to vector<2x8x8xf32>
    %139 = arith.addf %137, %138 : vector<2x8x8xf32>
    %cst_48 = arith.constant dense<0xFF800000> : vector<2x8xf32>
    %140 = vector.multi_reduction <maximumf>, %139, %cst_48 [2] : vector<2x8x8xf32> to vector<2x8xf32>
    %141 = vector.shape_cast %140 : vector<2x8xf32> to vector<2x8x1xf32>
    %142 = vector.broadcast %141 : vector<2x8x1xf32> to vector<2x8x8xf32>
    %143 = arith.subf %139, %142 : vector<2x8x8xf32>
    %144 = math.exp %143 : vector<2x8x8xf32>
    %cst_49 = arith.constant dense<0.000000e+00> : vector<2x8xf32>
    %145 = vector.multi_reduction <add>, %144, %cst_49 [2] : vector<2x8x8xf32> to vector<2x8xf32>
    %146 = vector.shape_cast %145 : vector<2x8xf32> to vector<2x8x1xf32>
    %147 = tpu.reciprocal %146 {approx = true} : vector<2x8x1xf32> -> vector<2x8x1xf32>
    %148 = arith.truncf %144 : vector<2x8x8xf32> to vector<2x8x8xbf16>
    "tpu.trace_start"() <{level = 10 : i32, message = "nqk,nkd->nqd"}> : () -> ()
    %cst_50 = arith.constant dense<0.000000e+00> : vector<2x8x8xf32>
    %149 = tpu.matmul %148, %134, %cst_50 {dimension_numbers = #tpu.dot_dimension_numbers<[2], [1], [1], [2], [0, 0, 0, 1, 1, 2], [0], [0]>} : vector<2x8x8xbf16>, vector<2x8x8xbf16>, vector<2x8x8xf32> -> vector<2x8x8xf32>
    "tpu.trace_stop"() : () -> ()
    %150 = vector.broadcast %147 : vector<2x8x1xf32> to vector<2x8x8xf32>
    %151 = arith.mulf %149, %150 : vector<2x8x8xf32>
    %152 = vector.shape_cast %151 : vector<2x8x8xf32> to vector<16x8xf32>
    %153 = arith.truncf %152 : vector<16x8xf32> to vector<16x8xbf16>
    %c0_51 = arith.constant 0 : index
    %c24 = arith.constant 24 : index
    %154 = vector.load %arg19[%c0_51, %c24] : memref<16x32xbf16, #tpu.memory_space<vmem>>, vector<16x8xbf16>
    tpu.vector_store %arg19[%c0_51, %c24], %153 {strides = array<i32>} : memref<16x32xbf16, #tpu.memory_space<vmem>>, vector<16x8xbf16>,
    %c0_52 = arith.constant 0 : index
    %c0_53 = arith.constant 0 : index
    %155 = vector.load %arg19[%c0_52, %c0_53] : memref<16x32xbf16, #tpu.memory_space<vmem>>, vector<16x32xbf16>
    %c0_54 = arith.constant 0 : index
    %c0_55 = arith.constant 0 : index
    %156 = vector.load %arg10[%c0_54, %c0_55] : memref<32x32xbf16, #tpu.memory_space<vmem>>, vector<32x32xbf16>
    %cst_56 = arith.constant dense<0.000000e+00> : vector<16x32xf32>
    %157 = tpu.matmul %155, %156, %cst_56 {dimension_numbers = #tpu.dot_dimension_numbers<[1], [0], [0], [1], [0, 0, 1, 1], [], []>} : vector<16x32xbf16>, vector<32x32xbf16>, vector<16x32xf32> -> vector<16x32xf32>
    %158 = arith.addf %1, %157 : vector<16x32xf32>
    %c0_57 = arith.constant 0 : index
    %c0_58 = arith.constant 0 : index
    %159 = vector.load %arg11[%c0_57, %c0_58] : memref<1x32xf32, #tpu.memory_space<vmem>>, vector<1x32xf32>
    %160 = vector.broadcast %159 : vector<1x32xf32> to vector<16x32xf32>
    %161 = arith.addf %158, %160 : vector<16x32xf32>
    %cst_59 = arith.constant dense<0.000000e+00> : vector<16xf32>
    %162 = vector.multi_reduction <add>, %161, %cst_59 [1] : vector<16x32xf32> to vector<16xf32>
    %163 = vector.shape_cast %162 : vector<16xf32> to vector<16x1xf32>
    %cst_60 = arith.constant 3.200000e+01 : f32
    %164 = vector.broadcast %cst_60 : f32 to vector<16x1xf32>
    %165 = arith.divf %163, %164 : vector<16x1xf32>
    %166 = vector.broadcast %165 : vector<16x1xf32> to vector<16x32xf32>
    %167 = arith.subf %161, %166 : vector<16x32xf32>
    %168 = arith.mulf %167, %167 : vector<16x32xf32>
    %cst_61 = arith.constant dense<0.000000e+00> : vector<16xf32>
    %169 = vector.multi_reduction <add>, %168, %cst_61 [1] : vector<16x32xf32> to vector<16xf32>
    %170 = vector.shape_cast %169 : vector<16xf32> to vector<16x1xf32>
    %cst_62 = arith.constant 3.200000e+01 : f32
    %171 = vector.broadcast %cst_62 : f32 to vector<16x1xf32>
    %172 = arith.divf %170, %171 : vector<16x1xf32>
    %173 = vector.broadcast %165 : vector<16x1xf32> to vector<16x32xf32>
    %174 = arith.subf %161, %173 : vector<16x32xf32>
    %cst_63 = arith.constant 9.99999974E-6 : f32
    %175 = vector.broadcast %cst_63 : f32 to vector<16x1xf32>
    %176 = arith.addf %172, %175 : vector<16x1xf32>
    %177 = math.rsqrt %176 : vector<16x1xf32>
    %178 = vector.broadcast %177 : vector<16x1xf32> to vector<16x32xf32>
    %179 = arith.mulf %174, %178 : vector<16x32xf32>
    %c0_64 = arith.constant 0 : index
    %c0_65 = arith.constant 0 : index
    %180 = vector.load %arg12[%c0_64, %c0_65] : memref<1x32xf32, #tpu.memory_space<vmem>>, vector<1x32xf32>
    %181 = vector.broadcast %180 : vector<1x32xf32> to vector<16x32xf32>
    %182 = arith.mulf %179, %181 : vector<16x32xf32>
    %c0_66 = arith.constant 0 : index
    %c0_67 = arith.constant 0 : index
    %183 = vector.load %arg13[%c0_66, %c0_67] : memref<1x32xf32, #tpu.memory_space<vmem>>, vector<1x32xf32>
    %184 = vector.broadcast %183 : vector<1x32xf32> to vector<16x32xf32>
    %185 = arith.addf %182, %184 : vector<16x32xf32>
    %186 = arith.truncf %185 : vector<16x32xf32> to vector<16x32xbf16>
    %c0_68 = arith.constant 0 : index
    %c0_69 = arith.constant 0 : index
    %187 = vector.load %arg14[%c0_68, %c0_69] : memref<32x128xbf16, #tpu.memory_space<vmem>>, vector<32x128xbf16>
    %cst_70 = arith.constant dense<0.000000e+00> : vector<16x128xf32>
    %188 = tpu.matmul %186, %187, %cst_70 {dimension_numbers = #tpu.dot_dimension_numbers<[1], [0], [0], [1], [0, 0, 1, 1], [], []>} : vector<16x32xbf16>, vector<32x128xbf16>, vector<16x128xf32> -> vector<16x128xf32>
    %c0_71 = arith.constant 0 : index
    %c0_72 = arith.constant 0 : index
    %189 = vector.load %arg15[%c0_71, %c0_72] : memref<1x128xf32, #tpu.memory_space<vmem>>, vector<1x128xf32>
    %190 = vector.broadcast %189 : vector<1x128xf32> to vector<16x128xf32>
    %191 = arith.addf %188, %190 : vector<16x128xf32>
    %192 = arith.mulf %191, %191 : vector<16x128xf32>
    %193 = arith.mulf %191, %192 : vector<16x128xf32>
    %cst_73 = arith.constant 4.471500e-02 : f32
    %194 = vector.broadcast %cst_73 : f32 to vector<16x128xf32>
    %195 = arith.mulf %194, %193 : vector<16x128xf32>
    %196 = arith.addf %191, %195 : vector<16x128xf32>
    %cst_74 = arith.constant 0.797884583 : f32
    %197 = vector.broadcast %cst_74 : f32 to vector<16x128xf32>
    %198 = arith.mulf %197, %196 : vector<16x128xf32>
    %199 = math.tanh %198 : vector<16x128xf32>
    %cst_75 = arith.constant 1.000000e+00 : f32
    %200 = vector.broadcast %cst_75 : f32 to vector<16x128xf32>
    %201 = arith.addf %200, %199 : vector<16x128xf32>
    %cst_76 = arith.constant 5.000000e-01 : f32
    %202 = vector.broadcast %cst_76 : f32 to vector<16x128xf32>
    %203 = arith.mulf %202, %201 : vector<16x128xf32>
    %204 = arith.mulf %191, %203 : vector<16x128xf32>
    %205 = arith.truncf %204 : vector<16x128xf32> to vector<16x128xbf16>
    %c0_77 = arith.constant 0 : index
    %c0_78 = arith.constant 0 : index
    %206 = vector.load %arg16[%c0_77, %c0_78] : memref<128x32xbf16, #tpu.memory_space<vmem>>, vector<128x32xbf16>
    %cst_79 = arith.constant dense<0.000000e+00> : vector<16x32xf32>
    %207 = tpu.matmul %205, %206, %cst_79 {dimension_numbers = #tpu.dot_dimension_numbers<[1], [0], [0], [1], [0, 0, 1, 1], [], []>} : vector<16x128xbf16>, vector<128x32xbf16>, vector<16x32xf32> -> vector<16x32xf32>
    %c0_80 = arith.constant 0 : index
    %c0_81 = arith.constant 0 : index
    %208 = vector.load %arg17[%c0_80, %c0_81] : memref<1x32xf32, #tpu.memory_space<vmem>>, vector<1x32xf32>
    %209 = vector.broadcast %208 : vector<1x32xf32> to vector<16x32xf32>
    %210 = arith.addf %207, %209 : vector<16x32xf32>
    %211 = arith.addf %161, %210 : vector<16x32xf32>
    %212 = vector.shape_cast %211 : vector<16x32xf32> to vector<2x8x32xf32>
    %c0_82 = arith.constant 0 : index
    %c0_83 = arith.constant 0 : index
    %c0_84 = arith.constant 0 : index
    %213 = vector.load %arg18[%c0_82, %c0_83, %c0_84] : memref<2x8x32xf32, #tpu.memory_space<vmem>>, vector<2x8x32xf32>
    tpu.vector_store %arg18[%c0_82, %c0_83, %c0_84], %212 {strides = array<i32>} : memref<2x8x32xf32, #tpu.memory_space<vmem>>, vector<2x8x32xf32>,
    return
  }
  func.func @transform_0(%arg0: i32) -> (i32, i32, i32) {
    %c0_i32 = arith.constant 0 : i32
    %c0_i32_0 = arith.constant 0 : i32
    %c0_i32_1 = arith.constant 0 : i32
    return %arg0, %c0_i32, %c0_i32_0 : i32, i32, i32
  }
  func.func @transform_1(%arg0: i32) -> (i32, i32) {
    %c0_i32 = arith.constant 0 : i32
    %c0_i32_0 = arith.constant 0 : i32
    %c0_i32_1 = arith.constant 0 : i32
    return %c0_i32, %c0_i32_0 : i32, i32
  }
  func.func @transform_2(%arg0: i32) -> (i32, i32) {
    %c0_i32 = arith.constant 0 : i32
    %c0_i32_0 = arith.constant 0 : i32
    %c0_i32_1 = arith.constant 0 : i32
    return %c0_i32, %c0_i32_0 : i32, i32
  }
  func.func @transform_3(%arg0: i32) -> (i32, i32) {
    %c0_i32 = arith.constant 0 : i32
    %c0_i32_0 = arith.constant 0 : i32
    %c0_i32_1 = arith.constant 0 : i32
    return %c0_i32, %c0_i32_0 : i32, i32
  }
  func.func @transform_4(%arg0: i32) -> (i32, i32) {
    %c0_i32 = arith.constant 0 : i32
    %c0_i32_0 = arith.constant 0 : i32
    %c0_i32_1 = arith.constant 0 : i32
    return %c0_i32, %c0_i32_0 : i32, i32
  }
  func.func @transform_5(%arg0: i32) -> (i32, i32) {
    %c0_i32 = arith.constant 0 : i32
    %c0_i32_0 = arith.constant 0 : i32
    %c0_i32_1 = arith.constant 0 : i32
    return %c0_i32, %c0_i32_0 : i32, i32
  }
  func.func @transform_6(%arg0: i32) -> (i32, i32) {
    %c0_i32 = arith.constant 0 : i32
    %c0_i32_0 = arith.constant 0 : i32
    %c0_i32_1 = arith.constant 0 : i32
    return %c0_i32, %c0_i32_0 : i32, i32
  }
  func.func @transform_7(%arg0: i32) -> (i32, i32) {
    %c0_i32 = arith.constant 0 : i32
    %c0_i32_0 = arith.constant 0 : i32
    %c0_i32_1 = arith.constant 0 : i32
    return %c0_i32, %c0_i32_0 : i32, i32
  }
  func.func @transform_8(%arg0: i32) -> (i32, i32) {
    %c0_i32 = arith.constant 0 : i32
    %c0_i32_0 = arith.constant 0 : i32
    %c0_i32_1 = arith.constant 0 : i32
    return %c0_i32, %c0_i32_0 : i32, i32
  }
  func.func @transform_9(%arg0: i32) -> (i32, i32) {
    %c0_i32 = arith.constant 0 : i32
    %c0_i32_0 = arith.constant 0 : i32
    %c0_i32_1 = arith.constant 0 : i32
    return %c0_i32, %c0_i32_0 : i32, i32
  }
  func.func @transform_10(%arg0: i32) -> (i32, i32) {
    %c0_i32 = arith.constant 0 : i32
    %c0_i32_0 = arith.constant 0 : i32
    %c0_i32_1 = arith.constant 0 : i32
    return %c0_i32, %c0_i32_0 : i32, i32
  }
  func.func @transform_11(%arg0: i32) -> (i32, i32) {
    %c0_i32 = arith.constant 0 : i32
    %c0_i32_0 = arith.constant 0 : i32
    %c0_i32_1 = arith.constant 0 : i32
    return %c0_i32, %c0_i32_0 : i32, i32
  }
  func.func @transform_12(%arg0: i32) -> (i32, i32) {
    %c0_i32 = arith.constant 0 : i32
    %c0_i32_0 = arith.constant 0 : i32
    %c0_i32_1 = arith.constant 0 : i32
    return %c0_i32, %c0_i32_0 : i32, i32
  }
  func.func @transform_13(%arg0: i32) -> (i32, i32) {
    %c0_i32 = arith.constant 0 : i32
    %c0_i32_0 = arith.constant 0 : i32
    %c0_i32_1 = arith.constant 0 : i32
    return %c0_i32, %c0_i32_0 : i32, i32
  }
  func.func @transform_14(%arg0: i32) -> (i32, i32) {
    %c0_i32 = arith.constant 0 : i32
    %c0_i32_0 = arith.constant 0 : i32
    %c0_i32_1 = arith.constant 0 : i32
    return %c0_i32, %c0_i32_0 : i32, i32
  }
  func.func @transform_15(%arg0: i32) -> (i32, i32) {
    %c0_i32 = arith.constant 0 : i32
    %c0_i32_0 = arith.constant 0 : i32
    %c0_i32_1 = arith.constant 0 : i32
    return %c0_i32, %c0_i32_0 : i32, i32
  }
  func.func @transform_16(%arg0: i32) -> (i32, i32) {
    %c0_i32 = arith.constant 0 : i32
    %c0_i32_0 = arith.constant 0 : i32
    %c0_i32_1 = arith.constant 0 : i32
    return %c0_i32, %c0_i32_0 : i32, i32
  }
  func.func @transform_17(%arg0: i32) -> (i32, i32, i32) {
    %c0_i32 = arith.constant 0 : i32
    %c0_i32_0 = arith.constant 0 : i32
    %c0_i32_1 = arith.constant 0 : i32
    return %arg0, %c0_i32, %c0_i32_0 : i32, i32, i32
  }
}

module attributes {stable_mosaic.version = 11 : i64} {
  func.func @_layernorm_kernel(%arg0: i32, %arg1: memref<2x32xf32, #tpu.memory_space<vmem>>, %arg2: memref<1x32xf32, #tpu.memory_space<vmem>>, %arg3: memref<1x32xf32, #tpu.memory_space<vmem>>, %arg4: memref<2x32xf32, #tpu.memory_space<vmem>>) attributes {dimension_semantics = [#tpu.dimension_semantics<parallel>], iteration_bounds = array<i64: 1>, scalar_prefetch = 0 : i64, scratch_operands = 0 : i64, tpu.core_type = #tpu.core_type<tc>, window_params = [{transform_indices = @transform_0, window_bounds = array<i64: 2, 32>}, {pipeline_mode = #tpu.pipeline_mode<synchronous>, transform_indices = @transform_1, window_bounds = array<i64: 1, 32>}, {pipeline_mode = #tpu.pipeline_mode<synchronous>, transform_indices = @transform_2, window_bounds = array<i64: 1, 32>}, {transform_indices = @transform_3, window_bounds = array<i64: 2, 32>}]} {
    %c0 = arith.constant 0 : index
    %c0_0 = arith.constant 0 : index
    %0 = vector.load %arg1[%c0, %c0_0] : memref<2x32xf32, #tpu.memory_space<vmem>>, vector<2x32xf32>
    %cst = arith.constant dense<0.000000e+00> : vector<2xf32>
    %1 = vector.multi_reduction <add>, %0, %cst [1] : vector<2x32xf32> to vector<2xf32>
    %2 = vector.shape_cast %1 : vector<2xf32> to vector<2x1xf32>
    %cst_1 = arith.constant 3.200000e+01 : f32
    %3 = vector.broadcast %cst_1 : f32 to vector<2x1xf32>
    %4 = arith.divf %2, %3 : vector<2x1xf32>
    %5 = vector.broadcast %4 : vector<2x1xf32> to vector<2x32xf32>
    %6 = arith.subf %0, %5 : vector<2x32xf32>
    %7 = arith.mulf %6, %6 : vector<2x32xf32>
    %cst_2 = arith.constant dense<0.000000e+00> : vector<2xf32>
    %8 = vector.multi_reduction <add>, %7, %cst_2 [1] : vector<2x32xf32> to vector<2xf32>
    %9 = vector.shape_cast %8 : vector<2xf32> to vector<2x1xf32>
    %cst_3 = arith.constant 3.200000e+01 : f32
    %10 = vector.broadcast %cst_3 : f32 to vector<2x1xf32>
    %11 = arith.divf %9, %10 : vector<2x1xf32>
    %12 = vector.broadcast %4 : vector<2x1xf32> to vector<2x32xf32>
    %13 = arith.subf %0, %12 : vector<2x32xf32>
    %cst_4 = arith.constant 9.99999997E-7 : f32
    %14 = vector.broadcast %cst_4 : f32 to vector<2x1xf32>
    %15 = arith.addf %11, %14 : vector<2x1xf32>
    %16 = math.rsqrt %15 : vector<2x1xf32>
    %17 = vector.broadcast %16 : vector<2x1xf32> to vector<2x32xf32>
    %18 = arith.mulf %13, %17 : vector<2x32xf32>
    %c0_5 = arith.constant 0 : index
    %c0_6 = arith.constant 0 : index
    %19 = vector.load %arg2[%c0_5, %c0_6] : memref<1x32xf32, #tpu.memory_space<vmem>>, vector<1x32xf32>
    %20 = vector.broadcast %19 : vector<1x32xf32> to vector<2x32xf32>
    %21 = arith.mulf %18, %20 : vector<2x32xf32>
    %c0_7 = arith.constant 0 : index
    %c0_8 = arith.constant 0 : index
    %22 = vector.load %arg3[%c0_7, %c0_8] : memref<1x32xf32, #tpu.memory_space<vmem>>, vector<1x32xf32>
    %23 = vector.broadcast %22 : vector<1x32xf32> to vector<2x32xf32>
    %24 = arith.addf %21, %23 : vector<2x32xf32>
    %c0_9 = arith.constant 0 : index
    %c0_10 = arith.constant 0 : index
    %25 = vector.load %arg4[%c0_9, %c0_10] : memref<2x32xf32, #tpu.memory_space<vmem>>, vector<2x32xf32>
    tpu.vector_store %arg4[%c0_9, %c0_10], %24 {strides = array<i32>} : memref<2x32xf32, #tpu.memory_space<vmem>>, vector<2x32xf32>,
    return
  }
  func.func @transform_0(%arg0: i32) -> (i32, i32) {
    %c0_i32 = arith.constant 0 : i32
    %c0_i32_0 = arith.constant 0 : i32
    return %arg0, %c0_i32 : i32, i32
  }
  func.func @transform_1(%arg0: i32) -> (i32, i32) {
    %c0_i32 = arith.constant 0 : i32
    %c0_i32_0 = arith.constant 0 : i32
    %c0_i32_1 = arith.constant 0 : i32
    return %c0_i32, %c0_i32_0 : i32, i32
  }
  func.func @transform_2(%arg0: i32) -> (i32, i32) {
    %c0_i32 = arith.constant 0 : i32
    %c0_i32_0 = arith.constant 0 : i32
    %c0_i32_1 = arith.constant 0 : i32
    return %c0_i32, %c0_i32_0 : i32, i32
  }
  func.func @transform_3(%arg0: i32) -> (i32, i32) {
    %c0_i32 = arith.constant 0 : i32
    %c0_i32_0 = arith.constant 0 : i32
    return %arg0, %c0_i32 : i32, i32
  }
}

</mosaic_0001>

<llo_original>
// kernel: tpu_custom_call.1
$region0: #{tpu_custom_call.1}
  #allocation0 [shape = 'u32[]', space=smem, size = 0x4, offset = 0x4, fixed_abs, tag = 'smem constant byte address 0x4 - core index']
  #allocation1 [shape = 'u32[144,128]{1,0:T(1,128)}', space=vmem, size = 0x12000, scoped, tag = 'internal scratch']
  %s0 = inlined_call_operand.hbm [shape: f32[8,128], index: 0, kind: input, shape index: {}]
  %s1 = inlined_call_operand.hbm [shape: f32[16,128], index: 1, kind: output, shape index: {}]
  %s2 = sld [smem:[#allocation0]]
  $region41: #{tpu_custom_call.1} parent=0
    _
  %s4 = ssub.s32 1, %s2
  %s5 = scalar_select 0, %s4, %s2
  $region1: #{tpu_custom_call.1} parent=0
    #allocation2 [shape = 'u8[4096]{0}', space=vmem, size = 0x1000, scoped, tag = 'input window, operand 0, single buffered']
    #allocation3 [shape = 's32[2]{0}', space=sflag, size = 0x8, scoped, tag = 'scoped memory for tpu_custom_call.1']
    #allocation4 [shape = 's32[2]{0}', space=sflag, size = 0x8, scoped, tag = 'scoped memory for tpu_custom_call.1']
    #allocation5 [shape = 'u8[8192]{0}', space=vmem, size = 0x2000, scoped, tag = 'output window, operand 0']
    %6 = vsyncpa [#allocation3], 0
    %7 = vsyncpa [#allocation4], 0
    %s8 = scalar_lea.sflag [#allocation4], 1
    %9 = vsyncpa %s8, 0
    loop: start=0, step=1, limit=4
    $region2: #{tpu_custom_call.1} parent=1 // loop_pre_header
      _
    $region3: #{tpu_custom_call.1} parent=1 // loop_header
      %s11 = sphi 0, %s15
      %p12 = scmp.ge.s32.totalorder %s11, 4
      %s19 = sphi 0, %s19
      %s21 = sphi 0, %s19
      %s22 = sphi 0, %s21
      %s36 = sphi 0, %s22
      %s42 = sphi 0, %s44
      %s45 = sphi 0, %s42
      %s46 = sphi 0, %s45
      %s62 = sphi 0, %s46
    $region4: #{tpu_custom_call.1} parent=1 // loop_header_branch
      %14 = sbr.rel (%p12) target = $region8
    $region5: #{tpu_custom_call.1} parent=1 // loop_body
      %s16 = ssub.s32 %s11, 1
      %s17 = ssub.s32 %s11, 2
      %s18 = sadd.s32 %s11, 1
      %s20 = sadd.s32 %s19, 1
      %p23 = scmp.eq.s32.totalorder %s11, 1
      %p24 = scmp.ne.s32.totalorder %s19, %s21
      %p25 = scmp.eq.s32.totalorder %s11, 0
      %p26 = por %p24, %p25
      %p27 = scmp.ne.s32.totalorder %s19, %s21
      %p28 = scmp.eq.s32.totalorder %s16, 1
      %p29 = por %p27, %p28
      %p30 = scmp.ne.s32.totalorder %s21, %s22
      %p31 = scmp.eq.s32.totalorder %s16, 0
      %p32 = por %p30, %p31
      %p33 = scmp.ne.s32.totalorder %s21, %s22
      %p34 = scmp.eq.s32.totalorder %s17, 1
      %p35 = por %p33, %p34
      %p37 = scmp.ne.s32.totalorder %s22, %s36
      %p38 = scmp.eq.s32.totalorder %s17, 0
      %p39 = por %p37, %p38
      %s40 = ssub.s32 %s11, %s18
      %p41 = scmp.eq.s32.totalorder %s40, 0
      %s43 = sadd.s32 %s42, 1
      %s44 = scalar_select %p41, %s42, %s43
      %p47 = pneg %p41
      %p48 = scmp.eq.s32.totalorder %s11, 1
      %p49 = por %p47, %p48
      %p50 = scmp.ne.s32.totalorder %s42, %s45
      %p51 = scmp.eq.s32.totalorder %s11, 0
      %p52 = por %p50, %p51
      %p53 = scmp.ne.s32.totalorder %s42, %s45
      %p54 = scmp.eq.s32.totalorder %s16, 1
      %p55 = por %p53, %p54
      %p56 = scmp.ne.s32.totalorder %s45, %s46
      %p57 = scmp.eq.s32.totalorder %s16, 0
      %p58 = por %p56, %p57
      %p59 = scmp.ne.s32.totalorder %s45, %s46
      %p60 = scmp.eq.s32.totalorder %s17, 1
      %p61 = por %p59, %p60
      %p63 = scmp.ne.s32.totalorder %s46, %s62
      %p64 = scmp.eq.s32.totalorder %s17, 0
      %p65 = por %p63, %p64
      %p66 = scmp.le.s32.totalorder 1, %s11
      %p67 = scmp.lt.s32.totalorder %s11, 3
      %p68 = pnand %p66, %p67
      %p69 = pneg %p68
      // Predicated region
      $region9: #{tpu_custom_call.1} parent=5 // pred_check
        _
      $region10: #{tpu_custom_call.1} parent=5 // pred_check_branch
        %71 = sbr.rel (%p68) target = $region12
      $region11: #{tpu_custom_call.1} parent=5 // pred_region
        %s72 = ssub.s32 %s11, 1
        // Predicated region
        $region13: #{tpu_custom_call.1} parent=11 // pred_check
          %p73 = pneg %p32
        $region14: #{tpu_custom_call.1} parent=11 // pred_check_branch
          %75 = sbr.rel (%p73) target = $region16
        $region15: #{tpu_custom_call.1} parent=11 // pred_region
          %s77 = ssub.s32 128, 128
          %78 = vsyncadd [#allocation3], %s77
          %s80 = sshll.u32 [#allocation2], 4
          %s81 = int_to_ptr.vmem [resolvable:$true] %s80
          %83 = dma.hbm_to_vmem [thread:$0]  %s0, 128, %s81, [#allocation3]
        $region16: #{tpu_custom_call.1} parent=11 // pred_fallthru
          _
      $region12: #{tpu_custom_call.1} parent=5 // pred_fallthru
        _
      %p84 = scmp.lt.s32.totalorder %s11, 2
      // Predicated region
      $region17: #{tpu_custom_call.1} parent=5 // pred_check
        %p85 = pneg %p84
      $region18: #{tpu_custom_call.1} parent=5 // pred_check_branch
        %87 = sbr.rel (%p85) target = $region20
      $region19: #{tpu_custom_call.1} parent=5 // pred_region
        _
      $region20: #{tpu_custom_call.1} parent=5 // pred_fallthru
        _
      %p88 = scmp.le.s32.totalorder 1, %s11
      %p89 = scmp.lt.s32.totalorder %s11, 3
      %p90 = pnand %p88, %p89
      %p91 = pneg %p90
      // Predicated region
      $region21: #{tpu_custom_call.1} parent=5 // pred_check
        _
      $region22: #{tpu_custom_call.1} parent=5 // pred_check_branch
        %93 = sbr.rel (%p90) target = $region24
      $region23: #{tpu_custom_call.1} parent=5 // pred_region
        %s94 = ssub.s32 %s11, 1
        // Predicated region
        $region25: #{tpu_custom_call.1} parent=23 // pred_check
          %p95 = pneg %p32
        $region26: #{tpu_custom_call.1} parent=23 // pred_check_branch
          %97 = sbr.rel (%p95) target = $region28
        $region27: #{tpu_custom_call.1} parent=23 // pred_region
          %98 = dma.done [#allocation3], 128
        $region28: #{tpu_custom_call.1} parent=23 // pred_fallthru
          _
        %p99 = pneg %p32
        %p100 = pneg %p29
        %p101 = pneg %p58
        %p102 = pneg %p55
        %s103 = sand.u32 %s45, 1
        %s104 = scalar_lea.sflag [#allocation4], %s103
        %s105 = sand.u32 %s45, 1
        %s106 = smul.addr %s105, 8
        %s107 = scalar_lea.vmem [#allocation5], %s106
        %v108 = vld [vmem:[#allocation2] sm:$0xff]
        %v109 = vmul.f32 %v108, 2.0
        %110 = vst [vmem:[%s107] sm:$0xff] %v109
        %s111 = sand.u32 %s45, 1
        %s112 = scalar_lea.sflag [#allocation4], %s111
        %s113 = sand.u32 %s45, 1
        %s114 = smul.addr %s113, 8
        %s115 = scalar_lea.vmem [#allocation5], %s114
        // Predicated region
        $region29: #{tpu_custom_call.1} parent=23 // pred_check
          %p116 = pneg %p55
        $region30: #{tpu_custom_call.1} parent=23 // pred_check_branch
          %118 = sbr.rel (%p116) target = $region32
        $region31: #{tpu_custom_call.1} parent=23 // pred_region
          %s120 = ssub.s32 128, 128
          %121 = vsyncadd %s112, %s120
          %s122 = smul.addr %s16, 128
          %s123 = scalar_lea.hbm %s1, %s122
          %s125 = sshll.u32 %s115, 4
          %s126 = int_to_ptr.vmem [resolvable:$true] %s125
          %128 = dma.vmem_to_hbm [thread:$0]  %s126, 128, %s123, %s112
        $region32: #{tpu_custom_call.1} parent=23 // pred_fallthru
          _
      $region24: #{tpu_custom_call.1} parent=5 // pred_fallthru
        _
      %p129 = scmp.le.s32.totalorder 2, %s11
      // Predicated region
      $region33: #{tpu_custom_call.1} parent=5 // pred_check
        %p130 = pneg %p129
      $region34: #{tpu_custom_call.1} parent=5 // pred_check_branch
        %132 = sbr.rel (%p130) target = $region36
      $region35: #{tpu_custom_call.1} parent=5 // pred_region
        %s133 = ssub.s32 %s11, 2
        // Predicated region
        $region37: #{tpu_custom_call.1} parent=35 // pred_check
          %p134 = pneg %p61
        $region38: #{tpu_custom_call.1} parent=35 // pred_check_branch
          %136 = sbr.rel (%p134) target = $region40
        $region39: #{tpu_custom_call.1} parent=35 // pred_region
          %s137 = sand.u32 %s46, 1
          %s138 = scalar_lea.sflag [#allocation4], %s137
          %s139 = sand.u32 %s46, 1
          %s140 = smul.addr %s139, 8
          %s141 = scalar_lea.vmem [#allocation5], %s140
          %142 = dma.done %s138, 128
        $region40: #{tpu_custom_call.1} parent=35 // pred_fallthru
          _
      $region36: #{tpu_custom_call.1} parent=5 // pred_fallthru
        _
    $region6: #{tpu_custom_call.1} parent=1 // loop_footer
      %s15 = sadd.s32 1, %s11
    $region7: #{tpu_custom_call.1} parent=1 // loop_footer_branch
      %10 = sbr.rel target = $region3
    $region8: #{tpu_custom_call.1} parent=1 // loop_exit
      _
    %143 = vsyncpa [#allocation3], 1
    %s144 = scalar_lea.sflag [#allocation3], 1
    %145 = vsyncpa %s144, 1
    %146 = vsyncpa [#allocation4], 1
    %s147 = scalar_lea.sflag [#allocation4], 1
    %148 = vsyncpa %s147, 1

// kernel: _lambda_.8
$region0: #{_lambda_.8}
  #allocation0 [shape = 'u32[]', space=smem, size = 0x4, offset = 0x4, fixed_abs, tag = 'smem constant byte address 0x4 - core index']
  #allocation1 [shape = 'u32[144,128]{1,0:T(1,128)}', space=vmem, size = 0x12000, scoped, tag = 'internal scratch']
  %s0 = inlined_call_operand.vmem [shape: bf16[16,384], index: 0, kind: input, shape index: {}]
  %s1 = inlined_call_operand.vmem [shape: bf16[384,32], index: 1, kind: input, shape index: {}]
  %s2 = inlined_call_operand.vmem [shape: f32[1,32], index: 2, kind: input, shape index: {}]
  %s3 = inlined_call_operand.vmem [shape: f32[16,32], index: 3, kind: output, shape index: {}]
  %s4 = sld [smem:[#allocation0]]
  $region22: #{_lambda_.8} parent=0
    _
  %s6 = ssub.s32 1, %s4
  %s7 = scalar_select 0, %s6, %s4
  // Predicated region
  $region2: #{_lambda_.8} parent=0 // pred_check
    _
  $region3: #{_lambda_.8} parent=0 // pred_check_branch
    %9 = sbr.rel (0) target = $region5
  $region4: #{_lambda_.8} parent=0 // pred_region
    _
  $region5: #{_lambda_.8} parent=0 // pred_fallthru
    _
  // Predicated region
  $region6: #{_lambda_.8} parent=0 // pred_check
    _
  $region7: #{_lambda_.8} parent=0 // pred_check_branch
    %11 = sbr.rel (0) target = $region9
  $region8: #{_lambda_.8} parent=0 // pred_region
    _
  $region9: #{_lambda_.8} parent=0 // pred_fallthru
    _
  // Predicated region
  $region10: #{_lambda_.8} parent=0 // pred_check
    _
  $region11: #{_lambda_.8} parent=0 // pred_check_branch
    %13 = sbr.rel (0) target = $region13
  $region12: #{_lambda_.8} parent=0 // pred_region
    _
  $region13: #{_lambda_.8} parent=0 // pred_fallthru
    _
  %v15 = vld [vmem:[%s0] sm:$0xff]
  %v16 = vld [vmem:[%s0 + $0x8] sm:$0xf]
  %v17 = vld [vmem:[%s0 + $0xc] sm:$0xff]
  %v18 = vld [vmem:[%s0 + $0x14] sm:$0xf]
  %v19 = vld [vmem:[%s1] sm:$0xf]
  %v20 = vld [vmem:[%s1 + $0x4] sm:$0xf]
  %v21 = vld [vmem:[%s1 + $0x8] sm:$0xf]
  %v22 = vld [vmem:[%s1 + $0xc] sm:$0xf]
  %v23 = vld [vmem:[%s1 + $0x10] sm:$0xf]
  %v24 = vld [vmem:[%s1 + $0x14] sm:$0xf]
  %v25 = vld [vmem:[%s1 + $0x18] sm:$0xf]
  %v26 = vld [vmem:[%s1 + $0x1c] sm:$0xf]
  %v27 = vld [vmem:[%s1 + $0x20] sm:$0xf]
  %v28 = vld [vmem:[%s1 + $0x24] sm:$0xf]
  %v29 = vld [vmem:[%s1 + $0x28] sm:$0xf]
  %v30 = vld [vmem:[%s1 + $0x2c] sm:$0xf]
  %v31 = vld [vmem:[%s1 + $0x30] sm:$0xf]
  %v32 = vld [vmem:[%s1 + $0x34] sm:$0xf]
  %v33 = vld [vmem:[%s1 + $0x38] sm:$0xf]
  %v34 = vld [vmem:[%s1 + $0x3c] sm:$0xf]
  %v35 = vld [vmem:[%s1 + $0x40] sm:$0xf]
  %v36 = vld [vmem:[%s1 + $0x44] sm:$0xf]
  %v37 = vld [vmem:[%s1 + $0x48] sm:$0xf]
  %v38 = vld [vmem:[%s1 + $0x4c] sm:$0xf]
  %v39 = vld [vmem:[%s1 + $0x50] sm:$0xf]
  %v40 = vld [vmem:[%s1 + $0x54] sm:$0xf]
  %v41 = vld [vmem:[%s1 + $0x58] sm:$0xf]
  %v42 = vld [vmem:[%s1 + $0x5c] sm:$0xf]
  %v43 = vld [vmem:[%s1 + $0x60] sm:$0xf]
  %v44 = vld [vmem:[%s1 + $0x64] sm:$0xf]
  %v45 = vld [vmem:[%s1 + $0x68] sm:$0xf]
  %v46 = vld [vmem:[%s1 + $0x6c] sm:$0xf]
  %v47 = vld [vmem:[%s1 + $0x70] sm:$0xf]
  %v48 = vld [vmem:[%s1 + $0x74] sm:$0xf]
  %v49 = vld [vmem:[%s1 + $0x78] sm:$0xf]
  %v50 = vld [vmem:[%s1 + $0x7c] sm:$0xf]
  %v51 = vld [vmem:[%s1 + $0x80] sm:$0xf]
  %v52 = vld [vmem:[%s1 + $0x84] sm:$0xf]
  %v53 = vld [vmem:[%s1 + $0x88] sm:$0xf]
  %v54 = vld [vmem:[%s1 + $0x8c] sm:$0xf]
  %v55 = vld [vmem:[%s1 + $0x90] sm:$0xf]
  %v56 = vld [vmem:[%s1 + $0x94] sm:$0xf]
  %v57 = vld [vmem:[%s1 + $0x98] sm:$0xf]
  %v58 = vld [vmem:[%s1 + $0x9c] sm:$0xf]
  %v59 = vld [vmem:[%s1 + $0xa0] sm:$0xf]
  %v60 = vld [vmem:[%s1 + $0xa4] sm:$0xf]
  %v61 = vld [vmem:[%s1 + $0xa8] sm:$0xf]
  %v62 = vld [vmem:[%s1 + $0xac] sm:$0xf]
  %v63 = vld [vmem:[%s1 + $0xb0] sm:$0xf]
  %v64 = vld [vmem:[%s1 + $0xb4] sm:$0xf]
  %v65 = vld [vmem:[%s1 + $0xb8] sm:$0xf]
  %v66 = vld [vmem:[%s1 + $0xbc] sm:$0xf]
  %v67 = vld [vmem:[%s2] sm:$0x1]
  %v69 = vlaneseq
  %v70 = vshrl.u32 %v69, 7
  %v71 = vsub.s32 0, %v70
  %v72 = vrot.slane %v67, %v71
  %v78 = vunpack.c.l.b16 %v15
  %v79 = vunpack.c.h.b16 %v15
  %v80 = vunpack.c.l.b16 %v16
  %v81 = vunpack.c.l.b16 %v17
  %v82 = vunpack.c.h.b16 %v17
  %v83 = vunpack.c.l.b16 %v18
  %v84 = vpack.c.b16 %v81, %v78
  %v85 = vpack.c.b16 %v82, %v79
  %v86 = vpack.c.b16 %v83, %v80
  %v138 = vunpack.c.l.b16 %v19
  %v139 = vunpack.c.l.b16 %v20
  %v140 = vunpack.c.l.b16 %v21
  %v141 = vunpack.c.l.b16 %v22
  %v142 = vunpack.c.l.b16 %v23
  %v143 = vunpack.c.l.b16 %v24
  %v144 = vunpack.c.l.b16 %v25
  %v145 = vunpack.c.l.b16 %v26
  %v146 = vunpack.c.l.b16 %v27
  %v147 = vunpack.c.l.b16 %v28
  %v148 = vunpack.c.l.b16 %v29
  %v149 = vunpack.c.l.b16 %v30
  %v150 = vunpack.c.l.b16 %v31
  %v151 = vunpack.c.l.b16 %v32
  %v152 = vunpack.c.l.b16 %v33
  %v153 = vunpack.c.l.b16 %v34
  %v154 = vunpack.c.l.b16 %v35
  %v155 = vunpack.c.l.b16 %v36
  %v156 = vunpack.c.l.b16 %v37
  %v157 = vunpack.c.l.b16 %v38
  %v158 = vunpack.c.l.b16 %v39
  %v159 = vunpack.c.l.b16 %v40
  %v160 = vunpack.c.l.b16 %v41
  %v161 = vunpack.c.l.b16 %v42
  %v162 = vunpack.c.l.b16 %v43
  %v163 = vunpack.c.l.b16 %v44
  %v164 = vunpack.c.l.b16 %v45
  %v165 = vunpack.c.l.b16 %v46
  %v166 = vunpack.c.l.b16 %v47
  %v167 = vunpack.c.l.b16 %v48
  %v168 = vunpack.c.l.b16 %v49
  %v169 = vunpack.c.l.b16 %v50
  %v170 = vunpack.c.l.b16 %v51
  %v171 = vunpack.c.l.b16 %v52
  %v172 = vunpack.c.l.b16 %v53
  %v173 = vunpack.c.l.b16 %v54
  %v174 = vunpack.c.l.b16 %v55
  %v175 = vunpack.c.l.b16 %v56
  %v176 = vunpack.c.l.b16 %v57
  %v177 = vunpack.c.l.b16 %v58
  %v178 = vunpack.c.l.b16 %v59
  %v179 = vunpack.c.l.b16 %v60
  %v180 = vunpack.c.l.b16 %v61
  %v181 = vunpack.c.l.b16 %v62
  %v182 = vunpack.c.l.b16 %v63
  %v183 = vunpack.c.l.b16 %v64
  %v184 = vunpack.c.l.b16 %v65
  %v185 = vunpack.c.l.b16 %v66
  %v186 = vpack.c.b16 %v139, %v138
  %v187 = vpack.c.b16 %v141, %v140
  %v188 = vpack.c.b16 %v143, %v142
  %v189 = vpack.c.b16 %v145, %v144
  %v190 = vpack.c.b16 %v147, %v146
  %v191 = vpack.c.b16 %v149, %v148
  %v192 = vpack.c.b16 %v151, %v150
  %v193 = vpack.c.b16 %v153, %v152
  %v194 = vpack.c.b16 %v155, %v154
  %v195 = vpack.c.b16 %v157, %v156
  %v196 = vpack.c.b16 %v159, %v158
  %v197 = vpack.c.b16 %v161, %v160
  %v198 = vpack.c.b16 %v163, %v162
  %v199 = vpack.c.b16 %v165, %v164
  %v200 = vpack.c.b16 %v167, %v166
  %v201 = vpack.c.b16 %v169, %v168
  %v202 = vpack.c.b16 %v171, %v170
  %v203 = vpack.c.b16 %v173, %v172
  %v204 = vpack.c.b16 %v175, %v174
  %v205 = vpack.c.b16 %v177, %v176
  %v206 = vpack.c.b16 %v179, %v178
  %v207 = vpack.c.b16 %v181, %v180
  %v208 = vpack.c.b16 %v183, %v182
  %v209 = vpack.c.b16 %v185, %v184
  %234 = vmatprep.subr.bf16.mxu0 0
  %235 = vmatpush1.bf16.msra.mxu0 %v186
  %236 = vmatprep.subr.bf16.mxu0 0
  %237 = vmatpush1.bf16.msra.mxu0 %v187
  %238 = vmatprep.subr.bf16.mxu0 0
  %239 = vmatpush1.bf16.msra.mxu0 %v188
  %240 = vmatprep.subr.bf16.mxu0 0
  %241 = vmatpush1.bf16.msra.mxu0 %v189
  %242 = vmatprep.subr.bf16.mxu0 0
  %243 = vmatpush1.bf16.msra.mxu0 %v190
  %244 = vmatprep.subr.bf16.mxu0 0
  %245 = vmatpush1.bf16.msra.mxu0 %v191
  %246 = vmatprep.subr.bf16.mxu0 0
  %247 = vmatpush1.bf16.msra.mxu0 %v192
  %248 = vmatprep.subr.bf16.mxu0 0
  %249 = vmatpush1.bf16.msra.mxu0 %v193
  %250 = vmatprep.subr.bf16.mxu0 0
  %251 = vmatpush1.bf16.msra.mxu0 %v194
  %252 = vmatprep.subr.bf16.mxu0 0
  %253 = vmatpush1.bf16.msra.mxu0 %v195
  %254 = vmatprep.subr.bf16.mxu0 0
  %255 = vmatpush1.bf16.msra.mxu0 %v196
  %256 = vmatprep.subr.bf16.mxu0 0
  %257 = vmatpush1.bf16.msra.mxu0 %v197
  %258 = vmatprep.subr.bf16.mxu0 0
  %259 = vmatpush1.bf16.msra.mxu0 %v198
  %260 = vmatprep.subr.bf16.mxu0 0
  %261 = vmatpush1.bf16.msra.mxu0 %v199
  %262 = vmatprep.subr.bf16.mxu0 0
  %263 = vmatpush1.bf16.msra.mxu0 %v200
  %264 = vmatprep.subr.bf16.mxu0 0
  %265 = vmatpush1.bf16.msra.mxu0 %v201
  %266 = vmatprep.mubr.bf16.mxu0 %v85
  %267 = vmatmul.mubr.bf16.gmra.mrb[0].mxu0 %v84
  %v268 = vpop.f32.mrb[0].mxu0
  %v269 = vadd.f32 %v72, %v268
  %v270 = vpop.f32.mrb[0].mxu0
  %v271 = vpop.f32.mrb[0].mxu0
  %v272 = vadd.f32 %v72, %v271
  %v273 = vpop.f32.mrb[0].mxu0
  %274 = vdwg.mxu0
  %275 = vmatprep.subr.bf16.mxu0 0
  %276 = vmatpush1.bf16.msra.mxu0 %v202
  %277 = vmatprep.subr.bf16.mxu0 0
  %278 = vmatpush1.bf16.msra.mxu0 %v203
  %279 = vmatprep.subr.bf16.mxu0 0
  %280 = vmatpush1.bf16.msra.mxu0 %v204
  %281 = vmatprep.subr.bf16.mxu0 0
  %282 = vmatpush1.bf16.msra.mxu0 %v205
  %283 = vmatprep.subr.bf16.mxu0 0
  %284 = vmatpush1.bf16.msra.mxu0 %v206
  %285 = vmatprep.subr.bf16.mxu0 0
  %286 = vmatpush1.bf16.msra.mxu0 %v207
  %287 = vmatprep.subr.bf16.mxu0 0
  %288 = vmatpush1.bf16.msra.mxu0 %v208
  %289 = vmatprep.subr.bf16.mxu0 0
  %290 = vmatpush1.bf16.msra.mxu0 %v209
  %291 = vmatprep.subr.bf16.mxu0 0
  %292 = vmatpush1.bf16.msra.mxu0 0
  %293 = vmatprep.subr.bf16.mxu0 0
  %294 = vmatpush1.bf16.msra.mxu0 0
  %295 = vmatprep.subr.bf16.mxu0 0
  %296 = vmatpush1.bf16.msra.mxu0 0
  %297 = vmatprep.subr.bf16.mxu0 0
  %298 = vmatpush1.bf16.msra.mxu0 0
  %299 = vmatprep.subr.bf16.mxu0 0
  %300 = vmatpush1.bf16.msra.mxu0 0
  %301 = vmatprep.subr.bf16.mxu0 0
  %302 = vmatpush1.bf16.msra.mxu0 0
  %303 = vmatprep.subr.bf16.mxu0 0
  %304 = vmatpush1.bf16.msra.mxu0 0
  %305 = vmatprep.subr.bf16.mxu0 0
  %306 = vmatpush1.bf16.msra.mxu0 0
  %307 = vmatprep.mubr.bf16.mxu0 0
  %308 = vmatmul.mubr.bf16.gmra.mrb[0].mxu0 %v86
  %v309 = vpop.f32.mrb[0].mxu0
  %v310 = vadd.f32 %v269, %v309
  %v311 = vpop.f32.mrb[0].mxu0
  %v312 = vpop.f32.mrb[0].mxu0
  %v313 = vadd.f32 %v272, %v312
  %v314 = vpop.f32.mrb[0].mxu0
  %315 = vdwg.mxu0
  %vm316 = vcmask 261120
  %317 = vst.msk [vmem:[%s3] sm:$0xff] %vm316, %v310
  %318 = vst.msk [vmem:[%s3 + $0x8] sm:$0xff] %vm316, %v313
  // Predicated region
  $region14: #{_lambda_.8} parent=0 // pred_check
    _
  $region15: #{_lambda_.8} parent=0 // pred_check_branch
    %320 = sbr.rel (0) target = $region17
  $region16: #{_lambda_.8} parent=0 // pred_region
    _
  $region17: #{_lambda_.8} parent=0 // pred_fallthru
    _
  // Predicated region
  $region18: #{_lambda_.8} parent=0 // pred_check
    _
  $region19: #{_lambda_.8} parent=0 // pred_check_branch
    %322 = sbr.rel (0) target = $region21
  $region20: #{_lambda_.8} parent=0 // pred_region
    _
  $region21: #{_lambda_.8} parent=0 // pred_fallthru
    _

// kernel: _lambda_.15
$region0: #{_lambda_.15}
  #allocation0 [shape = 'u32[]', space=smem, size = 0x4, offset = 0x4, fixed_abs, tag = 'smem constant byte address 0x4 - core index']
  #allocation1 [shape = 'u32[144,128]{1,0:T(1,128)}', space=vmem, size = 0x12000, scoped, tag = 'internal scratch']
  %s0 = inlined_call_operand.vmem [shape: f32[2,32], index: 0, kind: input, shape index: {}]
  %s1 = inlined_call_operand.vmem [shape: f32[1,32], index: 1, kind: input, shape index: {}]
  %s2 = inlined_call_operand.vmem [shape: f32[1,32], index: 2, kind: input, shape index: {}]
  %s3 = inlined_call_operand.hbm [shape: f32[2,32], index: 3, kind: output, shape index: {}]
  %s4 = sld [smem:[#allocation0]]
  $region22: #{_lambda_.15} parent=0
    _
  %s6 = ssub.s32 1, %s4
  %s7 = scalar_select 0, %s6, %s4
  $region1: #{_lambda_.15} parent=0
    #allocation2 [shape = 'u8[1024]{0}', space=vmem, size = 0x400, scoped, tag = 'output window, operand 0, single buffered']
    #allocation3 [shape = 's32[1]{0}', space=sflag, size = 0x4, scoped, tag = 'scoped memory for _lambda_.15']
    %8 = vsyncpa [#allocation3], 0
    // Predicated region
    $region2: #{_lambda_.15} parent=1 // pred_check
      _
    $region3: #{_lambda_.15} parent=1 // pred_check_branch
      %10 = sbr.rel (0) target = $region5
    $region4: #{_lambda_.15} parent=1 // pred_region
      _
    $region5: #{_lambda_.15} parent=1 // pred_fallthru
      _
    // Predicated region
    $region6: #{_lambda_.15} parent=1 // pred_check
      _
    $region7: #{_lambda_.15} parent=1 // pred_check_branch
      %12 = sbr.rel (0) target = $region9
    $region8: #{_lambda_.15} parent=1 // pred_region
      _
    $region9: #{_lambda_.15} parent=1 // pred_fallthru
      _
    // Predicated region
    $region10: #{_lambda_.15} parent=1 // pred_check
      _
    $region11: #{_lambda_.15} parent=1 // pred_check_branch
      %14 = sbr.rel (0) target = $region13
    $region12: #{_lambda_.15} parent=1 // pred_region
      _
    $region13: #{_lambda_.15} parent=1 // pred_fallthru
      _
    %v15 = vld [vmem:[%s0] sm:$0x3]
    %vm16 = vcmask 254976
    %v17 = vsel %vm16, %v15, 0.0
    %18 = vadd.xlane.f32.xlu0 %v17
    %v19 = vpop.xlane.xlu0 %18
    %v20 = vrcp.pop 32.0
    %v21 = vmul.f32 %v19, %v20
    %v22 = vsub.f32 %v15, %v21
    %v23 = vmul.f32 %v22, %v22
    %v24 = vsel %vm16, %v23, 0.0
    %25 = vadd.xlane.f32.xlu0 %v24
    %v26 = vpop.xlane.xlu0 %25
    %v27 = vmul.f32 %v26, %v20
    %v28 = vadd.f32 %v27, 1e-06
    %v29 = vrsqrt.pop %v28
    %v30 = vmul.f32 %v22, %v29
    %v31 = vld [vmem:[%s1] sm:$0x1]
    %v33 = vlaneseq
    %v34 = vshrl.u32 %v33, 7
    %v35 = vsub.s32 0, %v34
    %v36 = vrot.slane %v31, %v35
    %v38 = vmul.f32 %v30, %v36
    %v39 = vld [vmem:[%s2] sm:$0x1]
    %v41 = vlaneseq
    %v42 = vshrl.u32 %v41, 7
    %v43 = vsub.s32 0, %v42
    %v44 = vrot.slane %v39, %v43
    %v46 = vadd.f32 %v38, %v44
    %47 = vst.msk [vmem:[#allocation2] sm:$0x3] %vm16, %v46
    // Predicated region
    $region14: #{_lambda_.15} parent=1 // pred_check
      _
    $region15: #{_lambda_.15} parent=1 // pred_check_branch
      %49 = sbr.rel (0) target = $region17
    $region16: #{_lambda_.15} parent=1 // pred_region
      %s51 = ssub.s32 32, 32
      %52 = vsyncadd [#allocation3], %s51
      %s54 = sshll.u32 [#allocation2], 4
      %s55 = int_to_ptr.vmem [resolvable:$true] %s54
      %57 = dma.vmem_to_hbm [thread:$0]  %s55, 32, %s3, [#allocation3]
    $region17: #{_lambda_.15} parent=1 // pred_fallthru
      _
    // Predicated region
    $region18: #{_lambda_.15} parent=1 // pred_check
      _
    $region19: #{_lambda_.15} parent=1 // pred_check_branch
      %59 = sbr.rel (0) target = $region21
    $region20: #{_lambda_.15} parent=1 // pred_region
      %60 = dma.done [#allocation3], 32
    $region21: #{_lambda_.15} parent=1 // pred_fallthru
      _
    %61 = vsyncpa [#allocation3], 1

// kernel: _lambda_.11
$region0: #{_lambda_.11}
  #allocation0 [shape = 'u32[]', space=smem, size = 0x4, offset = 0x4, fixed_abs, tag = 'smem constant byte address 0x4 - core index']
  #allocation1 [shape = 'u32[144,128]{1,0:T(1,128)}', space=vmem, size = 0x12000, scoped, tag = 'internal scratch']
  #allocation2 [shape = 'bf16[16,32]{1,0:T(16,128)(2,1)}', space=vmem, size = 0x1000, scoped, tag = 'scratch operand']
  %s0 = inlined_call_operand.vmem [shape: f32[2,8,32], index: 0, kind: input, shape index: {}]
  %s1 = inlined_call_operand.vmem [shape: f32[1,32], index: 1, kind: input, shape index: {}, may-alias: {1,11}]
  %s2 = inlined_call_operand.vmem [shape: f32[1,32], index: 2, kind: input, shape index: {}, may-alias: {2,6,7,8,10,12,16}]
  %s3 = inlined_call_operand.vmem [shape: bf16[32,32], index: 3, kind: input, shape index: {}]
  %s4 = inlined_call_operand.vmem [shape: bf16[32,32], index: 4, kind: input, shape index: {}]
  %s5 = inlined_call_operand.vmem [shape: bf16[32,32], index: 5, kind: input, shape index: {}]
  %s6 = inlined_call_operand.vmem [shape: f32[1,32], index: 6, kind: input, shape index: {}, may-alias: {2,6,7,8,10,12,16}]
  %s7 = inlined_call_operand.vmem [shape: f32[1,32], index: 7, kind: input, shape index: {}, may-alias: {2,6,7,8,10,12,16}]
  %s8 = inlined_call_operand.vmem [shape: f32[1,32], index: 8, kind: input, shape index: {}, may-alias: {2,6,7,8,10,12,16}]
  %s9 = inlined_call_operand.vmem [shape: bf16[32,32], index: 9, kind: input, shape index: {}]
  %s10 = inlined_call_operand.vmem [shape: f32[1,32], index: 10, kind: input, shape index: {}, may-alias: {2,6,7,8,10,12,16}]
  %s11 = inlined_call_operand.vmem [shape: f32[1,32], index: 11, kind: input, shape index: {}, may-alias: {1,11}]
  %s12 = inlined_call_operand.vmem [shape: f32[1,32], index: 12, kind: input, shape index: {}, may-alias: {2,6,7,8,10,12,16}]
  %s13 = inlined_call_operand.vmem [shape: bf16[32,128], index: 13, kind: input, shape index: {}]
  %s14 = inlined_call_operand.vmem [shape: f32[1,128], index: 14, kind: input, shape index: {}]
  %s15 = inlined_call_operand.vmem [shape: bf16[128,32], index: 15, kind: input, shape index: {}]
  %s16 = inlined_call_operand.vmem [shape: f32[1,32], index: 16, kind: input, shape index: {}, may-alias: {2,6,7,8,10,12,16}]
  %s17 = inlined_call_operand.vmem [shape: f32[2,8,32], index: 17, kind: output, shape index: {}]
  %s18 = sld [smem:[#allocation0]]
  $region78: #{_lambda_.11} parent=0
    _
  %s20 = ssub.s32 1, %s18
  %s21 = scalar_select 0, %s20, %s18
  // Predicated region
  $region2: #{_lambda_.11} parent=0 // pred_check
    _
  $region3: #{_lambda_.11} parent=0 // pred_check_branch
    %23 = sbr.rel (0) target = $region5
  $region4: #{_lambda_.11} parent=0 // pred_region
    _
  $region5: #{_lambda_.11} parent=0 // pred_fallthru
    _
  // Predicated region
  $region6: #{_lambda_.11} parent=0 // pred_check
    _
  $region7: #{_lambda_.11} parent=0 // pred_check_branch
    %25 = sbr.rel (0) target = $region9
  $region8: #{_lambda_.11} parent=0 // pred_region
    _
  $region9: #{_lambda_.11} parent=0 // pred_fallthru
    _
  // Predicated region
  $region10: #{_lambda_.11} parent=0 // pred_check
    _
  $region11: #{_lambda_.11} parent=0 // pred_check_branch
    %27 = sbr.rel (0) target = $region13
  $region12: #{_lambda_.11} parent=0 // pred_region
    _
  $region13: #{_lambda_.11} parent=0 // pred_fallthru
    _
  // Predicated region
  $region14: #{_lambda_.11} parent=0 // pred_check
    _
  $region15: #{_lambda_.11} parent=0 // pred_check_branch
    %29 = sbr.rel (0) target = $region17
  $region16: #{_lambda_.11} parent=0 // pred_region
    _
  $region17: #{_lambda_.11} parent=0 // pred_fallthru
    _
  // Predicated region
  $region18: #{_lambda_.11} parent=0 // pred_check
    _
  $region19: #{_lambda_.11} parent=0 // pred_check_branch
    %31 = sbr.rel (0) target = $region21
  $region20: #{_lambda_.11} parent=0 // pred_region
    _
  $region21: #{_lambda_.11} parent=0 // pred_fallthru
    _
  // Predicated region
  $region22: #{_lambda_.11} parent=0 // pred_check
    _
  $region23: #{_lambda_.11} parent=0 // pred_check_branch
    %33 = sbr.rel (0) target = $region25
  $region24: #{_lambda_.11} parent=0 // pred_region
    _
  $region25: #{_lambda_.11} parent=0 // pred_fallthru
    _
  // Predicated region
  $region26: #{_lambda_.11} parent=0 // pred_check
    _
  $region27: #{_lambda_.11} parent=0 // pred_check_branch
    %35 = sbr.rel (0) target = $region29
  $region28: #{_lambda_.11} parent=0 // pred_region
    _
  $region29: #{_lambda_.11} parent=0 // pred_fallthru
    _
  // Predicated region
  $region30: #{_lambda_.11} parent=0 // pred_check
    _
  $region31: #{_lambda_.11} parent=0 // pred_check_branch
    %37 = sbr.rel (0) target = $region33
  $region32: #{_lambda_.11} parent=0 // pred_region
    _
  $region33: #{_lambda_.11} parent=0 // pred_fallthru
    _
  // Predicated region
  $region34: #{_lambda_.11} parent=0 // pred_check
    _
  $region35: #{_lambda_.11} parent=0 // pred_check_branch
    %39 = sbr.rel (0) target = $region37
  $region36: #{_lambda_.11} parent=0 // pred_region
    _
  $region37: #{_lambda_.11} parent=0 // pred_fallthru
    _
  // Predicated region
  $region38: #{_lambda_.11} parent=0 // pred_check
    _
  $region39: #{_lambda_.11} parent=0 // pred_check_branch
    %41 = sbr.rel (0) target = $region41
  $region40: #{_lambda_.11} parent=0 // pred_region
    _
  $region41: #{_lambda_.11} parent=0 // pred_fallthru
    _
  // Predicated region
  $region42: #{_lambda_.11} parent=0 // pred_check
    _
  $region43: #{_lambda_.11} parent=0 // pred_check_branch
    %43 = sbr.rel (0) target = $region45
  $region44: #{_lambda_.11} parent=0 // pred_region
    _
  $region45: #{_lambda_.11} parent=0 // pred_fallthru
    _
  // Predicated region
  $region46: #{_lambda_.11} parent=0 // pred_check
    _
  $region47: #{_lambda_.11} parent=0 // pred_check_branch
    %45 = sbr.rel (0) target = $region49
  $region48: #{_lambda_.11} parent=0 // pred_region
    _
  $region49: #{_lambda_.11} parent=0 // pred_fallthru
    _
  // Predicated region
  $region50: #{_lambda_.11} parent=0 // pred_check
    _
  $region51: #{_lambda_.11} parent=0 // pred_check_branch
    %47 = sbr.rel (0) target = $region53
  $region52: #{_lambda_.11} parent=0 // pred_region
    _
  $region53: #{_lambda_.11} parent=0 // pred_fallthru
    _
  // Predicated region
  $region54: #{_lambda_.11} parent=0 // pred_check
    _
  $region55: #{_lambda_.11} parent=0 // pred_check_branch
    %49 = sbr.rel (0) target = $region57
  $region56: #{_lambda_.11} parent=0 // pred_region
    _
  $region57: #{_lambda_.11} parent=0 // pred_fallthru
    _
  // Predicated region
  $region58: #{_lambda_.11} parent=0 // pred_check
    _
  $region59: #{_lambda_.11} parent=0 // pred_check_branch
    %51 = sbr.rel (0) target = $region61
  $region60: #{_lambda_.11} parent=0 // pred_region
    _
  $region61: #{_lambda_.11} parent=0 // pred_fallthru
    _
  // Predicated region
  $region62: #{_lambda_.11} parent=0 // pred_check
    _
  $region63: #{_lambda_.11} parent=0 // pred_check_branch
    %53 = sbr.rel (0) target = $region65
  $region64: #{_lambda_.11} parent=0 // pred_region
    _
  $region65: #{_lambda_.11} parent=0 // pred_fallthru
    _
  // Predicated region
  $region66: #{_lambda_.11} parent=0 // pred_check
    _
  $region67: #{_lambda_.11} parent=0 // pred_check_branch
    %55 = sbr.rel (0) target = $region69
  $region68: #{_lambda_.11} parent=0 // pred_region
    _
  $region69: #{_lambda_.11} parent=0 // pred_fallthru
    _
  %v57 = vld [vmem:[%s0] sm:$0xff]
  %v58 = vld [vmem:[%s0 + $0x8] sm:$0xff]
  %vm59 = vcmask 261120
  %v60 = vsel %vm59, %v57, 0.0
  %61 = vadd.xlane.f32.xlu0 %v60
  %v62 = vpop.xlane.xlu0 %61
  %v63 = vsel %vm59, %v58, 0.0
  %64 = vadd.xlane.f32.xlu0 %v63
  %v65 = vpop.xlane.xlu0 %64
  %v66 = vrcp.pop 32.0
  %v67 = vmul.f32 %v62, %v66
  %v68 = vmul.f32 %v65, %v66
  %v69 = vsub.f32 %v57, %v67
  %v70 = vsub.f32 %v58, %v68
  %v71 = vmul.f32 %v69, %v69
  %v72 = vmul.f32 %v70, %v70
  %v73 = vsel %vm59, %v71, 0.0
  %74 = vadd.xlane.f32.xlu0 %v73
  %v75 = vpop.xlane.xlu0 %74
  %v76 = vsel %vm59, %v72, 0.0
  %77 = vadd.xlane.f32.xlu0 %v76
  %v78 = vpop.xlane.xlu0 %77
  %v79 = vmul.f32 %v75, %v66
  %v80 = vmul.f32 %v78, %v66
  %v81 = vadd.f32 %v79, 1e-05
  %v82 = vadd.f32 %v80, 1e-05
  %v83 = vrsqrt.pop %v81
  %v84 = vrsqrt.pop %v82
  %v85 = vmul.f32 %v69, %v83
  %v86 = vmul.f32 %v70, %v84
  %v87 = vld [vmem:[%s1] sm:$0x1]
  %v89 = vlaneseq
  %v90 = vshrl.u32 %v89, 7
  %v91 = vsub.s32 0, %v90
  %v92 = vrot.slane %v87, %v91
  %v94 = vmul.f32 %v85, %v92
  %v95 = vmul.f32 %v86, %v92
  %v96 = vld [vmem:[%s2] sm:$0x1]
  %v98 = vlaneseq
  %v99 = vshrl.u32 %v98, 7
  %v100 = vsub.s32 0, %v99
  %v101 = vrot.slane %v96, %v100
  %v103 = vadd.f32 %v94, %v101
  %v104 = vadd.f32 %v95, %v101
  %v105 = vpack.c.bf16 %v104, %v103
  %v106 = vld [vmem:[%s3] sm:$0xf]
  %v107 = vld [vmem:[%s3 + $0x4] sm:$0xf]
  %v108 = vld [vmem:[%s3 + $0x8] sm:$0xf]
  %v109 = vld [vmem:[%s3 + $0xc] sm:$0xf]
  %v110 = vld [vmem:[%s6] sm:$0x1]
  %v112 = vlaneseq
  %v113 = vshrl.u32 %v112, 7
  %v114 = vsub.s32 0, %v113
  %v115 = vrot.slane %v110, %v114
  %v121 = vunpack.c.l.b16 %v106
  %v122 = vunpack.c.l.b16 %v107
  %v123 = vunpack.c.l.b16 %v108
  %v124 = vunpack.c.l.b16 %v109
  %v125 = vpack.c.b16 %v122, %v121
  %v126 = vpack.c.b16 %v124, %v123
  %v130 = vsel %vm59, %v105, 0
  %132 = vmatprep.subr.bf16.mxu0 0
  %133 = vmatpush1.bf16.msra.mxu0 %v125
  %134 = vmatprep.subr.bf16.mxu0 0
  %135 = vmatpush1.bf16.msra.mxu0 %v126
  %136 = vmatprep.subr.bf16.mxu0 0
  %137 = vmatpush1.bf16.msra.mxu0 0
  %138 = vmatprep.subr.bf16.mxu0 0
  %139 = vmatpush1.bf16.msra.mxu0 0
  %140 = vmatprep.subr.bf16.mxu0 0
  %141 = vmatpush1.bf16.msra.mxu0 0
  %142 = vmatprep.subr.bf16.mxu0 0
  %143 = vmatpush1.bf16.msra.mxu0 0
  %144 = vmatprep.subr.bf16.mxu0 0
  %145 = vmatpush1.bf16.msra.mxu0 0
  %146 = vmatprep.subr.bf16.mxu0 0
  %147 = vmatpush1.bf16.msra.mxu0 0
  %148 = vmatprep.subr.bf16.mxu0 0
  %149 = vmatpush1.bf16.msra.mxu0 0
  %150 = vmatprep.subr.bf16.mxu0 0
  %151 = vmatpush1.bf16.msra.mxu0 0
  %152 = vmatprep.subr.bf16.mxu0 0
  %153 = vmatpush1.bf16.msra.mxu0 0
  %154 = vmatprep.subr.bf16.mxu0 0
  %155 = vmatpush1.bf16.msra.mxu0 0
  %156 = vmatprep.subr.bf16.mxu0 0
  %157 = vmatpush1.bf16.msra.mxu0 0
  %158 = vmatprep.subr.bf16.mxu0 0
  %159 = vmatpush1.bf16.msra.mxu0 0
  %160 = vmatprep.subr.bf16.mxu0 0
  %161 = vmatpush1.bf16.msra.mxu0 0
  %162 = vmatprep.subr.bf16.mxu0 0
  %163 = vmatpush1.bf16.msra.mxu0 0
  %164 = vmatprep.mubr.bf16.mxu0 0
  %165 = vmatmul.mubr.bf16.gmra.mrb[0].mxu0 %v130
  %v166 = vpop.f32.mrb[0].mxu0
  %v167 = vadd.f32 %v115, %v166
  %v168 = vpop.f32.mrb[0].mxu0
  %v169 = vpop.f32.mrb[0].mxu0
  %v170 = vadd.f32 %v115, %v169
  %v171 = vpop.f32.mrb[0].mxu0
  %172 = vdwg.mxu0
  %v173 = vpack.c.bf16 %v170, %v167
  %v174 = vld [vmem:[%s4] sm:$0xf]
  %v175 = vld [vmem:[%s4 + $0x4] sm:$0xf]
  %v176 = vld [vmem:[%s4 + $0x8] sm:$0xf]
  %v177 = vld [vmem:[%s4 + $0xc] sm:$0xf]
  %v178 = vld [vmem:[%s7] sm:$0x1]
  %v180 = vlaneseq
  %v181 = vshrl.u32 %v180, 7
  %v182 = vsub.s32 0, %v181
  %v183 = vrot.slane %v178, %v182
  %v189 = vunpack.c.l.b16 %v174
  %v190 = vunpack.c.l.b16 %v175
  %v191 = vunpack.c.l.b16 %v176
  %v192 = vunpack.c.l.b16 %v177
  %v193 = vpack.c.b16 %v190, %v189
  %v194 = vpack.c.b16 %v192, %v191
  %197 = vmatprep.subr.bf16.mxu0 0
  %198 = vmatpush1.bf16.msra.mxu0 %v193
  %199 = vmatprep.subr.bf16.mxu0 0
  %200 = vmatpush1.bf16.msra.mxu0 %v194
  %201 = vmatprep.subr.bf16.mxu0 0
  %202 = vmatpush1.bf16.msra.mxu0 0
  %203 = vmatprep.subr.bf16.mxu0 0
  %204 = vmatpush1.bf16.msra.mxu0 0
  %205 = vmatprep.subr.bf16.mxu0 0
  %206 = vmatpush1.bf16.msra.mxu0 0
  %207 = vmatprep.subr.bf16.mxu0 0
  %208 = vmatpush1.bf16.msra.mxu0 0
  %209 = vmatprep.subr.bf16.mxu0 0
  %210 = vmatpush1.bf16.msra.mxu0 0
  %211 = vmatprep.subr.bf16.mxu0 0
  %212 = vmatpush1.bf16.msra.mxu0 0
  %213 = vmatprep.subr.bf16.mxu0 0
  %214 = vmatpush1.bf16.msra.mxu0 0
  %215 = vmatprep.subr.bf16.mxu0 0
  %216 = vmatpush1.bf16.msra.mxu0 0
  %217 = vmatprep.subr.bf16.mxu0 0
  %218 = vmatpush1.bf16.msra.mxu0 0
  %219 = vmatprep.subr.bf16.mxu0 0
  %220 = vmatpush1.bf16.msra.mxu0 0
  %221 = vmatprep.subr.bf16.mxu0 0
  %222 = vmatpush1.bf16.msra.mxu0 0
  %223 = vmatprep.subr.bf16.mxu0 0
  %224 = vmatpush1.bf16.msra.mxu0 0
  %225 = vmatprep.subr.bf16.mxu0 0
  %226 = vmatpush1.bf16.msra.mxu0 0
  %227 = vmatprep.subr.bf16.mxu0 0
  %228 = vmatpush1.bf16.msra.mxu0 0
  %229 = vmatprep.mubr.bf16.mxu0 0
  %230 = vmatmul.mubr.bf16.gmra.mrb[0].mxu0 %v130
  %v231 = vpop.f32.mrb[0].mxu0
  %v232 = vadd.f32 %v183, %v231
  %v233 = vpop.f32.mrb[0].mxu0
  %v234 = vpop.f32.mrb[0].mxu0
  %v235 = vadd.f32 %v183, %v234
  %v236 = vpop.f32.mrb[0].mxu0
  %237 = vdwg.mxu0
  %v238 = vpack.c.bf16 %v235, %v232
  %v239 = vld [vmem:[%s5] sm:$0xf]
  %v240 = vld [vmem:[%s5 + $0x4] sm:$0xf]
  %v241 = vld [vmem:[%s5 + $0x8] sm:$0xf]
  %v242 = vld [vmem:[%s5 + $0xc] sm:$0xf]
  %v243 = vld [vmem:[%s8] sm:$0x1]
  %v245 = vlaneseq
  %v246 = vshrl.u32 %v245, 7
  %v247 = vsub.s32 0, %v246
  %v248 = vrot.slane %v243, %v247
  %v254 = vunpack.c.l.b16 %v239
  %v255 = vunpack.c.l.b16 %v240
  %v256 = vunpack.c.l.b16 %v241
  %v257 = vunpack.c.l.b16 %v242
  %v258 = vpack.c.b16 %v255, %v254
  %v259 = vpack.c.b16 %v257, %v256
  %262 = vmatprep.subr.bf16.mxu0 0
  %263 = vmatpush1.bf16.msra.mxu0 %v258
  %264 = vmatprep.subr.bf16.mxu0 0
  %265 = vmatpush1.bf16.msra.mxu0 %v259
  %266 = vmatprep.subr.bf16.mxu0 0
  %267 = vmatpush1.bf16.msra.mxu0 0
  %268 = vmatprep.subr.bf16.mxu0 0
  %269 = vmatpush1.bf16.msra.mxu0 0
  %270 = vmatprep.subr.bf16.mxu0 0
  %271 = vmatpush1.bf16.msra.mxu0 0
  %272 = vmatprep.subr.bf16.mxu0 0
  %273 = vmatpush1.bf16.msra.mxu0 0
  %274 = vmatprep.subr.bf16.mxu0 0
  %275 = vmatpush1.bf16.msra.mxu0 0
  %276 = vmatprep.subr.bf16.mxu0 0
  %277 = vmatpush1.bf16.msra.mxu0 0
  %278 = vmatprep.subr.bf16.mxu0 0
  %279 = vmatpush1.bf16.msra.mxu0 0
  %280 = vmatprep.subr.bf16.mxu0 0
  %281 = vmatpush1.bf16.msra.mxu0 0
  %282 = vmatprep.subr.bf16.mxu0 0
  %283 = vmatpush1.bf16.msra.mxu0 0
  %284 = vmatprep.subr.bf16.mxu0 0
  %285 = vmatpush1.bf16.msra.mxu0 0
  %286 = vmatprep.subr.bf16.mxu0 0
  %287 = vmatpush1.bf16.msra.mxu0 0
  %288 = vmatprep.subr.bf16.mxu0 0
  %289 = vmatpush1.bf16.msra.mxu0 0
  %290 = vmatprep.subr.bf16.mxu0 0
  %291 = vmatpush1.bf16.msra.mxu0 0
  %292 = vmatprep.subr.bf16.mxu0 0
  %293 = vmatpush1.bf16.msra.mxu0 0
  %294 = vmatprep.mubr.bf16.mxu0 0
  %295 = vmatmul.mubr.bf16.gmra.mrb[0].mxu0 %v130
  %v296 = vpop.f32.mrb[0].mxu0
  %v297 = vadd.f32 %v248, %v296
  %v298 = vpop.f32.mrb[0].mxu0
  %v299 = vpop.f32.mrb[0].mxu0
  %v300 = vadd.f32 %v248, %v299
  %v301 = vpop.f32.mrb[0].mxu0
  %302 = vdwg.mxu0
  %v303 = vpack.c.bf16 %v300, %v297
  %v304 = vlaneseq
  %v305 = vand.u32 %v304, 127
  %vm306 = vcmp.lt.s32.totalorder %v305, 3
  %v307 = vsel %vm306, 0.0, -1e+30
  %v309 = vunpack.c.l.b16 %v173
  %v310 = vunpack.c.h.b16 %v173
  %v311 = vpack.c.b16 %v309, %v309
  %v312 = vpack.c.b16 %v310, %v310
  %v314 = vunpack.c.l.b16 %v238
  %v315 = vunpack.c.h.b16 %v238
  %v316 = vpack.c.b16 %v314, %v314
  %v317 = vpack.c.b16 %v315, %v315
  %v319 = vunpack.c.l.b16 %v303
  %v320 = vunpack.c.h.b16 %v303
  %v321 = vpack.c.b16 %v319, %v319
  %v322 = vpack.c.b16 %v320, %v320
  %vm323 = vcmask 64512
  %v325 = vsel %vm323, %v311, 0
  %v328 = vsel %vm323, %v316, 0
  %330 = vmatprep.subr.bf16.mxu0 0
  %331 = vmatpush1.bf16.xpose.msra.mxu0 %v328
  %332 = vmatprep.subr.bf16.mxu0 0
  %333 = vmatpush1.bf16.xpose.msra.mxu0 0
  %334 = vmatprep.subr.bf16.mxu0 0
  %335 = vmatpush1.bf16.xpose.msra.mxu0 0
  %336 = vmatprep.subr.bf16.mxu0 0
  %337 = vmatpush1.bf16.xpose.msra.mxu0 0
  %338 = vmatprep.subr.bf16.mxu0 0
  %339 = vmatpush1.bf16.xpose.msra.mxu0 0
  %340 = vmatprep.subr.bf16.mxu0 0
  %341 = vmatpush1.bf16.xpose.msra.mxu0 0
  %342 = vmatprep.subr.bf16.mxu0 0
  %343 = vmatpush1.bf16.xpose.msra.mxu0 0
  %344 = vmatprep.subr.bf16.mxu0 0
  %345 = vmatpush1.bf16.xpose.msra.mxu0 0
  %346 = vmatprep.subr.bf16.mxu0 0
  %347 = vmatpush1.bf16.xpose.msra.mxu0 0
  %348 = vmatprep.subr.bf16.mxu0 0
  %349 = vmatpush1.bf16.xpose.msra.mxu0 0
  %350 = vmatprep.subr.bf16.mxu0 0
  %351 = vmatpush1.bf16.xpose.msra.mxu0 0
  %352 = vmatprep.subr.bf16.mxu0 0
  %353 = vmatpush1.bf16.xpose.msra.mxu0 0
  %354 = vmatprep.subr.bf16.mxu0 0
  %355 = vmatpush1.bf16.xpose.msra.mxu0 0
  %356 = vmatprep.subr.bf16.mxu0 0
  %357 = vmatpush1.bf16.xpose.msra.mxu0 0
  %358 = vmatprep.subr.bf16.mxu0 0
  %359 = vmatpush1.bf16.xpose.msra.mxu0 0
  %360 = vmatprep.subr.bf16.mxu0 0
  %361 = vmatpush1.bf16.xpose.msra.mxu0 0
  %362 = vmatprep.mubr.bf16.mxu0 0
  %363 = vmatmul.mubr.bf16.gmra.mrb[0].mxu0 %v325
  %v364 = vpop.f32.mrb[0].mxu0
  %v365 = vadd.f32 0.0, %v364
  %v366 = vpop.f32.mrb[0].mxu0
  %v367 = vpop.f32.mrb[0].mxu0
  %v368 = vpop.f32.mrb[0].mxu0
  %369 = vdwg.mxu0
  %v371 = vsel %vm323, %v312, 0
  %v374 = vsel %vm323, %v317, 0
  %376 = vmatprep.subr.bf16.mxu0 0
  %377 = vmatpush1.bf16.xpose.msra.mxu0 %v374
  %378 = vmatprep.subr.bf16.mxu0 0
  %379 = vmatpush1.bf16.xpose.msra.mxu0 0
  %380 = vmatprep.subr.bf16.mxu0 0
  %381 = vmatpush1.bf16.xpose.msra.mxu0 0
  %382 = vmatprep.subr.bf16.mxu0 0
  %383 = vmatpush1.bf16.xpose.msra.mxu0 0
  %384 = vmatprep.subr.bf16.mxu0 0
  %385 = vmatpush1.bf16.xpose.msra.mxu0 0
  %386 = vmatprep.subr.bf16.mxu0 0
  %387 = vmatpush1.bf16.xpose.msra.mxu0 0
  %388 = vmatprep.subr.bf16.mxu0 0
  %389 = vmatpush1.bf16.xpose.msra.mxu0 0
  %390 = vmatprep.subr.bf16.mxu0 0
  %391 = vmatpush1.bf16.xpose.msra.mxu0 0
  %392 = vmatprep.subr.bf16.mxu0 0
  %393 = vmatpush1.bf16.xpose.msra.mxu0 0
  %394 = vmatprep.subr.bf16.mxu0 0
  %395 = vmatpush1.bf16.xpose.msra.mxu0 0
  %396 = vmatprep.subr.bf16.mxu0 0
  %397 = vmatpush1.bf16.xpose.msra.mxu0 0
  %398 = vmatprep.subr.bf16.mxu0 0
  %399 = vmatpush1.bf16.xpose.msra.mxu0 0
  %400 = vmatprep.subr.bf16.mxu0 0
  %401 = vmatpush1.bf16.xpose.msra.mxu0 0
  %402 = vmatprep.subr.bf16.mxu0 0
  %403 = vmatpush1.bf16.xpose.msra.mxu0 0
  %404 = vmatprep.subr.bf16.mxu0 0
  %405 = vmatpush1.bf16.xpose.msra.mxu0 0
  %406 = vmatprep.subr.bf16.mxu0 0
  %407 = vmatpush1.bf16.xpose.msra.mxu0 0
  %408 = vmatprep.mubr.bf16.mxu0 0
  %409 = vmatmul.mubr.bf16.gmra.mrb[0].mxu0 %v371
  %v410 = vpop.f32.mrb[0].mxu0
  %v411 = vadd.f32 0.0, %v410
  %v412 = vpop.f32.mrb[0].mxu0
  %v413 = vpop.f32.mrb[0].mxu0
  %v414 = vpop.f32.mrb[0].mxu0
  %415 = vdwg.mxu0
  %v416 = vmul.f32 %v365, 0.35355338
  %v417 = vmul.f32 %v411, 0.35355338
  %v418 = vadd.f32 %v416, %v307
  %v419 = vadd.f32 %v417, %v307
  %v420 = vsel %vm323, %v418, -inf
  %421 = vmax.xlane.f32.xlu0 %v420
  %v422 = vpop.xlane.xlu0 %421
  %v423 = vsel %vm323, %v419, -inf
  %424 = vmax.xlane.f32.xlu0 %v423
  %v425 = vpop.xlane.xlu0 %424
  %v426 = vsub.f32 %v418, %v422
  %v427 = vsub.f32 %v419, %v425
  %v428 = vmul.f32 %v426, 1.442695
  %v429 = vpow.pop %v428
  %v430 = vmul.f32 %v427, 1.442695
  %v431 = vpow.pop %v430
  %v432 = vsel %vm323, %v429, 0.0
  %433 = vadd.xlane.f32.xlu0 %v432
  %v434 = vpop.xlane.xlu0 %433
  %v435 = vsel %vm323, %v431, 0.0
  %436 = vadd.xlane.f32.xlu0 %v435
  %v437 = vpop.xlane.xlu0 %436
  %v438 = vrcp.pop %v434
  %v439 = vrcp.pop %v437
  %v440 = vpack.c.bf16 %v429, %v429
  %v441 = vpack.c.bf16 %v431, %v431
  %v443 = vsel %vm323, %v440, 0
  %vm445 = vcmask 1043456
  %v447 = vsel %vm445, %v321, 0
  %449 = vmatprep.subr.bf16.mxu0 0
  %450 = vmatpush1.bf16.msra.mxu0 %v447
  %451 = vmatprep.subr.bf16.mxu0 0
  %452 = vmatpush1.bf16.msra.mxu0 0
  %453 = vmatprep.subr.bf16.mxu0 0
  %454 = vmatpush1.bf16.msra.mxu0 0
  %455 = vmatprep.subr.bf16.mxu0 0
  %456 = vmatpush1.bf16.msra.mxu0 0
  %457 = vmatprep.subr.bf16.mxu0 0
  %458 = vmatpush1.bf16.msra.mxu0 0
  %459 = vmatprep.subr.bf16.mxu0 0
  %460 = vmatpush1.bf16.msra.mxu0 0
  %461 = vmatprep.subr.bf16.mxu0 0
  %462 = vmatpush1.bf16.msra.mxu0 0
  %463 = vmatprep.subr.bf16.mxu0 0
  %464 = vmatpush1.bf16.msra.mxu0 0
  %465 = vmatprep.subr.bf16.mxu0 0
  %466 = vmatpush1.bf16.msra.mxu0 0
  %467 = vmatprep.subr.bf16.mxu0 0
  %468 = vmatpush1.bf16.msra.mxu0 0
  %469 = vmatprep.subr.bf16.mxu0 0
  %470 = vmatpush1.bf16.msra.mxu0 0
  %471 = vmatprep.subr.bf16.mxu0 0
  %472 = vmatpush1.bf16.msra.mxu0 0
  %473 = vmatprep.subr.bf16.mxu0 0
  %474 = vmatpush1.bf16.msra.mxu0 0
  %475 = vmatprep.subr.bf16.mxu0 0
  %476 = vmatpush1.bf16.msra.mxu0 0
  %477 = vmatprep.subr.bf16.mxu0 0
  %478 = vmatpush1.bf16.msra.mxu0 0
  %479 = vmatprep.subr.bf16.mxu0 0
  %480 = vmatpush1.bf16.msra.mxu0 0
  %481 = vmatprep.mubr.bf16.mxu0 0
  %482 = vmatmul.mubr.bf16.gmra.mrb[0].mxu0 %v443
  %v483 = vpop.f32.mrb[0].mxu0
  %v484 = vadd.f32 0.0, %v483
  %v485 = vpop.f32.mrb[0].mxu0
  %v486 = vpop.f32.mrb[0].mxu0
  %v487 = vpop.f32.mrb[0].mxu0
  %488 = vdwg.mxu0
  %v490 = vsel %vm323, %v441, 0
  %v493 = vsel %vm445, %v322, 0
  %495 = vmatprep.subr.bf16.mxu0 0
  %496 = vmatpush1.bf16.msra.mxu0 %v493
  %497 = vmatprep.subr.bf16.mxu0 0
  %498 = vmatpush1.bf16.msra.mxu0 0
  %499 = vmatprep.subr.bf16.mxu0 0
  %500 = vmatpush1.bf16.msra.mxu0 0
  %501 = vmatprep.subr.bf16.mxu0 0
  %502 = vmatpush1.bf16.msra.mxu0 0
  %503 = vmatprep.subr.bf16.mxu0 0
  %504 = vmatpush1.bf16.msra.mxu0 0
  %505 = vmatprep.subr.bf16.mxu0 0
  %506 = vmatpush1.bf16.msra.mxu0 0
  %507 = vmatprep.subr.bf16.mxu0 0
  %508 = vmatpush1.bf16.msra.mxu0 0
  %509 = vmatprep.subr.bf16.mxu0 0
  %510 = vmatpush1.bf16.msra.mxu0 0
  %511 = vmatprep.subr.bf16.mxu0 0
  %512 = vmatpush1.bf16.msra.mxu0 0
  %513 = vmatprep.subr.bf16.mxu0 0
  %514 = vmatpush1.bf16.msra.mxu0 0
  %515 = vmatprep.subr.bf16.mxu0 0
  %516 = vmatpush1.bf16.msra.mxu0 0
  %517 = vmatprep.subr.bf16.mxu0 0
  %518 = vmatpush1.bf16.msra.mxu0 0
  %519 = vmatprep.subr.bf16.mxu0 0
  %520 = vmatpush1.bf16.msra.mxu0 0
  %521 = vmatprep.subr.bf16.mxu0 0
  %522 = vmatpush1.bf16.msra.mxu0 0
  %523 = vmatprep.subr.bf16.mxu0 0
  %524 = vmatpush1.bf16.msra.mxu0 0
  %525 = vmatprep.subr.bf16.mxu0 0
  %526 = vmatpush1.bf16.msra.mxu0 0
  %527 = vmatprep.mubr.bf16.mxu0 0
  %528 = vmatmul.mubr.bf16.gmra.mrb[0].mxu0 %v490
  %v529 = vpop.f32.mrb[0].mxu0
  %v530 = vadd.f32 0.0, %v529
  %v531 = vpop.f32.mrb[0].mxu0
  %v532 = vpop.f32.mrb[0].mxu0
  %v533 = vpop.f32.mrb[0].mxu0
  %534 = vdwg.mxu0
  %v535 = vmul.f32 %v484, %v438
  %v536 = vmul.f32 %v530, %v439
  %v537 = vpack.c.bf16 %v536, %v535
  %538 = vst.msk [vmem:[#allocation2] sm:$0xff] %vm323, %v537
  %539 = vrot.lane.b32.xlu0 %v311, 120
  %v540 = vpop.permute.xlu0 %539
  %541 = vrot.lane.b32.xlu0 %v316, 120
  %v542 = vpop.permute.xlu0 %541
  %v544 = vsel %vm323, %v540, 0
  %v547 = vsel %vm323, %v542, 0
  %549 = vmatprep.subr.bf16.mxu0 0
  %550 = vmatpush1.bf16.xpose.msra.mxu0 %v547
  %551 = vmatprep.subr.bf16.mxu0 0
  %552 = vmatpush1.bf16.xpose.msra.mxu0 0
  %553 = vmatprep.subr.bf16.mxu0 0
  %554 = vmatpush1.bf16.xpose.msra.mxu0 0
  %555 = vmatprep.subr.bf16.mxu0 0
  %556 = vmatpush1.bf16.xpose.msra.mxu0 0
  %557 = vmatprep.subr.bf16.mxu0 0
  %558 = vmatpush1.bf16.xpose.msra.mxu0 0
  %559 = vmatprep.subr.bf16.mxu0 0
  %560 = vmatpush1.bf16.xpose.msra.mxu0 0
  %561 = vmatprep.subr.bf16.mxu0 0
  %562 = vmatpush1.bf16.xpose.msra.mxu0 0
  %563 = vmatprep.subr.bf16.mxu0 0
  %564 = vmatpush1.bf16.xpose.msra.mxu0 0
  %565 = vmatprep.subr.bf16.mxu0 0
  %566 = vmatpush1.bf16.xpose.msra.mxu0 0
  %567 = vmatprep.subr.bf16.mxu0 0
  %568 = vmatpush1.bf16.xpose.msra.mxu0 0
  %569 = vmatprep.subr.bf16.mxu0 0
  %570 = vmatpush1.bf16.xpose.msra.mxu0 0
  %571 = vmatprep.subr.bf16.mxu0 0
  %572 = vmatpush1.bf16.xpose.msra.mxu0 0
  %573 = vmatprep.subr.bf16.mxu0 0
  %574 = vmatpush1.bf16.xpose.msra.mxu0 0
  %575 = vmatprep.subr.bf16.mxu0 0
  %576 = vmatpush1.bf16.xpose.msra.mxu0 0
  %577 = vmatprep.subr.bf16.mxu0 0
  %578 = vmatpush1.bf16.xpose.msra.mxu0 0
  %579 = vmatprep.subr.bf16.mxu0 0
  %580 = vmatpush1.bf16.xpose.msra.mxu0 0
  %581 = vmatprep.mubr.bf16.mxu0 0
  %582 = vmatmul.mubr.bf16.gmra.mrb[0].mxu0 %v544
  %v583 = vpop.f32.mrb[0].mxu0
  %v584 = vadd.f32 0.0, %v583
  %v585 = vpop.f32.mrb[0].mxu0
  %v586 = vpop.f32.mrb[0].mxu0
  %v587 = vpop.f32.mrb[0].mxu0
  %588 = vdwg.mxu0
  %589 = vrot.lane.b32.xlu0 %v312, 120
  %v590 = vpop.permute.xlu0 %589
  %591 = vrot.lane.b32.xlu0 %v317, 120
  %v592 = vpop.permute.xlu0 %591
  %v594 = vsel %vm323, %v590, 0
  %v597 = vsel %vm323, %v592, 0
  %599 = vmatprep.subr.bf16.mxu0 0
  %600 = vmatpush1.bf16.xpose.msra.mxu0 %v597
  %601 = vmatprep.subr.bf16.mxu0 0
  %602 = vmatpush1.bf16.xpose.msra.mxu0 0
  %603 = vmatprep.subr.bf16.mxu0 0
  %604 = vmatpush1.bf16.xpose.msra.mxu0 0
  %605 = vmatprep.subr.bf16.mxu0 0
  %606 = vmatpush1.bf16.xpose.msra.mxu0 0
  %607 = vmatprep.subr.bf16.mxu0 0
  %608 = vmatpush1.bf16.xpose.msra.mxu0 0
  %609 = vmatprep.subr.bf16.mxu0 0
  %610 = vmatpush1.bf16.xpose.msra.mxu0 0
  %611 = vmatprep.subr.bf16.mxu0 0
  %612 = vmatpush1.bf16.xpose.msra.mxu0 0
  %613 = vmatprep.subr.bf16.mxu0 0
  %614 = vmatpush1.bf16.xpose.msra.mxu0 0
  %615 = vmatprep.subr.bf16.mxu0 0
  %616 = vmatpush1.bf16.xpose.msra.mxu0 0
  %617 = vmatprep.subr.bf16.mxu0 0
  %618 = vmatpush1.bf16.xpose.msra.mxu0 0
  %619 = vmatprep.subr.bf16.mxu0 0
  %620 = vmatpush1.bf16.xpose.msra.mxu0 0
  %621 = vmatprep.subr.bf16.mxu0 0
  %622 = vmatpush1.bf16.xpose.msra.mxu0 0
  %623 = vmatprep.subr.bf16.mxu0 0
  %624 = vmatpush1.bf16.xpose.msra.mxu0 0
  %625 = vmatprep.subr.bf16.mxu0 0
  %626 = vmatpush1.bf16.xpose.msra.mxu0 0
  %627 = vmatprep.subr.bf16.mxu0 0
  %628 = vmatpush1.bf16.xpose.msra.mxu0 0
  %629 = vmatprep.subr.bf16.mxu0 0
  %630 = vmatpush1.bf16.xpose.msra.mxu0 0
  %631 = vmatprep.mubr.bf16.mxu0 0
  %632 = vmatmul.mubr.bf16.gmra.mrb[0].mxu0 %v594
  %v633 = vpop.f32.mrb[0].mxu0
  %v634 = vadd.f32 0.0, %v633
  %v635 = vpop.f32.mrb[0].mxu0
  %v636 = vpop.f32.mrb[0].mxu0
  %v637 = vpop.f32.mrb[0].mxu0
  %638 = vdwg.mxu0
  %v639 = vmul.f32 %v584, 0.35355338
  %v640 = vmul.f32 %v634, 0.35355338
  %v641 = vadd.f32 %v639, %v307
  %v642 = vadd.f32 %v640, %v307
  %v643 = vsel %vm323, %v641, -inf
  %644 = vmax.xlane.f32.xlu0 %v643
  %v645 = vpop.xlane.xlu0 %644
  %v646 = vsel %vm323, %v642, -inf
  %647 = vmax.xlane.f32.xlu0 %v646
  %v648 = vpop.xlane.xlu0 %647
  %v649 = vsub.f32 %v641, %v645
  %v650 = vsub.f32 %v642, %v648
  %v651 = vmul.f32 %v649, 1.442695
  %v652 = vpow.pop %v651
  %v653 = vmul.f32 %v650, 1.442695
  %v654 = vpow.pop %v653
  %v655 = vsel %vm323, %v652, 0.0
  %656 = vadd.xlane.f32.xlu0 %v655
  %v657 = vpop.xlane.xlu0 %656
  %v658 = vsel %vm323, %v654, 0.0
  %659 = vadd.xlane.f32.xlu0 %v658
  %v660 = vpop.xlane.xlu0 %659
  %v661 = vrcp.pop %v657
  %v662 = vrcp.pop %v660
  %v663 = vpack.c.bf16 %v652, %v652
  %v664 = vpack.c.bf16 %v654, %v654
  %665 = vrot.lane.b32.xlu0 %v321, 120
  %v666 = vpop.permute.xlu0 %665
  %v668 = vsel %vm323, %v663, 0
  %v671 = vsel %vm445, %v666, 0
  %673 = vmatprep.subr.bf16.mxu0 0
  %674 = vmatpush1.bf16.msra.mxu0 %v671
  %675 = vmatprep.subr.bf16.mxu0 0
  %676 = vmatpush1.bf16.msra.mxu0 0
  %677 = vmatprep.subr.bf16.mxu0 0
  %678 = vmatpush1.bf16.msra.mxu0 0
  %679 = vmatprep.subr.bf16.mxu0 0
  %680 = vmatpush1.bf16.msra.mxu0 0
  %681 = vmatprep.subr.bf16.mxu0 0
  %682 = vmatpush1.bf16.msra.mxu0 0
  %683 = vmatprep.subr.bf16.mxu0 0
  %684 = vmatpush1.bf16.msra.mxu0 0
  %685 = vmatprep.subr.bf16.mxu0 0
  %686 = vmatpush1.bf16.msra.mxu0 0
  %687 = vmatprep.subr.bf16.mxu0 0
  %688 = vmatpush1.bf16.msra.mxu0 0
  %689 = vmatprep.subr.bf16.mxu0 0
  %690 = vmatpush1.bf16.msra.mxu0 0
  %691 = vmatprep.subr.bf16.mxu0 0
  %692 = vmatpush1.bf16.msra.mxu0 0
  %693 = vmatprep.subr.bf16.mxu0 0
  %694 = vmatpush1.bf16.msra.mxu0 0
  %695 = vmatprep.subr.bf16.mxu0 0
  %696 = vmatpush1.bf16.msra.mxu0 0
  %697 = vmatprep.subr.bf16.mxu0 0
  %698 = vmatpush1.bf16.msra.mxu0 0
  %699 = vmatprep.subr.bf16.mxu0 0
  %700 = vmatpush1.bf16.msra.mxu0 0
  %701 = vmatprep.subr.bf16.mxu0 0
  %702 = vmatpush1.bf16.msra.mxu0 0
  %703 = vmatprep.subr.bf16.mxu0 0
  %704 = vmatpush1.bf16.msra.mxu0 0
  %705 = vmatprep.mubr.bf16.mxu0 0
  %706 = vmatmul.mubr.bf16.gmra.mrb[0].mxu0 %v668
  %v707 = vpop.f32.mrb[0].mxu0
  %v708 = vadd.f32 0.0, %v707
  %v709 = vpop.f32.mrb[0].mxu0
  %v710 = vpop.f32.mrb[0].mxu0
  %v711 = vpop.f32.mrb[0].mxu0
  %712 = vdwg.mxu0
  %713 = vrot.lane.b32.xlu0 %v322, 120
  %v714 = vpop.permute.xlu0 %713
  %v716 = vsel %vm323, %v664, 0
  %v719 = vsel %vm445, %v714, 0
  %721 = vmatprep.subr.bf16.mxu0 0
  %722 = vmatpush1.bf16.msra.mxu0 %v719
  %723 = vmatprep.subr.bf16.mxu0 0
  %724 = vmatpush1.bf16.msra.mxu0 0
  %725 = vmatprep.subr.bf16.mxu0 0
  %726 = vmatpush1.bf16.msra.mxu0 0
  %727 = vmatprep.subr.bf16.mxu0 0
  %728 = vmatpush1.bf16.msra.mxu0 0
  %729 = vmatprep.subr.bf16.mxu0 0
  %730 = vmatpush1.bf16.msra.mxu0 0
  %731 = vmatprep.subr.bf16.mxu0 0
  %732 = vmatpush1.bf16.msra.mxu0 0
  %733 = vmatprep.subr.bf16.mxu0 0
  %734 = vmatpush1.bf16.msra.mxu0 0
  %735 = vmatprep.subr.bf16.mxu0 0
  %736 = vmatpush1.bf16.msra.mxu0 0
  %737 = vmatprep.subr.bf16.mxu0 0
  %738 = vmatpush1.bf16.msra.mxu0 0
  %739 = vmatprep.subr.bf16.mxu0 0
  %740 = vmatpush1.bf16.msra.mxu0 0
  %741 = vmatprep.subr.bf16.mxu0 0
  %742 = vmatpush1.bf16.msra.mxu0 0
  %743 = vmatprep.subr.bf16.mxu0 0
  %744 = vmatpush1.bf16.msra.mxu0 0
  %745 = vmatprep.subr.bf16.mxu0 0
  %746 = vmatpush1.bf16.msra.mxu0 0
  %747 = vmatprep.subr.bf16.mxu0 0
  %748 = vmatpush1.bf16.msra.mxu0 0
  %749 = vmatprep.subr.bf16.mxu0 0
  %750 = vmatpush1.bf16.msra.mxu0 0
  %751 = vmatprep.subr.bf16.mxu0 0
  %752 = vmatpush1.bf16.msra.mxu0 0
  %753 = vmatprep.mubr.bf16.mxu0 0
  %754 = vmatmul.mubr.bf16.gmra.mrb[0].mxu0 %v716
  %v755 = vpop.f32.mrb[0].mxu0
  %v756 = vadd.f32 0.0, %v755
  %v757 = vpop.f32.mrb[0].mxu0
  %v758 = vpop.f32.mrb[0].mxu0
  %v759 = vpop.f32.mrb[0].mxu0
  %760 = vdwg.mxu0
  %v761 = vmul.f32 %v708, %v661
  %v762 = vmul.f32 %v756, %v662
  %v763 = vpack.c.bf16 %v762, %v761
  %765 = vrot.lane.b32.xlu0 %v763, 8
  %v766 = vpop.permute.xlu0 %765
  %vm768 = vcmask 130112
  %769 = vst.msk [vmem:[#allocation2] sm:$0xff] %vm768, %v766
  %770 = vrot.lane.b32.xlu0 %v311, 112
  %v771 = vpop.permute.xlu0 %770
  %772 = vrot.lane.b32.xlu0 %v316, 112
  %v773 = vpop.permute.xlu0 %772
  %v775 = vsel %vm323, %v771, 0
  %v778 = vsel %vm323, %v773, 0
  %780 = vmatprep.subr.bf16.mxu0 0
  %781 = vmatpush1.bf16.xpose.msra.mxu0 %v778
  %782 = vmatprep.subr.bf16.mxu0 0
  %783 = vmatpush1.bf16.xpose.msra.mxu0 0
  %784 = vmatprep.subr.bf16.mxu0 0
  %785 = vmatpush1.bf16.xpose.msra.mxu0 0
  %786 = vmatprep.subr.bf16.mxu0 0
  %787 = vmatpush1.bf16.xpose.msra.mxu0 0
  %788 = vmatprep.subr.bf16.mxu0 0
  %789 = vmatpush1.bf16.xpose.msra.mxu0 0
  %790 = vmatprep.subr.bf16.mxu0 0
  %791 = vmatpush1.bf16.xpose.msra.mxu0 0
  %792 = vmatprep.subr.bf16.mxu0 0
  %793 = vmatpush1.bf16.xpose.msra.mxu0 0
  %794 = vmatprep.subr.bf16.mxu0 0
  %795 = vmatpush1.bf16.xpose.msra.mxu0 0
  %796 = vmatprep.subr.bf16.mxu0 0
  %797 = vmatpush1.bf16.xpose.msra.mxu0 0
  %798 = vmatprep.subr.bf16.mxu0 0
  %799 = vmatpush1.bf16.xpose.msra.mxu0 0
  %800 = vmatprep.subr.bf16.mxu0 0
  %801 = vmatpush1.bf16.xpose.msra.mxu0 0
  %802 = vmatprep.subr.bf16.mxu0 0
  %803 = vmatpush1.bf16.xpose.msra.mxu0 0
  %804 = vmatprep.subr.bf16.mxu0 0
  %805 = vmatpush1.bf16.xpose.msra.mxu0 0
  %806 = vmatprep.subr.bf16.mxu0 0
  %807 = vmatpush1.bf16.xpose.msra.mxu0 0
  %808 = vmatprep.subr.bf16.mxu0 0
  %809 = vmatpush1.bf16.xpose.msra.mxu0 0
  %810 = vmatprep.subr.bf16.mxu0 0
  %811 = vmatpush1.bf16.xpose.msra.mxu0 0
  %812 = vmatprep.mubr.bf16.mxu0 0
  %813 = vmatmul.mubr.bf16.gmra.mrb[0].mxu0 %v775
  %v814 = vpop.f32.mrb[0].mxu0
  %v815 = vadd.f32 0.0, %v814
  %v816 = vpop.f32.mrb[0].mxu0
  %v817 = vpop.f32.mrb[0].mxu0
  %v818 = vpop.f32.mrb[0].mxu0
  %819 = vdwg.mxu0
  %820 = vrot.lane.b32.xlu0 %v312, 112
  %v821 = vpop.permute.xlu0 %820
  %822 = vrot.lane.b32.xlu0 %v317, 112
  %v823 = vpop.permute.xlu0 %822
  %v825 = vsel %vm323, %v821, 0
  %v828 = vsel %vm323, %v823, 0
  %830 = vmatprep.subr.bf16.mxu0 0
  %831 = vmatpush1.bf16.xpose.msra.mxu0 %v828
  %832 = vmatprep.subr.bf16.mxu0 0
  %833 = vmatpush1.bf16.xpose.msra.mxu0 0
  %834 = vmatprep.subr.bf16.mxu0 0
  %835 = vmatpush1.bf16.xpose.msra.mxu0 0
  %836 = vmatprep.subr.bf16.mxu0 0
  %837 = vmatpush1.bf16.xpose.msra.mxu0 0
  %838 = vmatprep.subr.bf16.mxu0 0
  %839 = vmatpush1.bf16.xpose.msra.mxu0 0
  %840 = vmatprep.subr.bf16.mxu0 0
  %841 = vmatpush1.bf16.xpose.msra.mxu0 0
  %842 = vmatprep.subr.bf16.mxu0 0
  %843 = vmatpush1.bf16.xpose.msra.mxu0 0
  %844 = vmatprep.subr.bf16.mxu0 0
  %845 = vmatpush1.bf16.xpose.msra.mxu0 0
  %846 = vmatprep.subr.bf16.mxu0 0
  %847 = vmatpush1.bf16.xpose.msra.mxu0 0
  %848 = vmatprep.subr.bf16.mxu0 0
  %849 = vmatpush1.bf16.xpose.msra.mxu0 0
  %850 = vmatprep.subr.bf16.mxu0 0
  %851 = vmatpush1.bf16.xpose.msra.mxu0 0
  %852 = vmatprep.subr.bf16.mxu0 0
  %853 = vmatpush1.bf16.xpose.msra.mxu0 0
  %854 = vmatprep.subr.bf16.mxu0 0
  %855 = vmatpush1.bf16.xpose.msra.mxu0 0
  %856 = vmatprep.subr.bf16.mxu0 0
  %857 = vmatpush1.bf16.xpose.msra.mxu0 0
  %858 = vmatprep.subr.bf16.mxu0 0
  %859 = vmatpush1.bf16.xpose.msra.mxu0 0
  %860 = vmatprep.subr.bf16.mxu0 0
  %861 = vmatpush1.bf16.xpose.msra.mxu0 0
  %862 = vmatprep.mubr.bf16.mxu0 0
  %863 = vmatmul.mubr.bf16.gmra.mrb[0].mxu0 %v825
  %v864 = vpop.f32.mrb[0].mxu0
  %v865 = vadd.f32 0.0, %v864
  %v866 = vpop.f32.mrb[0].mxu0
  %v867 = vpop.f32.mrb[0].mxu0
  %v868 = vpop.f32.mrb[0].mxu0
  %869 = vdwg.mxu0
  %v870 = vmul.f32 %v815, 0.35355338
  %v871 = vmul.f32 %v865, 0.35355338
  %v872 = vadd.f32 %v870, %v307
  %v873 = vadd.f32 %v871, %v307
  %v874 = vsel %vm323, %v872, -inf
  %875 = vmax.xlane.f32.xlu0 %v874
  %v876 = vpop.xlane.xlu0 %875
  %v877 = vsel %vm323, %v873, -inf
  %878 = vmax.xlane.f32.xlu0 %v877
  %v879 = vpop.xlane.xlu0 %878
  %v880 = vsub.f32 %v872, %v876
  %v881 = vsub.f32 %v873, %v879
  %v882 = vmul.f32 %v880, 1.442695
  %v883 = vpow.pop %v882
  %v884 = vmul.f32 %v881, 1.442695
  %v885 = vpow.pop %v884
  %v886 = vsel %vm323, %v883, 0.0
  %887 = vadd.xlane.f32.xlu0 %v886
  %v888 = vpop.xlane.xlu0 %887
  %v889 = vsel %vm323, %v885, 0.0
  %890 = vadd.xlane.f32.xlu0 %v889
  %v891 = vpop.xlane.xlu0 %890
  %v892 = vrcp.pop %v888
  %v893 = vrcp.pop %v891
  %v894 = vpack.c.bf16 %v883, %v883
  %v895 = vpack.c.bf16 %v885, %v885
  %896 = vrot.lane.b32.xlu0 %v321, 112
  %v897 = vpop.permute.xlu0 %896
  %v899 = vsel %vm323, %v894, 0
  %v902 = vsel %vm445, %v897, 0
  %904 = vmatprep.subr.bf16.mxu0 0
  %905 = vmatpush1.bf16.msra.mxu0 %v902
  %906 = vmatprep.subr.bf16.mxu0 0
  %907 = vmatpush1.bf16.msra.mxu0 0
  %908 = vmatprep.subr.bf16.mxu0 0
  %909 = vmatpush1.bf16.msra.mxu0 0
  %910 = vmatprep.subr.bf16.mxu0 0
  %911 = vmatpush1.bf16.msra.mxu0 0
  %912 = vmatprep.subr.bf16.mxu0 0
  %913 = vmatpush1.bf16.msra.mxu0 0
  %914 = vmatprep.subr.bf16.mxu0 0
  %915 = vmatpush1.bf16.msra.mxu0 0
  %916 = vmatprep.subr.bf16.mxu0 0
  %917 = vmatpush1.bf16.msra.mxu0 0
  %918 = vmatprep.subr.bf16.mxu0 0
  %919 = vmatpush1.bf16.msra.mxu0 0
  %920 = vmatprep.subr.bf16.mxu0 0
  %921 = vmatpush1.bf16.msra.mxu0 0
  %922 = vmatprep.subr.bf16.mxu0 0
  %923 = vmatpush1.bf16.msra.mxu0 0
  %924 = vmatprep.subr.bf16.mxu0 0
  %925 = vmatpush1.bf16.msra.mxu0 0
  %926 = vmatprep.subr.bf16.mxu0 0
  %927 = vmatpush1.bf16.msra.mxu0 0
  %928 = vmatprep.subr.bf16.mxu0 0
  %929 = vmatpush1.bf16.msra.mxu0 0
  %930 = vmatprep.subr.bf16.mxu0 0
  %931 = vmatpush1.bf16.msra.mxu0 0
  %932 = vmatprep.subr.bf16.mxu0 0
  %933 = vmatpush1.bf16.msra.mxu0 0
  %934 = vmatprep.subr.bf16.mxu0 0
  %935 = vmatpush1.bf16.msra.mxu0 0
  %936 = vmatprep.mubr.bf16.mxu0 0
  %937 = vmatmul.mubr.bf16.gmra.mrb[0].mxu0 %v899
  %v938 = vpop.f32.mrb[0].mxu0
  %v939 = vadd.f32 0.0, %v938
  %v940 = vpop.f32.mrb[0].mxu0
  %v941 = vpop.f32.mrb[0].mxu0
  %v942 = vpop.f32.mrb[0].mxu0
  %943 = vdwg.mxu0
  %944 = vrot.lane.b32.xlu0 %v322, 112
  %v945 = vpop.permute.xlu0 %944
  %v947 = vsel %vm323, %v895, 0
  %v950 = vsel %vm445, %v945, 0
  %952 = vmatprep.subr.bf16.mxu0 0
  %953 = vmatpush1.bf16.msra.mxu0 %v950
  %954 = vmatprep.subr.bf16.mxu0 0
  %955 = vmatpush1.bf16.msra.mxu0 0
  %956 = vmatprep.subr.bf16.mxu0 0
  %957 = vmatpush1.bf16.msra.mxu0 0
  %958 = vmatprep.subr.bf16.mxu0 0
  %959 = vmatpush1.bf16.msra.mxu0 0
  %960 = vmatprep.subr.bf16.mxu0 0
  %961 = vmatpush1.bf16.msra.mxu0 0
  %962 = vmatprep.subr.bf16.mxu0 0
  %963 = vmatpush1.bf16.msra.mxu0 0
  %964 = vmatprep.subr.bf16.mxu0 0
  %965 = vmatpush1.bf16.msra.mxu0 0
  %966 = vmatprep.subr.bf16.mxu0 0
  %967 = vmatpush1.bf16.msra.mxu0 0
  %968 = vmatprep.subr.bf16.mxu0 0
  %969 = vmatpush1.bf16.msra.mxu0 0
  %970 = vmatprep.subr.bf16.mxu0 0
  %971 = vmatpush1.bf16.msra.mxu0 0
  %972 = vmatprep.subr.bf16.mxu0 0
  %973 = vmatpush1.bf16.msra.mxu0 0
  %974 = vmatprep.subr.bf16.mxu0 0
  %975 = vmatpush1.bf16.msra.mxu0 0
  %976 = vmatprep.subr.bf16.mxu0 0
  %977 = vmatpush1.bf16.msra.mxu0 0
  %978 = vmatprep.subr.bf16.mxu0 0
  %979 = vmatpush1.bf16.msra.mxu0 0
  %980 = vmatprep.subr.bf16.mxu0 0
  %981 = vmatpush1.bf16.msra.mxu0 0
  %982 = vmatprep.subr.bf16.mxu0 0
  %983 = vmatpush1.bf16.msra.mxu0 0
  %984 = vmatprep.mubr.bf16.mxu0 0
  %985 = vmatmul.mubr.bf16.gmra.mrb[0].mxu0 %v947
  %v986 = vpop.f32.mrb[0].mxu0
  %v987 = vadd.f32 0.0, %v986
  %v988 = vpop.f32.mrb[0].mxu0
  %v989 = vpop.f32.mrb[0].mxu0
  %v990 = vpop.f32.mrb[0].mxu0
  %991 = vdwg.mxu0
  %v992 = vmul.f32 %v939, %v892
  %v993 = vmul.f32 %v987, %v893
  %v994 = vpack.c.bf16 %v993, %v992
  %996 = vrot.lane.b32.xlu0 %v994, 16
  %v997 = vpop.permute.xlu0 %996
  %vm999 = vcmask 195712
  %1000 = vst.msk [vmem:[#allocation2] sm:$0xff] %vm999, %v997
  %1001 = vrot.lane.b32.xlu0 %v311, 104
  %v1002 = vpop.permute.xlu0 %1001
  %1003 = vrot.lane.b32.xlu0 %v316, 104
  %v1004 = vpop.permute.xlu0 %1003
  %v1006 = vsel %vm323, %v1002, 0
  %v1009 = vsel %vm323, %v1004, 0
  %1011 = vmatprep.subr.bf16.mxu0 0
  %1012 = vmatpush1.bf16.xpose.msra.mxu0 %v1009
  %1013 = vmatprep.subr.bf16.mxu0 0
  %1014 = vmatpush1.bf16.xpose.msra.mxu0 0
  %1015 = vmatprep.subr.bf16.mxu0 0
  %1016 = vmatpush1.bf16.xpose.msra.mxu0 0
  %1017 = vmatprep.subr.bf16.mxu0 0
  %1018 = vmatpush1.bf16.xpose.msra.mxu0 0
  %1019 = vmatprep.subr.bf16.mxu0 0
  %1020 = vmatpush1.bf16.xpose.msra.mxu0 0
  %1021 = vmatprep.subr.bf16.mxu0 0
  %1022 = vmatpush1.bf16.xpose.msra.mxu0 0
  %1023 = vmatprep.subr.bf16.mxu0 0
  %1024 = vmatpush1.bf16.xpose.msra.mxu0 0
  %1025 = vmatprep.subr.bf16.mxu0 0
  %1026 = vmatpush1.bf16.xpose.msra.mxu0 0
  %1027 = vmatprep.subr.bf16.mxu0 0
  %1028 = vmatpush1.bf16.xpose.msra.mxu0 0
  %1029 = vmatprep.subr.bf16.mxu0 0
  %1030 = vmatpush1.bf16.xpose.msra.mxu0 0
  %1031 = vmatprep.subr.bf16.mxu0 0
  %1032 = vmatpush1.bf16.xpose.msra.mxu0 0
  %1033 = vmatprep.subr.bf16.mxu0 0
  %1034 = vmatpush1.bf16.xpose.msra.mxu0 0
  %1035 = vmatprep.subr.bf16.mxu0 0
  %1036 = vmatpush1.bf16.xpose.msra.mxu0 0
  %1037 = vmatprep.subr.bf16.mxu0 0
  %1038 = vmatpush1.bf16.xpose.msra.mxu0 0
  %1039 = vmatprep.subr.bf16.mxu0 0
  %1040 = vmatpush1.bf16.xpose.msra.mxu0 0
  %1041 = vmatprep.subr.bf16.mxu0 0
  %1042 = vmatpush1.bf16.xpose.msra.mxu0 0
  %1043 = vmatprep.mubr.bf16.mxu0 0
  %1044 = vmatmul.mubr.bf16.gmra.mrb[0].mxu0 %v1006
  %v1045 = vpop.f32.mrb[0].mxu0
  %v1046 = vadd.f32 0.0, %v1045
  %v1047 = vpop.f32.mrb[0].mxu0
  %v1048 = vpop.f32.mrb[0].mxu0
  %v1049 = vpop.f32.mrb[0].mxu0
  %1050 = vdwg.mxu0
  %1051 = vrot.lane.b32.xlu0 %v312, 104
  %v1052 = vpop.permute.xlu0 %1051
  %1053 = vrot.lane.b32.xlu0 %v317, 104
  %v1054 = vpop.permute.xlu0 %1053
  %v1056 = vsel %vm323, %v1052, 0
  %v1059 = vsel %vm323, %v1054, 0
  %1061 = vmatprep.subr.bf16.mxu0 0
  %1062 = vmatpush1.bf16.xpose.msra.mxu0 %v1059
  %1063 = vmatprep.subr.bf16.mxu0 0
  %1064 = vmatpush1.bf16.xpose.msra.mxu0 0
  %1065 = vmatprep.subr.bf16.mxu0 0
  %1066 = vmatpush1.bf16.xpose.msra.mxu0 0
  %1067 = vmatprep.subr.bf16.mxu0 0
  %1068 = vmatpush1.bf16.xpose.msra.mxu0 0
  %1069 = vmatprep.subr.bf16.mxu0 0
  %1070 = vmatpush1.bf16.xpose.msra.mxu0 0
  %1071 = vmatprep.subr.bf16.mxu0 0
  %1072 = vmatpush1.bf16.xpose.msra.mxu0 0
  %1073 = vmatprep.subr.bf16.mxu0 0
  %1074 = vmatpush1.bf16.xpose.msra.mxu0 0
  %1075 = vmatprep.subr.bf16.mxu0 0
  %1076 = vmatpush1.bf16.xpose.msra.mxu0 0
  %1077 = vmatprep.subr.bf16.mxu0 0
  %1078 = vmatpush1.bf16.xpose.msra.mxu0 0
  %1079 = vmatprep.subr.bf16.mxu0 0
  %1080 = vmatpush1.bf16.xpose.msra.mxu0 0
  %1081 = vmatprep.subr.bf16.mxu0 0
  %1082 = vmatpush1.bf16.xpose.msra.mxu0 0
  %1083 = vmatprep.subr.bf16.mxu0 0
  %1084 = vmatpush1.bf16.xpose.msra.mxu0 0
  %1085 = vmatprep.subr.bf16.mxu0 0
  %1086 = vmatpush1.bf16.xpose.msra.mxu0 0
  %1087 = vmatprep.subr.bf16.mxu0 0
  %1088 = vmatpush1.bf16.xpose.msra.mxu0 0
  %1089 = vmatprep.subr.bf16.mxu0 0
  %1090 = vmatpush1.bf16.xpose.msra.mxu0 0
  %1091 = vmatprep.subr.bf16.mxu0 0
  %1092 = vmatpush1.bf16.xpose.msra.mxu0 0
  %1093 = vmatprep.mubr.bf16.mxu0 0
  %1094 = vmatmul.mubr.bf16.gmra.mrb[0].mxu0 %v1056
  %v1095 = vpop.f32.mrb[0].mxu0
  %v1096 = vadd.f32 0.0, %v1095
  %v1097 = vpop.f32.mrb[0].mxu0
  %v1098 = vpop.f32.mrb[0].mxu0
  %v1099 = vpop.f32.mrb[0].mxu0
  %1100 = vdwg.mxu0
  %v1101 = vmul.f32 %v1046, 0.35355338
  %v1102 = vmul.f32 %v1096, 0.35355338
  %v1103 = vadd.f32 %v1101, %v307
  %v1104 = vadd.f32 %v1102, %v307
  %v1105 = vsel %vm323, %v1103, -inf
  %1106 = vmax.xlane.f32.xlu0 %v1105
  %v1107 = vpop.xlane.xlu0 %1106
  %v1108 = vsel %vm323, %v1104, -inf
  %1109 = vmax.xlane.f32.xlu0 %v1108
  %v1110 = vpop.xlane.xlu0 %1109
  %v1111 = vsub.f32 %v1103, %v1107
  %v1112 = vsub.f32 %v1104, %v1110
  %v1113 = vmul.f32 %v1111, 1.442695
  %v1114 = vpow.pop %v1113
  %v1115 = vmul.f32 %v1112, 1.442695
  %v1116 = vpow.pop %v1115
  %v1117 = vsel %vm323, %v1114, 0.0
  %1118 = vadd.xlane.f32.xlu0 %v1117
  %v1119 = vpop.xlane.xlu0 %1118
  %v1120 = vsel %vm323, %v1116, 0.0
  %1121 = vadd.xlane.f32.xlu0 %v1120
  %v1122 = vpop.xlane.xlu0 %1121
  %v1123 = vrcp.pop %v1119
  %v1124 = vrcp.pop %v1122
  %v1125 = vpack.c.bf16 %v1114, %v1114
  %v1126 = vpack.c.bf16 %v1116, %v1116
  %1127 = vrot.lane.b32.xlu0 %v321, 104
  %v1128 = vpop.permute.xlu0 %1127
  %v1130 = vsel %vm323, %v1125, 0
  %v1133 = vsel %vm445, %v1128, 0
  %1135 = vmatprep.subr.bf16.mxu0 0
  %1136 = vmatpush1.bf16.msra.mxu0 %v1133
  %1137 = vmatprep.subr.bf16.mxu0 0
  %1138 = vmatpush1.bf16.msra.mxu0 0
  %1139 = vmatprep.subr.bf16.mxu0 0
  %1140 = vmatpush1.bf16.msra.mxu0 0
  %1141 = vmatprep.subr.bf16.mxu0 0
  %1142 = vmatpush1.bf16.msra.mxu0 0
  %1143 = vmatprep.subr.bf16.mxu0 0
  %1144 = vmatpush1.bf16.msra.mxu0 0
  %1145 = vmatprep.subr.bf16.mxu0 0
  %1146 = vmatpush1.bf16.msra.mxu0 0
  %1147 = vmatprep.subr.bf16.mxu0 0
  %1148 = vmatpush1.bf16.msra.mxu0 0
  %1149 = vmatprep.subr.bf16.mxu0 0
  %1150 = vmatpush1.bf16.msra.mxu0 0
  %1151 = vmatprep.subr.bf16.mxu0 0
  %1152 = vmatpush1.bf16.msra.mxu0 0
  %1153 = vmatprep.subr.bf16.mxu0 0
  %1154 = vmatpush1.bf16.msra.mxu0 0
  %1155 = vmatprep.subr.bf16.mxu0 0
  %1156 = vmatpush1.bf16.msra.mxu0 0
  %1157 = vmatprep.subr.bf16.mxu0 0
  %1158 = vmatpush1.bf16.msra.mxu0 0
  %1159 = vmatprep.subr.bf16.mxu0 0
  %1160 = vmatpush1.bf16.msra.mxu0 0
  %1161 = vmatprep.subr.bf16.mxu0 0
  %1162 = vmatpush1.bf16.msra.mxu0 0
  %1163 = vmatprep.subr.bf16.mxu0 0
  %1164 = vmatpush1.bf16.msra.mxu0 0
  %1165 = vmatprep.subr.bf16.mxu0 0
  %1166 = vmatpush1.bf16.msra.mxu0 0
  %1167 = vmatprep.mubr.bf16.mxu0 0
  %1168 = vmatmul.mubr.bf16.gmra.mrb[0].mxu0 %v1130
  %v1169 = vpop.f32.mrb[0].mxu0
  %v1170 = vadd.f32 0.0, %v1169
  %v1171 = vpop.f32.mrb[0].mxu0
  %v1172 = vpop.f32.mrb[0].mxu0
  %v1173 = vpop.f32.mrb[0].mxu0
  %1174 = vdwg.mxu0
  %1175 = vrot.lane.b32.xlu0 %v322, 104
  %v1176 = vpop.permute.xlu0 %1175
  %v1178 = vsel %vm323, %v1126, 0
  %v1181 = vsel %vm445, %v1176, 0
  %1183 = vmatprep.subr.bf16.mxu0 0
  %1184 = vmatpush1.bf16.msra.mxu0 %v1181
  %1185 = vmatprep.subr.bf16.mxu0 0
  %1186 = vmatpush1.bf16.msra.mxu0 0
  %1187 = vmatprep.subr.bf16.mxu0 0
  %1188 = vmatpush1.bf16.msra.mxu0 0
  %1189 = vmatprep.subr.bf16.mxu0 0
  %1190 = vmatpush1.bf16.msra.mxu0 0
  %1191 = vmatprep.subr.bf16.mxu0 0
  %1192 = vmatpush1.bf16.msra.mxu0 0
  %1193 = vmatprep.subr.bf16.mxu0 0
  %1194 = vmatpush1.bf16.msra.mxu0 0
  %1195 = vmatprep.subr.bf16.mxu0 0
  %1196 = vmatpush1.bf16.msra.mxu0 0
  %1197 = vmatprep.subr.bf16.mxu0 0
  %1198 = vmatpush1.bf16.msra.mxu0 0
  %1199 = vmatprep.subr.bf16.mxu0 0
  %1200 = vmatpush1.bf16.msra.mxu0 0
  %1201 = vmatprep.subr.bf16.mxu0 0
  %1202 = vmatpush1.bf16.msra.mxu0 0
  %1203 = vmatprep.subr.bf16.mxu0 0
  %1204 = vmatpush1.bf16.msra.mxu0 0
  %1205 = vmatprep.subr.bf16.mxu0 0
  %1206 = vmatpush1.bf16.msra.mxu0 0
  %1207 = vmatprep.subr.bf16.mxu0 0
  %1208 = vmatpush1.bf16.msra.mxu0 0
  %1209 = vmatprep.subr.bf16.mxu0 0
  %1210 = vmatpush1.bf16.msra.mxu0 0
  %1211 = vmatprep.subr.bf16.mxu0 0
  %1212 = vmatpush1.bf16.msra.mxu0 0
  %1213 = vmatprep.subr.bf16.mxu0 0
  %1214 = vmatpush1.bf16.msra.mxu0 0
  %1215 = vmatprep.mubr.bf16.mxu0 0
  %1216 = vmatmul.mubr.bf16.gmra.mrb[0].mxu0 %v1178
  %v1217 = vpop.f32.mrb[0].mxu0
  %v1218 = vadd.f32 0.0, %v1217
  %v1219 = vpop.f32.mrb[0].mxu0
  %v1220 = vpop.f32.mrb[0].mxu0
  %v1221 = vpop.f32.mrb[0].mxu0
  %1222 = vdwg.mxu0
  %v1223 = vmul.f32 %v1170, %v1123
  %v1224 = vmul.f32 %v1218, %v1124
  %v1225 = vpack.c.bf16 %v1224, %v1223
  %1227 = vrot.lane.b32.xlu0 %v1225, 24
  %v1228 = vpop.permute.xlu0 %1227
  %vm1230 = vcmask 261312
  %1231 = vst.msk [vmem:[#allocation2] sm:$0xff] %vm1230, %v1228
  %v1232 = vld [vmem:[#allocation2] sm:$0xff]
  %v1233 = vld [vmem:[%s9] sm:$0xf]
  %v1234 = vld [vmem:[%s9 + $0x4] sm:$0xf]
  %v1235 = vld [vmem:[%s9 + $0x8] sm:$0xf]
  %v1236 = vld [vmem:[%s9 + $0xc] sm:$0xf]
  %v1241 = vunpack.c.l.b16 %v1233
  %v1242 = vunpack.c.l.b16 %v1234
  %v1243 = vunpack.c.l.b16 %v1235
  %v1244 = vunpack.c.l.b16 %v1236
  %v1245 = vpack.c.b16 %v1242, %v1241
  %v1246 = vpack.c.b16 %v1244, %v1243
  %v1250 = vsel %vm59, %v1232, 0
  %1252 = vmatprep.subr.bf16.mxu0 0
  %1253 = vmatpush1.bf16.msra.mxu0 %v1245
  %1254 = vmatprep.subr.bf16.mxu0 0
  %1255 = vmatpush1.bf16.msra.mxu0 %v1246
  %1256 = vmatprep.subr.bf16.mxu0 0
  %1257 = vmatpush1.bf16.msra.mxu0 0
  %1258 = vmatprep.subr.bf16.mxu0 0
  %1259 = vmatpush1.bf16.msra.mxu0 0
  %1260 = vmatprep.subr.bf16.mxu0 0
  %1261 = vmatpush1.bf16.msra.mxu0 0
  %1262 = vmatprep.subr.bf16.mxu0 0
  %1263 = vmatpush1.bf16.msra.mxu0 0
  %1264 = vmatprep.subr.bf16.mxu0 0
  %1265 = vmatpush1.bf16.msra.mxu0 0
  %1266 = vmatprep.subr.bf16.mxu0 0
  %1267 = vmatpush1.bf16.msra.mxu0 0
  %1268 = vmatprep.subr.bf16.mxu0 0
  %1269 = vmatpush1.bf16.msra.mxu0 0
  %1270 = vmatprep.subr.bf16.mxu0 0
  %1271 = vmatpush1.bf16.msra.mxu0 0
  %1272 = vmatprep.subr.bf16.mxu0 0
  %1273 = vmatpush1.bf16.msra.mxu0 0
  %1274 = vmatprep.subr.bf16.mxu0 0
  %1275 = vmatpush1.bf16.msra.mxu0 0
  %1276 = vmatprep.subr.bf16.mxu0 0
  %1277 = vmatpush1.bf16.msra.mxu0 0
  %1278 = vmatprep.subr.bf16.mxu0 0
  %1279 = vmatpush1.bf16.msra.mxu0 0
  %1280 = vmatprep.subr.bf16.mxu0 0
  %1281 = vmatpush1.bf16.msra.mxu0 0
  %1282 = vmatprep.subr.bf16.mxu0 0
  %1283 = vmatpush1.bf16.msra.mxu0 0
  %1284 = vmatprep.mubr.bf16.mxu0 0
  %1285 = vmatmul.mubr.bf16.gmra.mrb[0].mxu0 %v1250
  %v1286 = vpop.f32.mrb[0].mxu0
  %v1287 = vadd.f32 0.0, %v1286
  %v1288 = vpop.f32.mrb[0].mxu0
  %v1289 = vpop.f32.mrb[0].mxu0
  %v1290 = vadd.f32 0.0, %v1289
  %v1291 = vpop.f32.mrb[0].mxu0
  %1292 = vdwg.mxu0
  %v1293 = vadd.f32 %v57, %v1287
  %v1294 = vadd.f32 %v58, %v1290
  %v1295 = vld [vmem:[%s10] sm:$0x1]
  %v1297 = vlaneseq
  %v1298 = vshrl.u32 %v1297, 7
  %v1299 = vsub.s32 0, %v1298
  %v1300 = vrot.slane %v1295, %v1299
  %v1302 = vadd.f32 %v1293, %v1300
  %v1303 = vadd.f32 %v1294, %v1300
  %v1304 = vsel %vm59, %v1302, 0.0
  %1305 = vadd.xlane.f32.xlu0 %v1304
  %v1306 = vpop.xlane.xlu0 %1305
  %v1307 = vsel %vm59, %v1303, 0.0
  %1308 = vadd.xlane.f32.xlu0 %v1307
  %v1309 = vpop.xlane.xlu0 %1308
  %v1310 = vmul.f32 %v1306, %v66
  %v1311 = vmul.f32 %v1309, %v66
  %v1312 = vsub.f32 %v1302, %v1310
  %v1313 = vsub.f32 %v1303, %v1311
  %v1314 = vmul.f32 %v1312, %v1312
  %v1315 = vmul.f32 %v1313, %v1313
  %v1316 = vsel %vm59, %v1314, 0.0
  %1317 = vadd.xlane.f32.xlu0 %v1316
  %v1318 = vpop.xlane.xlu0 %1317
  %v1319 = vsel %vm59, %v1315, 0.0
  %1320 = vadd.xlane.f32.xlu0 %v1319
  %v1321 = vpop.xlane.xlu0 %1320
  %v1322 = vmul.f32 %v1318, %v66
  %v1323 = vmul.f32 %v1321, %v66
  %v1324 = vadd.f32 %v1322, 1e-05
  %v1325 = vadd.f32 %v1323, 1e-05
  %v1326 = vrsqrt.pop %v1324
  %v1327 = vrsqrt.pop %v1325
  %v1328 = vmul.f32 %v1312, %v1326
  %v1329 = vmul.f32 %v1313, %v1327
  %v1330 = vld [vmem:[%s11] sm:$0x1]
  %v1332 = vlaneseq
  %v1333 = vshrl.u32 %v1332, 7
  %v1334 = vsub.s32 0, %v1333
  %v1335 = vrot.slane %v1330, %v1334
  %v1337 = vmul.f32 %v1328, %v1335
  %v1338 = vmul.f32 %v1329, %v1335
  %v1339 = vld [vmem:[%s12] sm:$0x1]
  %v1341 = vlaneseq
  %v1342 = vshrl.u32 %v1341, 7
  %v1343 = vsub.s32 0, %v1342
  %v1344 = vrot.slane %v1339, %v1343
  %v1346 = vadd.f32 %v1337, %v1344
  %v1347 = vadd.f32 %v1338, %v1344
  %v1348 = vpack.c.bf16 %v1347, %v1346
  %v1349 = vld [vmem:[%s13] sm:$0xf]
  %v1350 = vld [vmem:[%s13 + $0x4] sm:$0xf]
  %v1351 = vld [vmem:[%s13 + $0x8] sm:$0xf]
  %v1352 = vld [vmem:[%s13 + $0xc] sm:$0xf]
  %v1353 = vld [vmem:[%s14] sm:$0x1]
  %v1355 = vlaneseq
  %v1356 = vshrl.u32 %v1355, 7
  %v1357 = vsub.s32 0, %v1356
  %v1358 = vrot.slane %v1353, %v1357
  %v1364 = vunpack.c.l.b16 %v1349
  %v1365 = vunpack.c.l.b16 %v1350
  %v1366 = vunpack.c.l.b16 %v1351
  %v1367 = vunpack.c.l.b16 %v1352
  %v1368 = vpack.c.b16 %v1365, %v1364
  %v1369 = vpack.c.b16 %v1367, %v1366
  %v1373 = vsel %vm59, %v1348, 0
  %1375 = vmatprep.subr.bf16.mxu0 0
  %1376 = vmatpush1.bf16.msra.mxu0 %v1368
  %1377 = vmatprep.subr.bf16.mxu0 0
  %1378 = vmatpush1.bf16.msra.mxu0 %v1369
  %1379 = vmatprep.subr.bf16.mxu0 0
  %1380 = vmatpush1.bf16.msra.mxu0 0
  %1381 = vmatprep.subr.bf16.mxu0 0
  %1382 = vmatpush1.bf16.msra.mxu0 0
  %1383 = vmatprep.subr.bf16.mxu0 0
  %1384 = vmatpush1.bf16.msra.mxu0 0
  %1385 = vmatprep.subr.bf16.mxu0 0
  %1386 = vmatpush1.bf16.msra.mxu0 0
  %1387 = vmatprep.subr.bf16.mxu0 0
  %1388 = vmatpush1.bf16.msra.mxu0 0
  %1389 = vmatprep.subr.bf16.mxu0 0
  %1390 = vmatpush1.bf16.msra.mxu0 0
  %1391 = vmatprep.subr.bf16.mxu0 0
  %1392 = vmatpush1.bf16.msra.mxu0 0
  %1393 = vmatprep.subr.bf16.mxu0 0
  %1394 = vmatpush1.bf16.msra.mxu0 0
  %1395 = vmatprep.subr.bf16.mxu0 0
  %1396 = vmatpush1.bf16.msra.mxu0 0
  %1397 = vmatprep.subr.bf16.mxu0 0
  %1398 = vmatpush1.bf16.msra.mxu0 0
  %1399 = vmatprep.subr.bf16.mxu0 0
  %1400 = vmatpush1.bf16.msra.mxu0 0
  %1401 = vmatprep.subr.bf16.mxu0 0
  %1402 = vmatpush1.bf16.msra.mxu0 0
  %1403 = vmatprep.subr.bf16.mxu0 0
  %1404 = vmatpush1.bf16.msra.mxu0 0
  %1405 = vmatprep.subr.bf16.mxu0 0
  %1406 = vmatpush1.bf16.msra.mxu0 0
  %1407 = vmatprep.mubr.bf16.mxu0 0
  %1408 = vmatmul.mubr.bf16.gmra.mrb[0].mxu0 %v1373
  %v1409 = vpop.f32.mrb[0].mxu0
  %v1410 = vadd.f32 %v1358, %v1409
  %v1411 = vpop.f32.mrb[0].mxu0
  %v1412 = vpop.f32.mrb[0].mxu0
  %v1413 = vadd.f32 %v1358, %v1412
  %v1414 = vpop.f32.mrb[0].mxu0
  %1415 = vdwg.mxu0
  %v1416 = vmul.f32 %v1410, %v1410
  %v1417 = vmul.f32 %v1413, %v1413
  %v1418 = vmul.f32 %v1410, %v1416
  %v1419 = vmul.f32 %v1413, %v1417
  %v1420 = vmul.f32 %v1418, 0.044715
  %v1421 = vmul.f32 %v1419, 0.044715
  %v1422 = vadd.f32 %v1410, %v1420
  %v1423 = vadd.f32 %v1413, %v1421
  %v1424 = vmul.f32 %v1422, 0.7978846
  %v1425 = vmul.f32 %v1423, 0.7978846
  %v1426 = vtanh.pop %v1424
  %v1427 = vtanh.pop %v1425
  %v1428 = vadd.f32 %v1426, 1.0
  %v1429 = vadd.f32 %v1427, 1.0
  %v1430 = vmul.f32 %v1428, 0.5
  %v1431 = vmul.f32 %v1429, 0.5
  %v1432 = vmul.f32 %v1410, %v1430
  %v1433 = vmul.f32 %v1413, %v1431
  %v1434 = vpack.c.bf16 %v1433, %v1432
  %v1435 = vld [vmem:[%s15] sm:$0xf]
  %v1436 = vld [vmem:[%s15 + $0x4] sm:$0xf]
  %v1437 = vld [vmem:[%s15 + $0x8] sm:$0xf]
  %v1438 = vld [vmem:[%s15 + $0xc] sm:$0xf]
  %v1439 = vld [vmem:[%s15 + $0x10] sm:$0xf]
  %v1440 = vld [vmem:[%s15 + $0x14] sm:$0xf]
  %v1441 = vld [vmem:[%s15 + $0x18] sm:$0xf]
  %v1442 = vld [vmem:[%s15 + $0x1c] sm:$0xf]
  %v1443 = vld [vmem:[%s15 + $0x20] sm:$0xf]
  %v1444 = vld [vmem:[%s15 + $0x24] sm:$0xf]
  %v1445 = vld [vmem:[%s15 + $0x28] sm:$0xf]
  %v1446 = vld [vmem:[%s15 + $0x2c] sm:$0xf]
  %v1447 = vld [vmem:[%s15 + $0x30] sm:$0xf]
  %v1448 = vld [vmem:[%s15 + $0x34] sm:$0xf]
  %v1449 = vld [vmem:[%s15 + $0x38] sm:$0xf]
  %v1450 = vld [vmem:[%s15 + $0x3c] sm:$0xf]
  %v1451 = vld [vmem:[%s16] sm:$0x1]
  %v1453 = vlaneseq
  %v1454 = vshrl.u32 %v1453, 7
  %v1455 = vsub.s32 0, %v1454
  %v1456 = vrot.slane %v1451, %v1455
  %v1474 = vunpack.c.l.b16 %v1435
  %v1475 = vunpack.c.l.b16 %v1436
  %v1476 = vunpack.c.l.b16 %v1437
  %v1477 = vunpack.c.l.b16 %v1438
  %v1478 = vunpack.c.l.b16 %v1439
  %v1479 = vunpack.c.l.b16 %v1440
  %v1480 = vunpack.c.l.b16 %v1441
  %v1481 = vunpack.c.l.b16 %v1442
  %v1482 = vunpack.c.l.b16 %v1443
  %v1483 = vunpack.c.l.b16 %v1444
  %v1484 = vunpack.c.l.b16 %v1445
  %v1485 = vunpack.c.l.b16 %v1446
  %v1486 = vunpack.c.l.b16 %v1447
  %v1487 = vunpack.c.l.b16 %v1448
  %v1488 = vunpack.c.l.b16 %v1449
  %v1489 = vunpack.c.l.b16 %v1450
  %v1490 = vpack.c.b16 %v1475, %v1474
  %v1491 = vpack.c.b16 %v1477, %v1476
  %v1492 = vpack.c.b16 %v1479, %v1478
  %v1493 = vpack.c.b16 %v1481, %v1480
  %v1494 = vpack.c.b16 %v1483, %v1482
  %v1495 = vpack.c.b16 %v1485, %v1484
  %v1496 = vpack.c.b16 %v1487, %v1486
  %v1497 = vpack.c.b16 %v1489, %v1488
  %1506 = vmatprep.subr.bf16.mxu0 0
  %1507 = vmatpush1.bf16.msra.mxu0 %v1490
  %1508 = vmatprep.subr.bf16.mxu0 0
  %1509 = vmatpush1.bf16.msra.mxu0 %v1491
  %1510 = vmatprep.subr.bf16.mxu0 0
  %1511 = vmatpush1.bf16.msra.mxu0 %v1492
  %1512 = vmatprep.subr.bf16.mxu0 0
  %1513 = vmatpush1.bf16.msra.mxu0 %v1493
  %1514 = vmatprep.subr.bf16.mxu0 0
  %1515 = vmatpush1.bf16.msra.mxu0 %v1494
  %1516 = vmatprep.subr.bf16.mxu0 0
  %1517 = vmatpush1.bf16.msra.mxu0 %v1495
  %1518 = vmatprep.subr.bf16.mxu0 0
  %1519 = vmatpush1.bf16.msra.mxu0 %v1496
  %1520 = vmatprep.subr.bf16.mxu0 0
  %1521 = vmatpush1.bf16.msra.mxu0 %v1497
  %1522 = vmatprep.subr.bf16.mxu0 0
  %1523 = vmatpush1.bf16.msra.mxu0 0
  %1524 = vmatprep.subr.bf16.mxu0 0
  %1525 = vmatpush1.bf16.msra.mxu0 0
  %1526 = vmatprep.subr.bf16.mxu0 0
  %1527 = vmatpush1.bf16.msra.mxu0 0
  %1528 = vmatprep.subr.bf16.mxu0 0
  %1529 = vmatpush1.bf16.msra.mxu0 0
  %1530 = vmatprep.subr.bf16.mxu0 0
  %1531 = vmatpush1.bf16.msra.mxu0 0
  %1532 = vmatprep.subr.bf16.mxu0 0
  %1533 = vmatpush1.bf16.msra.mxu0 0
  %1534 = vmatprep.subr.bf16.mxu0 0
  %1535 = vmatpush1.bf16.msra.mxu0 0
  %1536 = vmatprep.subr.bf16.mxu0 0
  %1537 = vmatpush1.bf16.msra.mxu0 0
  %1538 = vmatprep.mubr.bf16.mxu0 0
  %1539 = vmatmul.mubr.bf16.gmra.mrb[0].mxu0 %v1434
  %v1540 = vpop.f32.mrb[0].mxu0
  %v1541 = vadd.f32 %v1456, %v1540
  %v1542 = vpop.f32.mrb[0].mxu0
  %v1543 = vpop.f32.mrb[0].mxu0
  %v1544 = vadd.f32 %v1456, %v1543
  %v1545 = vpop.f32.mrb[0].mxu0
  %1546 = vdwg.mxu0
  %v1547 = vadd.f32 %v1302, %v1541
  %v1548 = vadd.f32 %v1303, %v1544
  %1549 = vst.msk [vmem:[%s17] sm:$0xff] %vm59, %v1547
  %1550 = vst.msk [vmem:[%s17 + $0x8] sm:$0xff] %vm59, %v1548
  // Predicated region
  $region70: #{_lambda_.11} parent=0 // pred_check
    _
  $region71: #{_lambda_.11} parent=0 // pred_check_branch
    %1552 = sbr.rel (0) target = $region73
  $region72: #{_lambda_.11} parent=0 // pred_region
    _
  $region73: #{_lambda_.11} parent=0 // pred_fallthru
    _
  // Predicated region
  $region74: #{_lambda_.11} parent=0 // pred_check
    _
  $region75: #{_lambda_.11} parent=0 // pred_check_branch
    %1554 = sbr.rel (0) target = $region77
  $region76: #{_lambda_.11} parent=0 // pred_region
    _
  $region77: #{_lambda_.11} parent=0 // pred_fallthru
    _

// kernel: _lambda_.9
$region0: #{_lambda_.9}
  #allocation0 [shape = 'u32[]', space=smem, size = 0x4, offset = 0x4, fixed_abs, tag = 'smem constant byte address 0x4 - core index']
  #allocation1 [shape = 'u32[144,128]{1,0:T(1,128)}', space=vmem, size = 0x12000, scoped, tag = 'internal scratch']
  #allocation2 [shape = 'bf16[32,32]{1,0:T(16,128)(2,1)}', space=vmem, size = 0x2000, scoped, tag = 'scratch operand']
  %s0 = inlined_call_operand.vmem [shape: f32[4,8,32], index: 0, kind: input, shape index: {}]
  %s1 = inlined_call_operand.vmem [shape: f32[1,32], index: 1, kind: input, shape index: {}, may-alias: {1,11}]
  %s2 = inlined_call_operand.vmem [shape: f32[1,32], index: 2, kind: input, shape index: {}, may-alias: {2,6,7,8,10,12,16}]
  %s3 = inlined_call_operand.vmem [shape: bf16[32,32], index: 3, kind: input, shape index: {}]
  %s4 = inlined_call_operand.vmem [shape: bf16[32,32], index: 4, kind: input, shape index: {}]
  %s5 = inlined_call_operand.vmem [shape: bf16[32,32], index: 5, kind: input, shape index: {}]
  %s6 = inlined_call_operand.vmem [shape: f32[1,32], index: 6, kind: input, shape index: {}, may-alias: {2,6,7,8,10,12,16}]
  %s7 = inlined_call_operand.vmem [shape: f32[1,32], index: 7, kind: input, shape index: {}, may-alias: {2,6,7,8,10,12,16}]
  %s8 = inlined_call_operand.vmem [shape: f32[1,32], index: 8, kind: input, shape index: {}, may-alias: {2,6,7,8,10,12,16}]
  %s9 = inlined_call_operand.vmem [shape: bf16[32,32], index: 9, kind: input, shape index: {}]
  %s10 = inlined_call_operand.vmem [shape: f32[1,32], index: 10, kind: input, shape index: {}, may-alias: {2,6,7,8,10,12,16}]
  %s11 = inlined_call_operand.vmem [shape: f32[1,32], index: 11, kind: input, shape index: {}, may-alias: {1,11}]
  %s12 = inlined_call_operand.vmem [shape: f32[1,32], index: 12, kind: input, shape index: {}, may-alias: {2,6,7,8,10,12,16}]
  %s13 = inlined_call_operand.vmem [shape: bf16[32,128], index: 13, kind: input, shape index: {}]
  %s14 = inlined_call_operand.vmem [shape: f32[1,128], index: 14, kind: input, shape index: {}]
  %s15 = inlined_call_operand.vmem [shape: bf16[128,32], index: 15, kind: input, shape index: {}]
  %s16 = inlined_call_operand.vmem [shape: f32[1,32], index: 16, kind: input, shape index: {}, may-alias: {2,6,7,8,10,12,16}]
  %s17 = inlined_call_operand.vmem [shape: f32[4,8,32], index: 17, kind: output, shape index: {}]
  %s18 = sld [smem:[#allocation0]]
  $region78: #{_lambda_.9} parent=0
    _
  %s20 = ssub.s32 1, %s18
  %s21 = scalar_select 0, %s20, %s18
  // Predicated region
  $region2: #{_lambda_.9} parent=0 // pred_check
    _
  $region3: #{_lambda_.9} parent=0 // pred_check_branch
    %23 = sbr.rel (0) target = $region5
  $region4: #{_lambda_.9} parent=0 // pred_region
    _
  $region5: #{_lambda_.9} parent=0 // pred_fallthru
    _
  // Predicated region
  $region6: #{_lambda_.9} parent=0 // pred_check
    _
  $region7: #{_lambda_.9} parent=0 // pred_check_branch
    %25 = sbr.rel (0) target = $region9
  $region8: #{_lambda_.9} parent=0 // pred_region
    _
  $region9: #{_lambda_.9} parent=0 // pred_fallthru
    _
  // Predicated region
  $region10: #{_lambda_.9} parent=0 // pred_check
    _
  $region11: #{_lambda_.9} parent=0 // pred_check_branch
    %27 = sbr.rel (0) target = $region13
  $region12: #{_lambda_.9} parent=0 // pred_region
    _
  $region13: #{_lambda_.9} parent=0 // pred_fallthru
    _
  // Predicated region
  $region14: #{_lambda_.9} parent=0 // pred_check
    _
  $region15: #{_lambda_.9} parent=0 // pred_check_branch
    %29 = sbr.rel (0) target = $region17
  $region16: #{_lambda_.9} parent=0 // pred_region
    _
  $region17: #{_lambda_.9} parent=0 // pred_fallthru
    _
  // Predicated region
  $region18: #{_lambda_.9} parent=0 // pred_check
    _
  $region19: #{_lambda_.9} parent=0 // pred_check_branch
    %31 = sbr.rel (0) target = $region21
  $region20: #{_lambda_.9} parent=0 // pred_region
    _
  $region21: #{_lambda_.9} parent=0 // pred_fallthru
    _
  // Predicated region
  $region22: #{_lambda_.9} parent=0 // pred_check
    _
  $region23: #{_lambda_.9} parent=0 // pred_check_branch
    %33 = sbr.rel (0) target = $region25
  $region24: #{_lambda_.9} parent=0 // pred_region
    _
  $region25: #{_lambda_.9} parent=0 // pred_fallthru
    _
  // Predicated region
  $region26: #{_lambda_.9} parent=0 // pred_check
    _
  $region27: #{_lambda_.9} parent=0 // pred_check_branch
    %35 = sbr.rel (0) target = $region29
  $region28: #{_lambda_.9} parent=0 // pred_region
    _
  $region29: #{_lambda_.9} parent=0 // pred_fallthru
    _
  // Predicated region
  $region30: #{_lambda_.9} parent=0 // pred_check
    _
  $region31: #{_lambda_.9} parent=0 // pred_check_branch
    %37 = sbr.rel (0) target = $region33
  $region32: #{_lambda_.9} parent=0 // pred_region
    _
  $region33: #{_lambda_.9} parent=0 // pred_fallthru
    _
  // Predicated region
  $region34: #{_lambda_.9} parent=0 // pred_check
    _
  $region35: #{_lambda_.9} parent=0 // pred_check_branch
    %39 = sbr.rel (0) target = $region37
  $region36: #{_lambda_.9} parent=0 // pred_region
    _
  $region37: #{_lambda_.9} parent=0 // pred_fallthru
    _
  // Predicated region
  $region38: #{_lambda_.9} parent=0 // pred_check
    _
  $region39: #{_lambda_.9} parent=0 // pred_check_branch
    %41 = sbr.rel (0) target = $region41
  $region40: #{_lambda_.9} parent=0 // pred_region
    _
  $region41: #{_lambda_.9} parent=0 // pred_fallthru
    _
  // Predicated region
  $region42: #{_lambda_.9} parent=0 // pred_check
    _
  $region43: #{_lambda_.9} parent=0 // pred_check_branch
    %43 = sbr.rel (0) target = $region45
  $region44: #{_lambda_.9} parent=0 // pred_region
    _
  $region45: #{_lambda_.9} parent=0 // pred_fallthru
    _
  // Predicated region
  $region46: #{_lambda_.9} parent=0 // pred_check
    _
  $region47: #{_lambda_.9} parent=0 // pred_check_branch
    %45 = sbr.rel (0) target = $region49
  $region48: #{_lambda_.9} parent=0 // pred_region
    _
  $region49: #{_lambda_.9} parent=0 // pred_fallthru
    _
  // Predicated region
  $region50: #{_lambda_.9} parent=0 // pred_check
    _
  $region51: #{_lambda_.9} parent=0 // pred_check_branch
    %47 = sbr.rel (0) target = $region53
  $region52: #{_lambda_.9} parent=0 // pred_region
    _
  $region53: #{_lambda_.9} parent=0 // pred_fallthru
    _
  // Predicated region
  $region54: #{_lambda_.9} parent=0 // pred_check
    _
  $region55: #{_lambda_.9} parent=0 // pred_check_branch
    %49 = sbr.rel (0) target = $region57
  $region56: #{_lambda_.9} parent=0 // pred_region
    _
  $region57: #{_lambda_.9} parent=0 // pred_fallthru
    _
  // Predicated region
  $region58: #{_lambda_.9} parent=0 // pred_check
    _
  $region59: #{_lambda_.9} parent=0 // pred_check_branch
    %51 = sbr.rel (0) target = $region61
  $region60: #{_lambda_.9} parent=0 // pred_region
    _
  $region61: #{_lambda_.9} parent=0 // pred_fallthru
    _
  // Predicated region
  $region62: #{_lambda_.9} parent=0 // pred_check
    _
  $region63: #{_lambda_.9} parent=0 // pred_check_branch
    %53 = sbr.rel (0) target = $region65
  $region64: #{_lambda_.9} parent=0 // pred_region
    _
  $region65: #{_lambda_.9} parent=0 // pred_fallthru
    _
  // Predicated region
  $region66: #{_lambda_.9} parent=0 // pred_check
    _
  $region67: #{_lambda_.9} parent=0 // pred_check_branch
    %55 = sbr.rel (0) target = $region69
  $region68: #{_lambda_.9} parent=0 // pred_region
    _
  $region69: #{_lambda_.9} parent=0 // pred_fallthru
    _
  %v57 = vld [vmem:[%s0] sm:$0xff]
  %v58 = vld [vmem:[%s0 + $0x8] sm:$0xff]
  %v59 = vld [vmem:[%s0 + $0x10] sm:$0xff]
  %v60 = vld [vmem:[%s0 + $0x18] sm:$0xff]
  %vm61 = vcmask 261120
  %v62 = vsel %vm61, %v57, 0.0
  %63 = vadd.xlane.f32.xlu0 %v62
  %v64 = vpop.xlane.xlu0 %63
  %v65 = vsel %vm61, %v58, 0.0
  %66 = vadd.xlane.f32.xlu0 %v65
  %v67 = vpop.xlane.xlu0 %66
  %v68 = vsel %vm61, %v59, 0.0
  %69 = vadd.xlane.f32.xlu0 %v68
  %v70 = vpop.xlane.xlu0 %69
  %v71 = vsel %vm61, %v60, 0.0
  %72 = vadd.xlane.f32.xlu0 %v71
  %v73 = vpop.xlane.xlu0 %72
  %v74 = vrcp.pop 32.0
  %v75 = vmul.f32 %v64, %v74
  %v76 = vmul.f32 %v67, %v74
  %v77 = vmul.f32 %v70, %v74
  %v78 = vmul.f32 %v73, %v74
  %v79 = vsub.f32 %v57, %v75
  %v80 = vsub.f32 %v58, %v76
  %v81 = vsub.f32 %v59, %v77
  %v82 = vsub.f32 %v60, %v78
  %v83 = vmul.f32 %v79, %v79
  %v84 = vmul.f32 %v80, %v80
  %v85 = vmul.f32 %v81, %v81
  %v86 = vmul.f32 %v82, %v82
  %v87 = vsel %vm61, %v83, 0.0
  %88 = vadd.xlane.f32.xlu0 %v87
  %v89 = vpop.xlane.xlu0 %88
  %v90 = vsel %vm61, %v84, 0.0
  %91 = vadd.xlane.f32.xlu0 %v90
  %v92 = vpop.xlane.xlu0 %91
  %v93 = vsel %vm61, %v85, 0.0
  %94 = vadd.xlane.f32.xlu0 %v93
  %v95 = vpop.xlane.xlu0 %94
  %v96 = vsel %vm61, %v86, 0.0
  %97 = vadd.xlane.f32.xlu0 %v96
  %v98 = vpop.xlane.xlu0 %97
  %v99 = vmul.f32 %v89, %v74
  %v100 = vmul.f32 %v92, %v74
  %v101 = vmul.f32 %v95, %v74
  %v102 = vmul.f32 %v98, %v74
  %v103 = vadd.f32 %v99, 1e-05
  %v104 = vadd.f32 %v100, 1e-05
  %v105 = vadd.f32 %v101, 1e-05
  %v106 = vadd.f32 %v102, 1e-05
  %v107 = vrsqrt.pop %v103
  %v108 = vrsqrt.pop %v104
  %v109 = vrsqrt.pop %v105
  %v110 = vrsqrt.pop %v106
  %v111 = vmul.f32 %v79, %v107
  %v112 = vmul.f32 %v80, %v108
  %v113 = vmul.f32 %v81, %v109
  %v114 = vmul.f32 %v82, %v110
  %v115 = vld [vmem:[%s1] sm:$0x1]
  %v117 = vlaneseq
  %v118 = vshrl.u32 %v117, 7
  %v119 = vsub.s32 0, %v118
  %v120 = vrot.slane %v115, %v119
  %v122 = vmul.f32 %v111, %v120
  %v123 = vmul.f32 %v112, %v120
  %v124 = vmul.f32 %v113, %v120
  %v125 = vmul.f32 %v114, %v120
  %v126 = vld [vmem:[%s2] sm:$0x1]
  %v128 = vlaneseq
  %v129 = vshrl.u32 %v128, 7
  %v130 = vsub.s32 0, %v129
  %v131 = vrot.slane %v126, %v130
  %v133 = vadd.f32 %v122, %v131
  %v134 = vadd.f32 %v123, %v131
  %v135 = vadd.f32 %v124, %v131
  %v136 = vadd.f32 %v125, %v131
  %v137 = vpack.c.bf16 %v134, %v133
  %v138 = vpack.c.bf16 %v136, %v135
  %v139 = vld [vmem:[%s3] sm:$0xf]
  %v140 = vld [vmem:[%s3 + $0x4] sm:$0xf]
  %v141 = vld [vmem:[%s3 + $0x8] sm:$0xf]
  %v142 = vld [vmem:[%s3 + $0xc] sm:$0xf]
  %v143 = vld [vmem:[%s6] sm:$0x1]
  %v145 = vlaneseq
  %v146 = vshrl.u32 %v145, 7
  %v147 = vsub.s32 0, %v146
  %v148 = vrot.slane %v143, %v147
  %v154 = vunpack.c.l.b16 %v139
  %v155 = vunpack.c.l.b16 %v140
  %v156 = vunpack.c.l.b16 %v141
  %v157 = vunpack.c.l.b16 %v142
  %v158 = vpack.c.b16 %v155, %v154
  %v159 = vpack.c.b16 %v157, %v156
  %v163 = vsel %vm61, %v137, 0
  %v166 = vsel %vm61, %v138, 0
  %168 = vmatprep.subr.bf16.mxu0 0
  %169 = vmatpush1.bf16.msra.mxu0 %v158
  %170 = vmatprep.subr.bf16.mxu0 0
  %171 = vmatpush1.bf16.msra.mxu0 %v159
  %172 = vmatprep.subr.bf16.mxu0 0
  %173 = vmatpush1.bf16.msra.mxu0 0
  %174 = vmatprep.subr.bf16.mxu0 0
  %175 = vmatpush1.bf16.msra.mxu0 0
  %176 = vmatprep.subr.bf16.mxu0 0
  %177 = vmatpush1.bf16.msra.mxu0 0
  %178 = vmatprep.subr.bf16.mxu0 0
  %179 = vmatpush1.bf16.msra.mxu0 0
  %180 = vmatprep.subr.bf16.mxu0 0
  %181 = vmatpush1.bf16.msra.mxu0 0
  %182 = vmatprep.subr.bf16.mxu0 0
  %183 = vmatpush1.bf16.msra.mxu0 0
  %184 = vmatprep.subr.bf16.mxu0 0
  %185 = vmatpush1.bf16.msra.mxu0 0
  %186 = vmatprep.subr.bf16.mxu0 0
  %187 = vmatpush1.bf16.msra.mxu0 0
  %188 = vmatprep.subr.bf16.mxu0 0
  %189 = vmatpush1.bf16.msra.mxu0 0
  %190 = vmatprep.subr.bf16.mxu0 0
  %191 = vmatpush1.bf16.msra.mxu0 0
  %192 = vmatprep.subr.bf16.mxu0 0
  %193 = vmatpush1.bf16.msra.mxu0 0
  %194 = vmatprep.subr.bf16.mxu0 0
  %195 = vmatpush1.bf16.msra.mxu0 0
  %196 = vmatprep.subr.bf16.mxu0 0
  %197 = vmatpush1.bf16.msra.mxu0 0
  %198 = vmatprep.subr.bf16.mxu0 0
  %199 = vmatpush1.bf16.msra.mxu0 0
  %200 = vmatprep.mubr.bf16.mxu0 0
  %201 = vmatmul.mubr.bf16.gmra.mrb[0].mxu0 %v163
  %v202 = vpop.f32.mrb[0].mxu0
  %v203 = vadd.f32 %v148, %v202
  %v204 = vpop.f32.mrb[0].mxu0
  %v205 = vpop.f32.mrb[0].mxu0
  %v206 = vadd.f32 %v148, %v205
  %v207 = vpop.f32.mrb[0].mxu0
  %208 = vmatprep.mubr.bf16.mxu0 0
  %209 = vmatmul.mubr.bf16.gmra.mrb[0].mxu0 %v166
  %v210 = vpop.f32.mrb[0].mxu0
  %v211 = vadd.f32 %v148, %v210
  %v212 = vpop.f32.mrb[0].mxu0
  %v213 = vpop.f32.mrb[0].mxu0
  %v214 = vadd.f32 %v148, %v213
  %v215 = vpop.f32.mrb[0].mxu0
  %216 = vdwg.mxu0
  %v217 = vpack.c.bf16 %v206, %v203
  %v218 = vpack.c.bf16 %v214, %v211
  %v219 = vld [vmem:[%s4] sm:$0xf]
  %v220 = vld [vmem:[%s4 + $0x4] sm:$0xf]
  %v221 = vld [vmem:[%s4 + $0x8] sm:$0xf]
  %v222 = vld [vmem:[%s4 + $0xc] sm:$0xf]
  %v223 = vld [vmem:[%s7] sm:$0x1]
  %v225 = vlaneseq
  %v226 = vshrl.u32 %v225, 7
  %v227 = vsub.s32 0, %v226
  %v228 = vrot.slane %v223, %v227
  %v234 = vunpack.c.l.b16 %v219
  %v235 = vunpack.c.l.b16 %v220
  %v236 = vunpack.c.l.b16 %v221
  %v237 = vunpack.c.l.b16 %v222
  %v238 = vpack.c.b16 %v235, %v234
  %v239 = vpack.c.b16 %v237, %v236
  %242 = vmatprep.subr.bf16.mxu0 0
  %243 = vmatpush1.bf16.msra.mxu0 %v238
  %244 = vmatprep.subr.bf16.mxu0 0
  %245 = vmatpush1.bf16.msra.mxu0 %v239
  %246 = vmatprep.subr.bf16.mxu0 0
  %247 = vmatpush1.bf16.msra.mxu0 0
  %248 = vmatprep.subr.bf16.mxu0 0
  %249 = vmatpush1.bf16.msra.mxu0 0
  %250 = vmatprep.subr.bf16.mxu0 0
  %251 = vmatpush1.bf16.msra.mxu0 0
  %252 = vmatprep.subr.bf16.mxu0 0
  %253 = vmatpush1.bf16.msra.mxu0 0
  %254 = vmatprep.subr.bf16.mxu0 0
  %255 = vmatpush1.bf16.msra.mxu0 0
  %256 = vmatprep.subr.bf16.mxu0 0
  %257 = vmatpush1.bf16.msra.mxu0 0
  %258 = vmatprep.subr.bf16.mxu0 0
  %259 = vmatpush1.bf16.msra.mxu0 0
  %260 = vmatprep.subr.bf16.mxu0 0
  %261 = vmatpush1.bf16.msra.mxu0 0
  %262 = vmatprep.subr.bf16.mxu0 0
  %263 = vmatpush1.bf16.msra.mxu0 0
  %264 = vmatprep.subr.bf16.mxu0 0
  %265 = vmatpush1.bf16.msra.mxu0 0
  %266 = vmatprep.subr.bf16.mxu0 0
  %267 = vmatpush1.bf16.msra.mxu0 0
  %268 = vmatprep.subr.bf16.mxu0 0
  %269 = vmatpush1.bf16.msra.mxu0 0
  %270 = vmatprep.subr.bf16.mxu0 0
  %271 = vmatpush1.bf16.msra.mxu0 0
  %272 = vmatprep.subr.bf16.mxu0 0
  %273 = vmatpush1.bf16.msra.mxu0 0
  %274 = vmatprep.mubr.bf16.mxu0 0
  %275 = vmatmul.mubr.bf16.gmra.mrb[0].mxu0 %v163
  %v276 = vpop.f32.mrb[0].mxu0
  %v277 = vadd.f32 %v228, %v276
  %v278 = vpop.f32.mrb[0].mxu0
  %v279 = vpop.f32.mrb[0].mxu0
  %v280 = vadd.f32 %v228, %v279
  %v281 = vpop.f32.mrb[0].mxu0
  %282 = vmatprep.mubr.bf16.mxu0 0
  %283 = vmatmul.mubr.bf16.gmra.mrb[0].mxu0 %v166
  %v284 = vpop.f32.mrb[0].mxu0
  %v285 = vadd.f32 %v228, %v284
  %v286 = vpop.f32.mrb[0].mxu0
  %v287 = vpop.f32.mrb[0].mxu0
  %v288 = vadd.f32 %v228, %v287
  %v289 = vpop.f32.mrb[0].mxu0
  %290 = vdwg.mxu0
  %v291 = vpack.c.bf16 %v280, %v277
  %v292 = vpack.c.bf16 %v288, %v285
  %v293 = vld [vmem:[%s5] sm:$0xf]
  %v294 = vld [vmem:[%s5 + $0x4] sm:$0xf]
  %v295 = vld [vmem:[%s5 + $0x8] sm:$0xf]
  %v296 = vld [vmem:[%s5 + $0xc] sm:$0xf]
  %v297 = vld [vmem:[%s8] sm:$0x1]
  %v299 = vlaneseq
  %v300 = vshrl.u32 %v299, 7
  %v301 = vsub.s32 0, %v300
  %v302 = vrot.slane %v297, %v301
  %v308 = vunpack.c.l.b16 %v293
  %v309 = vunpack.c.l.b16 %v294
  %v310 = vunpack.c.l.b16 %v295
  %v311 = vunpack.c.l.b16 %v296
  %v312 = vpack.c.b16 %v309, %v308
  %v313 = vpack.c.b16 %v311, %v310
  %316 = vmatprep.subr.bf16.mxu0 0
  %317 = vmatpush1.bf16.msra.mxu0 %v312
  %318 = vmatprep.subr.bf16.mxu0 0
  %319 = vmatpush1.bf16.msra.mxu0 %v313
  %320 = vmatprep.subr.bf16.mxu0 0
  %321 = vmatpush1.bf16.msra.mxu0 0
  %322 = vmatprep.subr.bf16.mxu0 0
  %323 = vmatpush1.bf16.msra.mxu0 0
  %324 = vmatprep.subr.bf16.mxu0 0
  %325 = vmatpush1.bf16.msra.mxu0 0
  %326 = vmatprep.subr.bf16.mxu0 0
  %327 = vmatpush1.bf16.msra.mxu0 0
  %328 = vmatprep.subr.bf16.mxu0 0
  %329 = vmatpush1.bf16.msra.mxu0 0
  %330 = vmatprep.subr.bf16.mxu0 0
  %331 = vmatpush1.bf16.msra.mxu0 0
  %332 = vmatprep.subr.bf16.mxu0 0
  %333 = vmatpush1.bf16.msra.mxu0 0
  %334 = vmatprep.subr.bf16.mxu0 0
  %335 = vmatpush1.bf16.msra.mxu0 0
  %336 = vmatprep.subr.bf16.mxu0 0
  %337 = vmatpush1.bf16.msra.mxu0 0
  %338 = vmatprep.subr.bf16.mxu0 0
  %339 = vmatpush1.bf16.msra.mxu0 0
  %340 = vmatprep.subr.bf16.mxu0 0
  %341 = vmatpush1.bf16.msra.mxu0 0
  %342 = vmatprep.subr.bf16.mxu0 0
  %343 = vmatpush1.bf16.msra.mxu0 0
  %344 = vmatprep.subr.bf16.mxu0 0
  %345 = vmatpush1.bf16.msra.mxu0 0
  %346 = vmatprep.subr.bf16.mxu0 0
  %347 = vmatpush1.bf16.msra.mxu0 0
  %348 = vmatprep.mubr.bf16.mxu0 0
  %349 = vmatmul.mubr.bf16.gmra.mrb[0].mxu0 %v163
  %v350 = vpop.f32.mrb[0].mxu0
  %v351 = vadd.f32 %v302, %v350
  %v352 = vpop.f32.mrb[0].mxu0
  %v353 = vpop.f32.mrb[0].mxu0
  %v354 = vadd.f32 %v302, %v353
  %v355 = vpop.f32.mrb[0].mxu0
  %356 = vmatprep.mubr.bf16.mxu0 0
  %357 = vmatmul.mubr.bf16.gmra.mrb[0].mxu0 %v166
  %v358 = vpop.f32.mrb[0].mxu0
  %v359 = vadd.f32 %v302, %v358
  %v360 = vpop.f32.mrb[0].mxu0
  %v361 = vpop.f32.mrb[0].mxu0
  %v362 = vadd.f32 %v302, %v361
  %v363 = vpop.f32.mrb[0].mxu0
  %364 = vdwg.mxu0
  %v365 = vpack.c.bf16 %v354, %v351
  %v366 = vpack.c.bf16 %v362, %v359
  %v367 = vlaneseq
  %v368 = vand.u32 %v367, 127
  %vm369 = vcmp.lt.s32.totalorder %v368, 5
  %v370 = vsel %vm369, 0.0, -1e+30
  %v373 = vunpack.c.l.b16 %v217
  %v374 = vunpack.c.h.b16 %v217
  %v375 = vunpack.c.l.b16 %v218
  %v376 = vunpack.c.h.b16 %v218
  %v377 = vpack.c.b16 %v373, %v373
  %v378 = vpack.c.b16 %v374, %v374
  %v379 = vpack.c.b16 %v375, %v375
  %v380 = vpack.c.b16 %v376, %v376
  %v383 = vunpack.c.l.b16 %v291
  %v384 = vunpack.c.h.b16 %v291
  %v385 = vunpack.c.l.b16 %v292
  %v386 = vunpack.c.h.b16 %v292
  %v387 = vpack.c.b16 %v383, %v383
  %v388 = vpack.c.b16 %v384, %v384
  %v389 = vpack.c.b16 %v385, %v385
  %v390 = vpack.c.b16 %v386, %v386
  %v393 = vunpack.c.l.b16 %v365
  %v394 = vunpack.c.h.b16 %v365
  %v395 = vunpack.c.l.b16 %v366
  %v396 = vunpack.c.h.b16 %v366
  %v397 = vpack.c.b16 %v393, %v393
  %v398 = vpack.c.b16 %v394, %v394
  %v399 = vpack.c.b16 %v395, %v395
  %v400 = vpack.c.b16 %v396, %v396
  %vm401 = vcmask 64512
  %v403 = vsel %vm401, %v377, 0
  %v406 = vsel %vm401, %v387, 0
  %408 = vmatprep.subr.bf16.mxu0 0
  %409 = vmatpush1.bf16.xpose.msra.mxu0 %v406
  %410 = vmatprep.subr.bf16.mxu0 0
  %411 = vmatpush1.bf16.xpose.msra.mxu0 0
  %412 = vmatprep.subr.bf16.mxu0 0
  %413 = vmatpush1.bf16.xpose.msra.mxu0 0
  %414 = vmatprep.subr.bf16.mxu0 0
  %415 = vmatpush1.bf16.xpose.msra.mxu0 0
  %416 = vmatprep.subr.bf16.mxu0 0
  %417 = vmatpush1.bf16.xpose.msra.mxu0 0
  %418 = vmatprep.subr.bf16.mxu0 0
  %419 = vmatpush1.bf16.xpose.msra.mxu0 0
  %420 = vmatprep.subr.bf16.mxu0 0
  %421 = vmatpush1.bf16.xpose.msra.mxu0 0
  %422 = vmatprep.subr.bf16.mxu0 0
  %423 = vmatpush1.bf16.xpose.msra.mxu0 0
  %424 = vmatprep.subr.bf16.mxu0 0
  %425 = vmatpush1.bf16.xpose.msra.mxu0 0
  %426 = vmatprep.subr.bf16.mxu0 0
  %427 = vmatpush1.bf16.xpose.msra.mxu0 0
  %428 = vmatprep.subr.bf16.mxu0 0
  %429 = vmatpush1.bf16.xpose.msra.mxu0 0
  %430 = vmatprep.subr.bf16.mxu0 0
  %431 = vmatpush1.bf16.xpose.msra.mxu0 0
  %432 = vmatprep.subr.bf16.mxu0 0
  %433 = vmatpush1.bf16.xpose.msra.mxu0 0
  %434 = vmatprep.subr.bf16.mxu0 0
  %435 = vmatpush1.bf16.xpose.msra.mxu0 0
  %436 = vmatprep.subr.bf16.mxu0 0
  %437 = vmatpush1.bf16.xpose.msra.mxu0 0
  %438 = vmatprep.subr.bf16.mxu0 0
  %439 = vmatpush1.bf16.xpose.msra.mxu0 0
  %440 = vmatprep.mubr.bf16.mxu0 0
  %441 = vmatmul.mubr.bf16.gmra.mrb[0].mxu0 %v403
  %v442 = vpop.f32.mrb[0].mxu0
  %v443 = vadd.f32 0.0, %v442
  %v444 = vpop.f32.mrb[0].mxu0
  %v445 = vpop.f32.mrb[0].mxu0
  %v446 = vpop.f32.mrb[0].mxu0
  %447 = vdwg.mxu0
  %v449 = vsel %vm401, %v378, 0
  %v452 = vsel %vm401, %v388, 0
  %454 = vmatprep.subr.bf16.mxu0 0
  %455 = vmatpush1.bf16.xpose.msra.mxu0 %v452
  %456 = vmatprep.subr.bf16.mxu0 0
  %457 = vmatpush1.bf16.xpose.msra.mxu0 0
  %458 = vmatprep.subr.bf16.mxu0 0
  %459 = vmatpush1.bf16.xpose.msra.mxu0 0
  %460 = vmatprep.subr.bf16.mxu0 0
  %461 = vmatpush1.bf16.xpose.msra.mxu0 0
  %462 = vmatprep.subr.bf16.mxu0 0
  %463 = vmatpush1.bf16.xpose.msra.mxu0 0
  %464 = vmatprep.subr.bf16.mxu0 0
  %465 = vmatpush1.bf16.xpose.msra.mxu0 0
  %466 = vmatprep.subr.bf16.mxu0 0
  %467 = vmatpush1.bf16.xpose.msra.mxu0 0
  %468 = vmatprep.subr.bf16.mxu0 0
  %469 = vmatpush1.bf16.xpose.msra.mxu0 0
  %470 = vmatprep.subr.bf16.mxu0 0
  %471 = vmatpush1.bf16.xpose.msra.mxu0 0
  %472 = vmatprep.subr.bf16.mxu0 0
  %473 = vmatpush1.bf16.xpose.msra.mxu0 0
  %474 = vmatprep.subr.bf16.mxu0 0
  %475 = vmatpush1.bf16.xpose.msra.mxu0 0
  %476 = vmatprep.subr.bf16.mxu0 0
  %477 = vmatpush1.bf16.xpose.msra.mxu0 0
  %478 = vmatprep.subr.bf16.mxu0 0
  %479 = vmatpush1.bf16.xpose.msra.mxu0 0
  %480 = vmatprep.subr.bf16.mxu0 0
  %481 = vmatpush1.bf16.xpose.msra.mxu0 0
  %482 = vmatprep.subr.bf16.mxu0 0
  %483 = vmatpush1.bf16.xpose.msra.mxu0 0
  %484 = vmatprep.subr.bf16.mxu0 0
  %485 = vmatpush1.bf16.xpose.msra.mxu0 0
  %486 = vmatprep.mubr.bf16.mxu0 0
  %487 = vmatmul.mubr.bf16.gmra.mrb[0].mxu0 %v449
  %v488 = vpop.f32.mrb[0].mxu0
  %v489 = vadd.f32 0.0, %v488
  %v490 = vpop.f32.mrb[0].mxu0
  %v491 = vpop.f32.mrb[0].mxu0
  %v492 = vpop.f32.mrb[0].mxu0
  %493 = vdwg.mxu0
  %v495 = vsel %vm401, %v379, 0
  %v498 = vsel %vm401, %v389, 0
  %500 = vmatprep.subr.bf16.mxu0 0
  %501 = vmatpush1.bf16.xpose.msra.mxu0 %v498
  %502 = vmatprep.subr.bf16.mxu0 0
  %503 = vmatpush1.bf16.xpose.msra.mxu0 0
  %504 = vmatprep.subr.bf16.mxu0 0
  %505 = vmatpush1.bf16.xpose.msra.mxu0 0
  %506 = vmatprep.subr.bf16.mxu0 0
  %507 = vmatpush1.bf16.xpose.msra.mxu0 0
  %508 = vmatprep.subr.bf16.mxu0 0
  %509 = vmatpush1.bf16.xpose.msra.mxu0 0
  %510 = vmatprep.subr.bf16.mxu0 0
  %511 = vmatpush1.bf16.xpose.msra.mxu0 0
  %512 = vmatprep.subr.bf16.mxu0 0
  %513 = vmatpush1.bf16.xpose.msra.mxu0 0
  %514 = vmatprep.subr.bf16.mxu0 0
  %515 = vmatpush1.bf16.xpose.msra.mxu0 0
  %516 = vmatprep.subr.bf16.mxu0 0
  %517 = vmatpush1.bf16.xpose.msra.mxu0 0
  %518 = vmatprep.subr.bf16.mxu0 0
  %519 = vmatpush1.bf16.xpose.msra.mxu0 0
  %520 = vmatprep.subr.bf16.mxu0 0
  %521 = vmatpush1.bf16.xpose.msra.mxu0 0
  %522 = vmatprep.subr.bf16.mxu0 0
  %523 = vmatpush1.bf16.xpose.msra.mxu0 0
  %524 = vmatprep.subr.bf16.mxu0 0
  %525 = vmatpush1.bf16.xpose.msra.mxu0 0
  %526 = vmatprep.subr.bf16.mxu0 0
  %527 = vmatpush1.bf16.xpose.msra.mxu0 0
  %528 = vmatprep.subr.bf16.mxu0 0
  %529 = vmatpush1.bf16.xpose.msra.mxu0 0
  %530 = vmatprep.subr.bf16.mxu0 0
  %531 = vmatpush1.bf16.xpose.msra.mxu0 0
  %532 = vmatprep.mubr.bf16.mxu0 0
  %533 = vmatmul.mubr.bf16.gmra.mrb[0].mxu0 %v495
  %v534 = vpop.f32.mrb[0].mxu0
  %v535 = vadd.f32 0.0, %v534
  %v536 = vpop.f32.mrb[0].mxu0
  %v537 = vpop.f32.mrb[0].mxu0
  %v538 = vpop.f32.mrb[0].mxu0
  %539 = vdwg.mxu0
  %v541 = vsel %vm401, %v380, 0
  %v544 = vsel %vm401, %v390, 0
  %546 = vmatprep.subr.bf16.mxu0 0
  %547 = vmatpush1.bf16.xpose.msra.mxu0 %v544
  %548 = vmatprep.subr.bf16.mxu0 0
  %549 = vmatpush1.bf16.xpose.msra.mxu0 0
  %550 = vmatprep.subr.bf16.mxu0 0
  %551 = vmatpush1.bf16.xpose.msra.mxu0 0
  %552 = vmatprep.subr.bf16.mxu0 0
  %553 = vmatpush1.bf16.xpose.msra.mxu0 0
  %554 = vmatprep.subr.bf16.mxu0 0
  %555 = vmatpush1.bf16.xpose.msra.mxu0 0
  %556 = vmatprep.subr.bf16.mxu0 0
  %557 = vmatpush1.bf16.xpose.msra.mxu0 0
  %558 = vmatprep.subr.bf16.mxu0 0
  %559 = vmatpush1.bf16.xpose.msra.mxu0 0
  %560 = vmatprep.subr.bf16.mxu0 0
  %561 = vmatpush1.bf16.xpose.msra.mxu0 0
  %562 = vmatprep.subr.bf16.mxu0 0
  %563 = vmatpush1.bf16.xpose.msra.mxu0 0
  %564 = vmatprep.subr.bf16.mxu0 0
  %565 = vmatpush1.bf16.xpose.msra.mxu0 0
  %566 = vmatprep.subr.bf16.mxu0 0
  %567 = vmatpush1.bf16.xpose.msra.mxu0 0
  %568 = vmatprep.subr.bf16.mxu0 0
  %569 = vmatpush1.bf16.xpose.msra.mxu0 0
  %570 = vmatprep.subr.bf16.mxu0 0
  %571 = vmatpush1.bf16.xpose.msra.mxu0 0
  %572 = vmatprep.subr.bf16.mxu0 0
  %573 = vmatpush1.bf16.xpose.msra.mxu0 0
  %574 = vmatprep.subr.bf16.mxu0 0
  %575 = vmatpush1.bf16.xpose.msra.mxu0 0
  %576 = vmatprep.subr.bf16.mxu0 0
  %577 = vmatpush1.bf16.xpose.msra.mxu0 0
  %578 = vmatprep.mubr.bf16.mxu0 0
  %579 = vmatmul.mubr.bf16.gmra.mrb[0].mxu0 %v541
  %v580 = vpop.f32.mrb[0].mxu0
  %v581 = vadd.f32 0.0, %v580
  %v582 = vpop.f32.mrb[0].mxu0
  %v583 = vpop.f32.mrb[0].mxu0
  %v584 = vpop.f32.mrb[0].mxu0
  %585 = vdwg.mxu0
  %v586 = vmul.f32 %v443, 0.35355338
  %v587 = vmul.f32 %v489, 0.35355338
  %v588 = vmul.f32 %v535, 0.35355338
  %v589 = vmul.f32 %v581, 0.35355338
  %v590 = vadd.f32 %v586, %v370
  %v591 = vadd.f32 %v587, %v370
  %v592 = vadd.f32 %v588, %v370
  %v593 = vadd.f32 %v589, %v370
  %v594 = vsel %vm401, %v590, -inf
  %595 = vmax.xlane.f32.xlu0 %v594
  %v596 = vpop.xlane.xlu0 %595
  %v597 = vsel %vm401, %v591, -inf
  %598 = vmax.xlane.f32.xlu0 %v597
  %v599 = vpop.xlane.xlu0 %598
  %v600 = vsel %vm401, %v592, -inf
  %601 = vmax.xlane.f32.xlu0 %v600
  %v602 = vpop.xlane.xlu0 %601
  %v603 = vsel %vm401, %v593, -inf
  %604 = vmax.xlane.f32.xlu0 %v603
  %v605 = vpop.xlane.xlu0 %604
  %v606 = vsub.f32 %v590, %v596
  %v607 = vsub.f32 %v591, %v599
  %v608 = vsub.f32 %v592, %v602
  %v609 = vsub.f32 %v593, %v605
  %v610 = vmul.f32 %v606, 1.442695
  %v611 = vpow.pop %v610
  %v612 = vmul.f32 %v607, 1.442695
  %v613 = vpow.pop %v612
  %v614 = vmul.f32 %v608, 1.442695
  %v615 = vpow.pop %v614
  %v616 = vmul.f32 %v609, 1.442695
  %v617 = vpow.pop %v616
  %v618 = vsel %vm401, %v611, 0.0
  %619 = vadd.xlane.f32.xlu0 %v618
  %v620 = vpop.xlane.xlu0 %619
  %v621 = vsel %vm401, %v613, 0.0
  %622 = vadd.xlane.f32.xlu0 %v621
  %v623 = vpop.xlane.xlu0 %622
  %v624 = vsel %vm401, %v615, 0.0
  %625 = vadd.xlane.f32.xlu0 %v624
  %v626 = vpop.xlane.xlu0 %625
  %v627 = vsel %vm401, %v617, 0.0
  %628 = vadd.xlane.f32.xlu0 %v627
  %v629 = vpop.xlane.xlu0 %628
  %v630 = vrcp.pop %v620
  %v631 = vrcp.pop %v623
  %v632 = vrcp.pop %v626
  %v633 = vrcp.pop %v629
  %v634 = vpack.c.bf16 %v611, %v611
  %v635 = vpack.c.bf16 %v613, %v613
  %v636 = vpack.c.bf16 %v615, %v615
  %v637 = vpack.c.bf16 %v617, %v617
  %v639 = vsel %vm401, %v634, 0
  %vm641 = vcmask 1043456
  %v643 = vsel %vm641, %v397, 0
  %645 = vmatprep.subr.bf16.mxu0 0
  %646 = vmatpush1.bf16.msra.mxu0 %v643
  %647 = vmatprep.subr.bf16.mxu0 0
  %648 = vmatpush1.bf16.msra.mxu0 0
  %649 = vmatprep.subr.bf16.mxu0 0
  %650 = vmatpush1.bf16.msra.mxu0 0
  %651 = vmatprep.subr.bf16.mxu0 0
  %652 = vmatpush1.bf16.msra.mxu0 0
  %653 = vmatprep.subr.bf16.mxu0 0
  %654 = vmatpush1.bf16.msra.mxu0 0
  %655 = vmatprep.subr.bf16.mxu0 0
  %656 = vmatpush1.bf16.msra.mxu0 0
  %657 = vmatprep.subr.bf16.mxu0 0
  %658 = vmatpush1.bf16.msra.mxu0 0
  %659 = vmatprep.subr.bf16.mxu0 0
  %660 = vmatpush1.bf16.msra.mxu0 0
  %661 = vmatprep.subr.bf16.mxu0 0
  %662 = vmatpush1.bf16.msra.mxu0 0
  %663 = vmatprep.subr.bf16.mxu0 0
  %664 = vmatpush1.bf16.msra.mxu0 0
  %665 = vmatprep.subr.bf16.mxu0 0
  %666 = vmatpush1.bf16.msra.mxu0 0
  %667 = vmatprep.subr.bf16.mxu0 0
  %668 = vmatpush1.bf16.msra.mxu0 0
  %669 = vmatprep.subr.bf16.mxu0 0
  %670 = vmatpush1.bf16.msra.mxu0 0
  %671 = vmatprep.subr.bf16.mxu0 0
  %672 = vmatpush1.bf16.msra.mxu0 0
  %673 = vmatprep.subr.bf16.mxu0 0
  %674 = vmatpush1.bf16.msra.mxu0 0
  %675 = vmatprep.subr.bf16.mxu0 0
  %676 = vmatpush1.bf16.msra.mxu0 0
  %677 = vmatprep.mubr.bf16.mxu0 0
  %678 = vmatmul.mubr.bf16.gmra.mrb[0].mxu0 %v639
  %v679 = vpop.f32.mrb[0].mxu0
  %v680 = vadd.f32 0.0, %v679
  %v681 = vpop.f32.mrb[0].mxu0
  %v682 = vpop.f32.mrb[0].mxu0
  %v683 = vpop.f32.mrb[0].mxu0
  %684 = vdwg.mxu0
  %v686 = vsel %vm401, %v635, 0
  %v689 = vsel %vm641, %v398, 0
  %691 = vmatprep.subr.bf16.mxu0 0
  %692 = vmatpush1.bf16.msra.mxu0 %v689
  %693 = vmatprep.subr.bf16.mxu0 0
  %694 = vmatpush1.bf16.msra.mxu0 0
  %695 = vmatprep.subr.bf16.mxu0 0
  %696 = vmatpush1.bf16.msra.mxu0 0
  %697 = vmatprep.subr.bf16.mxu0 0
  %698 = vmatpush1.bf16.msra.mxu0 0
  %699 = vmatprep.subr.bf16.mxu0 0
  %700 = vmatpush1.bf16.msra.mxu0 0
  %701 = vmatprep.subr.bf16.mxu0 0
  %702 = vmatpush1.bf16.msra.mxu0 0
  %703 = vmatprep.subr.bf16.mxu0 0
  %704 = vmatpush1.bf16.msra.mxu0 0
  %705 = vmatprep.subr.bf16.mxu0 0
  %706 = vmatpush1.bf16.msra.mxu0 0
  %707 = vmatprep.subr.bf16.mxu0 0
  %708 = vmatpush1.bf16.msra.mxu0 0
  %709 = vmatprep.subr.bf16.mxu0 0
  %710 = vmatpush1.bf16.msra.mxu0 0
  %711 = vmatprep.subr.bf16.mxu0 0
  %712 = vmatpush1.bf16.msra.mxu0 0
  %713 = vmatprep.subr.bf16.mxu0 0
  %714 = vmatpush1.bf16.msra.mxu0 0
  %715 = vmatprep.subr.bf16.mxu0 0
  %716 = vmatpush1.bf16.msra.mxu0 0
  %717 = vmatprep.subr.bf16.mxu0 0
  %718 = vmatpush1.bf16.msra.mxu0 0
  %719 = vmatprep.subr.bf16.mxu0 0
  %720 = vmatpush1.bf16.msra.mxu0 0
  %721 = vmatprep.subr.bf16.mxu0 0
  %722 = vmatpush1.bf16.msra.mxu0 0
  %723 = vmatprep.mubr.bf16.mxu0 0
  %724 = vmatmul.mubr.bf16.gmra.mrb[0].mxu0 %v686
  %v725 = vpop.f32.mrb[0].mxu0
  %v726 = vadd.f32 0.0, %v725
  %v727 = vpop.f32.mrb[0].mxu0
  %v728 = vpop.f32.mrb[0].mxu0
  %v729 = vpop.f32.mrb[0].mxu0
  %730 = vdwg.mxu0
  %v732 = vsel %vm401, %v636, 0
  %v735 = vsel %vm641, %v399, 0
  %737 = vmatprep.subr.bf16.mxu0 0
  %738 = vmatpush1.bf16.msra.mxu0 %v735
  %739 = vmatprep.subr.bf16.mxu0 0
  %740 = vmatpush1.bf16.msra.mxu0 0
  %741 = vmatprep.subr.bf16.mxu0 0
  %742 = vmatpush1.bf16.msra.mxu0 0
  %743 = vmatprep.subr.bf16.mxu0 0
  %744 = vmatpush1.bf16.msra.mxu0 0
  %745 = vmatprep.subr.bf16.mxu0 0
  %746 = vmatpush1.bf16.msra.mxu0 0
  %747 = vmatprep.subr.bf16.mxu0 0
  %748 = vmatpush1.bf16.msra.mxu0 0
  %749 = vmatprep.subr.bf16.mxu0 0
  %750 = vmatpush1.bf16.msra.mxu0 0
  %751 = vmatprep.subr.bf16.mxu0 0
  %752 = vmatpush1.bf16.msra.mxu0 0
  %753 = vmatprep.subr.bf16.mxu0 0
  %754 = vmatpush1.bf16.msra.mxu0 0
  %755 = vmatprep.subr.bf16.mxu0 0
  %756 = vmatpush1.bf16.msra.mxu0 0
  %757 = vmatprep.subr.bf16.mxu0 0
  %758 = vmatpush1.bf16.msra.mxu0 0
  %759 = vmatprep.subr.bf16.mxu0 0
  %760 = vmatpush1.bf16.msra.mxu0 0
  %761 = vmatprep.subr.bf16.mxu0 0
  %762 = vmatpush1.bf16.msra.mxu0 0
  %763 = vmatprep.subr.bf16.mxu0 0
  %764 = vmatpush1.bf16.msra.mxu0 0
  %765 = vmatprep.subr.bf16.mxu0 0
  %766 = vmatpush1.bf16.msra.mxu0 0
  %767 = vmatprep.subr.bf16.mxu0 0
  %768 = vmatpush1.bf16.msra.mxu0 0
  %769 = vmatprep.mubr.bf16.mxu0 0
  %770 = vmatmul.mubr.bf16.gmra.mrb[0].mxu0 %v732
  %v771 = vpop.f32.mrb[0].mxu0
  %v772 = vadd.f32 0.0, %v771
  %v773 = vpop.f32.mrb[0].mxu0
  %v774 = vpop.f32.mrb[0].mxu0
  %v775 = vpop.f32.mrb[0].mxu0
  %776 = vdwg.mxu0
  %v778 = vsel %vm401, %v637, 0
  %v781 = vsel %vm641, %v400, 0
  %783 = vmatprep.subr.bf16.mxu0 0
  %784 = vmatpush1.bf16.msra.mxu0 %v781
  %785 = vmatprep.subr.bf16.mxu0 0
  %786 = vmatpush1.bf16.msra.mxu0 0
  %787 = vmatprep.subr.bf16.mxu0 0
  %788 = vmatpush1.bf16.msra.mxu0 0
  %789 = vmatprep.subr.bf16.mxu0 0
  %790 = vmatpush1.bf16.msra.mxu0 0
  %791 = vmatprep.subr.bf16.mxu0 0
  %792 = vmatpush1.bf16.msra.mxu0 0
  %793 = vmatprep.subr.bf16.mxu0 0
  %794 = vmatpush1.bf16.msra.mxu0 0
  %795 = vmatprep.subr.bf16.mxu0 0
  %796 = vmatpush1.bf16.msra.mxu0 0
  %797 = vmatprep.subr.bf16.mxu0 0
  %798 = vmatpush1.bf16.msra.mxu0 0
  %799 = vmatprep.subr.bf16.mxu0 0
  %800 = vmatpush1.bf16.msra.mxu0 0
  %801 = vmatprep.subr.bf16.mxu0 0
  %802 = vmatpush1.bf16.msra.mxu0 0
  %803 = vmatprep.subr.bf16.mxu0 0
  %804 = vmatpush1.bf16.msra.mxu0 0
  %805 = vmatprep.subr.bf16.mxu0 0
  %806 = vmatpush1.bf16.msra.mxu0 0
  %807 = vmatprep.subr.bf16.mxu0 0
  %808 = vmatpush1.bf16.msra.mxu0 0
  %809 = vmatprep.subr.bf16.mxu0 0
  %810 = vmatpush1.bf16.msra.mxu0 0
  %811 = vmatprep.subr.bf16.mxu0 0
  %812 = vmatpush1.bf16.msra.mxu0 0
  %813 = vmatprep.subr.bf16.mxu0 0
  %814 = vmatpush1.bf16.msra.mxu0 0
  %815 = vmatprep.mubr.bf16.mxu0 0
  %816 = vmatmul.mubr.bf16.gmra.mrb[0].mxu0 %v778
  %v817 = vpop.f32.mrb[0].mxu0
  %v818 = vadd.f32 0.0, %v817
  %v819 = vpop.f32.mrb[0].mxu0
  %v820 = vpop.f32.mrb[0].mxu0
  %v821 = vpop.f32.mrb[0].mxu0
  %822 = vdwg.mxu0
  %v823 = vmul.f32 %v680, %v630
  %v824 = vmul.f32 %v726, %v631
  %v825 = vmul.f32 %v772, %v632
  %v826 = vmul.f32 %v818, %v633
  %v827 = vpack.c.bf16 %v824, %v823
  %v828 = vpack.c.bf16 %v826, %v825
  %829 = vst.msk [vmem:[#allocation2] sm:$0xff] %vm401, %v827
  %830 = vst.msk [vmem:[#allocation2 + $0x8] sm:$0xff] %vm401, %v828
  %831 = vrot.lane.b32.xlu0 %v377, 120
  %v832 = vpop.permute.xlu0 %831
  %833 = vrot.lane.b32.xlu0 %v387, 120
  %v834 = vpop.permute.xlu0 %833
  %v836 = vsel %vm401, %v832, 0
  %v839 = vsel %vm401, %v834, 0
  %841 = vmatprep.subr.bf16.mxu0 0
  %842 = vmatpush1.bf16.xpose.msra.mxu0 %v839
  %843 = vmatprep.subr.bf16.mxu0 0
  %844 = vmatpush1.bf16.xpose.msra.mxu0 0
  %845 = vmatprep.subr.bf16.mxu0 0
  %846 = vmatpush1.bf16.xpose.msra.mxu0 0
  %847 = vmatprep.subr.bf16.mxu0 0
  %848 = vmatpush1.bf16.xpose.msra.mxu0 0
  %849 = vmatprep.subr.bf16.mxu0 0
  %850 = vmatpush1.bf16.xpose.msra.mxu0 0
  %851 = vmatprep.subr.bf16.mxu0 0
  %852 = vmatpush1.bf16.xpose.msra.mxu0 0
  %853 = vmatprep.subr.bf16.mxu0 0
  %854 = vmatpush1.bf16.xpose.msra.mxu0 0
  %855 = vmatprep.subr.bf16.mxu0 0
  %856 = vmatpush1.bf16.xpose.msra.mxu0 0
  %857 = vmatprep.subr.bf16.mxu0 0
  %858 = vmatpush1.bf16.xpose.msra.mxu0 0
  %859 = vmatprep.subr.bf16.mxu0 0
  %860 = vmatpush1.bf16.xpose.msra.mxu0 0
  %861 = vmatprep.subr.bf16.mxu0 0
  %862 = vmatpush1.bf16.xpose.msra.mxu0 0
  %863 = vmatprep.subr.bf16.mxu0 0
  %864 = vmatpush1.bf16.xpose.msra.mxu0 0
  %865 = vmatprep.subr.bf16.mxu0 0
  %866 = vmatpush1.bf16.xpose.msra.mxu0 0
  %867 = vmatprep.subr.bf16.mxu0 0
  %868 = vmatpush1.bf16.xpose.msra.mxu0 0
  %869 = vmatprep.subr.bf16.mxu0 0
  %870 = vmatpush1.bf16.xpose.msra.mxu0 0
  %871 = vmatprep.subr.bf16.mxu0 0
  %872 = vmatpush1.bf16.xpose.msra.mxu0 0
  %873 = vmatprep.mubr.bf16.mxu0 0
  %874 = vmatmul.mubr.bf16.gmra.mrb[0].mxu0 %v836
  %v875 = vpop.f32.mrb[0].mxu0
  %v876 = vadd.f32 0.0, %v875
  %v877 = vpop.f32.mrb[0].mxu0
  %v878 = vpop.f32.mrb[0].mxu0
  %v879 = vpop.f32.mrb[0].mxu0
  %880 = vdwg.mxu0
  %881 = vrot.lane.b32.xlu0 %v378, 120
  %v882 = vpop.permute.xlu0 %881
  %883 = vrot.lane.b32.xlu0 %v388, 120
  %v884 = vpop.permute.xlu0 %883
  %v886 = vsel %vm401, %v882, 0
  %v889 = vsel %vm401, %v884, 0
  %891 = vmatprep.subr.bf16.mxu0 0
  %892 = vmatpush1.bf16.xpose.msra.mxu0 %v889
  %893 = vmatprep.subr.bf16.mxu0 0
  %894 = vmatpush1.bf16.xpose.msra.mxu0 0
  %895 = vmatprep.subr.bf16.mxu0 0
  %896 = vmatpush1.bf16.xpose.msra.mxu0 0
  %897 = vmatprep.subr.bf16.mxu0 0
  %898 = vmatpush1.bf16.xpose.msra.mxu0 0
  %899 = vmatprep.subr.bf16.mxu0 0
  %900 = vmatpush1.bf16.xpose.msra.mxu0 0
  %901 = vmatprep.subr.bf16.mxu0 0
  %902 = vmatpush1.bf16.xpose.msra.mxu0 0
  %903 = vmatprep.subr.bf16.mxu0 0
  %904 = vmatpush1.bf16.xpose.msra.mxu0 0
  %905 = vmatprep.subr.bf16.mxu0 0
  %906 = vmatpush1.bf16.xpose.msra.mxu0 0
  %907 = vmatprep.subr.bf16.mxu0 0
  %908 = vmatpush1.bf16.xpose.msra.mxu0 0
  %909 = vmatprep.subr.bf16.mxu0 0
  %910 = vmatpush1.bf16.xpose.msra.mxu0 0
  %911 = vmatprep.subr.bf16.mxu0 0
  %912 = vmatpush1.bf16.xpose.msra.mxu0 0
  %913 = vmatprep.subr.bf16.mxu0 0
  %914 = vmatpush1.bf16.xpose.msra.mxu0 0
  %915 = vmatprep.subr.bf16.mxu0 0
  %916 = vmatpush1.bf16.xpose.msra.mxu0 0
  %917 = vmatprep.subr.bf16.mxu0 0
  %918 = vmatpush1.bf16.xpose.msra.mxu0 0
  %919 = vmatprep.subr.bf16.mxu0 0
  %920 = vmatpush1.bf16.xpose.msra.mxu0 0
  %921 = vmatprep.subr.bf16.mxu0 0
  %922 = vmatpush1.bf16.xpose.msra.mxu0 0
  %923 = vmatprep.mubr.bf16.mxu0 0
  %924 = vmatmul.mubr.bf16.gmra.mrb[0].mxu0 %v886
  %v925 = vpop.f32.mrb[0].mxu0
  %v926 = vadd.f32 0.0, %v925
  %v927 = vpop.f32.mrb[0].mxu0
  %v928 = vpop.f32.mrb[0].mxu0
  %v929 = vpop.f32.mrb[0].mxu0
  %930 = vdwg.mxu0
  %931 = vrot.lane.b32.xlu0 %v379, 120
  %v932 = vpop.permute.xlu0 %931
  %933 = vrot.lane.b32.xlu0 %v389, 120
  %v934 = vpop.permute.xlu0 %933
  %v936 = vsel %vm401, %v932, 0
  %v939 = vsel %vm401, %v934, 0
  %941 = vmatprep.subr.bf16.mxu0 0
  %942 = vmatpush1.bf16.xpose.msra.mxu0 %v939
  %943 = vmatprep.subr.bf16.mxu0 0
  %944 = vmatpush1.bf16.xpose.msra.mxu0 0
  %945 = vmatprep.subr.bf16.mxu0 0
  %946 = vmatpush1.bf16.xpose.msra.mxu0 0
  %947 = vmatprep.subr.bf16.mxu0 0
  %948 = vmatpush1.bf16.xpose.msra.mxu0 0
  %949 = vmatprep.subr.bf16.mxu0 0
  %950 = vmatpush1.bf16.xpose.msra.mxu0 0
  %951 = vmatprep.subr.bf16.mxu0 0
  %952 = vmatpush1.bf16.xpose.msra.mxu0 0
  %953 = vmatprep.subr.bf16.mxu0 0
  %954 = vmatpush1.bf16.xpose.msra.mxu0 0
  %955 = vmatprep.subr.bf16.mxu0 0
  %956 = vmatpush1.bf16.xpose.msra.mxu0 0
  %957 = vmatprep.subr.bf16.mxu0 0
  %958 = vmatpush1.bf16.xpose.msra.mxu0 0
  %959 = vmatprep.subr.bf16.mxu0 0
  %960 = vmatpush1.bf16.xpose.msra.mxu0 0
  %961 = vmatprep.subr.bf16.mxu0 0
  %962 = vmatpush1.bf16.xpose.msra.mxu0 0
  %963 = vmatprep.subr.bf16.mxu0 0
  %964 = vmatpush1.bf16.xpose.msra.mxu0 0
  %965 = vmatprep.subr.bf16.mxu0 0
  %966 = vmatpush1.bf16.xpose.msra.mxu0 0
  %967 = vmatprep.subr.bf16.mxu0 0
  %968 = vmatpush1.bf16.xpose.msra.mxu0 0
  %969 = vmatprep.subr.bf16.mxu0 0
  %970 = vmatpush1.bf16.xpose.msra.mxu0 0
  %971 = vmatprep.subr.bf16.mxu0 0
  %972 = vmatpush1.bf16.xpose.msra.mxu0 0
  %973 = vmatprep.mubr.bf16.mxu0 0
  %974 = vmatmul.mubr.bf16.gmra.mrb[0].mxu0 %v936
  %v975 = vpop.f32.mrb[0].mxu0
  %v976 = vadd.f32 0.0, %v975
  %v977 = vpop.f32.mrb[0].mxu0
  %v978 = vpop.f32.mrb[0].mxu0
  %v979 = vpop.f32.mrb[0].mxu0
  %980 = vdwg.mxu0
  %981 = vrot.lane.b32.xlu0 %v380, 120
  %v982 = vpop.permute.xlu0 %981
  %983 = vrot.lane.b32.xlu0 %v390, 120
  %v984 = vpop.permute.xlu0 %983
  %v986 = vsel %vm401, %v982, 0
  %v989 = vsel %vm401, %v984, 0
  %991 = vmatprep.subr.bf16.mxu0 0
  %992 = vmatpush1.bf16.xpose.msra.mxu0 %v989
  %993 = vmatprep.subr.bf16.mxu0 0
  %994 = vmatpush1.bf16.xpose.msra.mxu0 0
  %995 = vmatprep.subr.bf16.mxu0 0
  %996 = vmatpush1.bf16.xpose.msra.mxu0 0
  %997 = vmatprep.subr.bf16.mxu0 0
  %998 = vmatpush1.bf16.xpose.msra.mxu0 0
  %999 = vmatprep.subr.bf16.mxu0 0
  %1000 = vmatpush1.bf16.xpose.msra.mxu0 0
  %1001 = vmatprep.subr.bf16.mxu0 0
  %1002 = vmatpush1.bf16.xpose.msra.mxu0 0
  %1003 = vmatprep.subr.bf16.mxu0 0
  %1004 = vmatpush1.bf16.xpose.msra.mxu0 0
  %1005 = vmatprep.subr.bf16.mxu0 0
  %1006 = vmatpush1.bf16.xpose.msra.mxu0 0
  %1007 = vmatprep.subr.bf16.mxu0 0
  %1008 = vmatpush1.bf16.xpose.msra.mxu0 0
  %1009 = vmatprep.subr.bf16.mxu0 0
  %1010 = vmatpush1.bf16.xpose.msra.mxu0 0
  %1011 = vmatprep.subr.bf16.mxu0 0
  %1012 = vmatpush1.bf16.xpose.msra.mxu0 0
  %1013 = vmatprep.subr.bf16.mxu0 0
  %1014 = vmatpush1.bf16.xpose.msra.mxu0 0
  %1015 = vmatprep.subr.bf16.mxu0 0
  %1016 = vmatpush1.bf16.xpose.msra.mxu0 0
  %1017 = vmatprep.subr.bf16.mxu0 0
  %1018 = vmatpush1.bf16.xpose.msra.mxu0 0
  %1019 = vmatprep.subr.bf16.mxu0 0
  %1020 = vmatpush1.bf16.xpose.msra.mxu0 0
  %1021 = vmatprep.subr.bf16.mxu0 0
  %1022 = vmatpush1.bf16.xpose.msra.mxu0 0
  %1023 = vmatprep.mubr.bf16.mxu0 0
  %1024 = vmatmul.mubr.bf16.gmra.mrb[0].mxu0 %v986
  %v1025 = vpop.f32.mrb[0].mxu0
  %v1026 = vadd.f32 0.0, %v1025
  %v1027 = vpop.f32.mrb[0].mxu0
  %v1028 = vpop.f32.mrb[0].mxu0
  %v1029 = vpop.f32.mrb[0].mxu0
  %1030 = vdwg.mxu0
  %v1031 = vmul.f32 %v876, 0.35355338
  %v1032 = vmul.f32 %v926, 0.35355338
  %v1033 = vmul.f32 %v976, 0.35355338
  %v1034 = vmul.f32 %v1026, 0.35355338
  %v1035 = vadd.f32 %v1031, %v370
  %v1036 = vadd.f32 %v1032, %v370
  %v1037 = vadd.f32 %v1033, %v370
  %v1038 = vadd.f32 %v1034, %v370
  %v1039 = vsel %vm401, %v1035, -inf
  %1040 = vmax.xlane.f32.xlu0 %v1039
  %v1041 = vpop.xlane.xlu0 %1040
  %v1042 = vsel %vm401, %v1036, -inf
  %1043 = vmax.xlane.f32.xlu0 %v1042
  %v1044 = vpop.xlane.xlu0 %1043
  %v1045 = vsel %vm401, %v1037, -inf
  %1046 = vmax.xlane.f32.xlu0 %v1045
  %v1047 = vpop.xlane.xlu0 %1046
  %v1048 = vsel %vm401, %v1038, -inf
  %1049 = vmax.xlane.f32.xlu0 %v1048
  %v1050 = vpop.xlane.xlu0 %1049
  %v1051 = vsub.f32 %v1035, %v1041
  %v1052 = vsub.f32 %v1036, %v1044
  %v1053 = vsub.f32 %v1037, %v1047
  %v1054 = vsub.f32 %v1038, %v1050
  %v1055 = vmul.f32 %v1051, 1.442695
  %v1056 = vpow.pop %v1055
  %v1057 = vmul.f32 %v1052, 1.442695
  %v1058 = vpow.pop %v1057
  %v1059 = vmul.f32 %v1053, 1.442695
  %v1060 = vpow.pop %v1059
  %v1061 = vmul.f32 %v1054, 1.442695
  %v1062 = vpow.pop %v1061
  %v1063 = vsel %vm401, %v1056, 0.0
  %1064 = vadd.xlane.f32.xlu0 %v1063
  %v1065 = vpop.xlane.xlu0 %1064
  %v1066 = vsel %vm401, %v1058, 0.0
  %1067 = vadd.xlane.f32.xlu0 %v1066
  %v1068 = vpop.xlane.xlu0 %1067
  %v1069 = vsel %vm401, %v1060, 0.0
  %1070 = vadd.xlane.f32.xlu0 %v1069
  %v1071 = vpop.xlane.xlu0 %1070
  %v1072 = vsel %vm401, %v1062, 0.0
  %1073 = vadd.xlane.f32.xlu0 %v1072
  %v1074 = vpop.xlane.xlu0 %1073
  %v1075 = vrcp.pop %v1065
  %v1076 = vrcp.pop %v1068
  %v1077 = vrcp.pop %v1071
  %v1078 = vrcp.pop %v1074
  %v1079 = vpack.c.bf16 %v1056, %v1056
  %v1080 = vpack.c.bf16 %v1058, %v1058
  %v1081 = vpack.c.bf16 %v1060, %v1060
  %v1082 = vpack.c.bf16 %v1062, %v1062
  %1083 = vrot.lane.b32.xlu0 %v397, 120
  %v1084 = vpop.permute.xlu0 %1083
  %v1086 = vsel %vm401, %v1079, 0
  %v1089 = vsel %vm641, %v1084, 0
  %1091 = vmatprep.subr.bf16.mxu0 0
  %1092 = vmatpush1.bf16.msra.mxu0 %v1089
  %1093 = vmatprep.subr.bf16.mxu0 0
  %1094 = vmatpush1.bf16.msra.mxu0 0
  %1095 = vmatprep.subr.bf16.mxu0 0
  %1096 = vmatpush1.bf16.msra.mxu0 0
  %1097 = vmatprep.subr.bf16.mxu0 0
  %1098 = vmatpush1.bf16.msra.mxu0 0
  %1099 = vmatprep.subr.bf16.mxu0 0
  %1100 = vmatpush1.bf16.msra.mxu0 0
  %1101 = vmatprep.subr.bf16.mxu0 0
  %1102 = vmatpush1.bf16.msra.mxu0 0
  %1103 = vmatprep.subr.bf16.mxu0 0
  %1104 = vmatpush1.bf16.msra.mxu0 0
  %1105 = vmatprep.subr.bf16.mxu0 0
  %1106 = vmatpush1.bf16.msra.mxu0 0
  %1107 = vmatprep.subr.bf16.mxu0 0
  %1108 = vmatpush1.bf16.msra.mxu0 0
  %1109 = vmatprep.subr.bf16.mxu0 0
  %1110 = vmatpush1.bf16.msra.mxu0 0
  %1111 = vmatprep.subr.bf16.mxu0 0
  %1112 = vmatpush1.bf16.msra.mxu0 0
  %1113 = vmatprep.subr.bf16.mxu0 0
  %1114 = vmatpush1.bf16.msra.mxu0 0
  %1115 = vmatprep.subr.bf16.mxu0 0
  %1116 = vmatpush1.bf16.msra.mxu0 0
  %1117 = vmatprep.subr.bf16.mxu0 0
  %1118 = vmatpush1.bf16.msra.mxu0 0
  %1119 = vmatprep.subr.bf16.mxu0 0
  %1120 = vmatpush1.bf16.msra.mxu0 0
  %1121 = vmatprep.subr.bf16.mxu0 0
  %1122 = vmatpush1.bf16.msra.mxu0 0
  %1123 = vmatprep.mubr.bf16.mxu0 0
  %1124 = vmatmul.mubr.bf16.gmra.mrb[0].mxu0 %v1086
  %v1125 = vpop.f32.mrb[0].mxu0
  %v1126 = vadd.f32 0.0, %v1125
  %v1127 = vpop.f32.mrb[0].mxu0
  %v1128 = vpop.f32.mrb[0].mxu0
  %v1129 = vpop.f32.mrb[0].mxu0
  %1130 = vdwg.mxu0
  %1131 = vrot.lane.b32.xlu0 %v398, 120
  %v1132 = vpop.permute.xlu0 %1131
  %v1134 = vsel %vm401, %v1080, 0
  %v1137 = vsel %vm641, %v1132, 0
  %1139 = vmatprep.subr.bf16.mxu0 0
  %1140 = vmatpush1.bf16.msra.mxu0 %v1137
  %1141 = vmatprep.subr.bf16.mxu0 0
  %1142 = vmatpush1.bf16.msra.mxu0 0
  %1143 = vmatprep.subr.bf16.mxu0 0
  %1144 = vmatpush1.bf16.msra.mxu0 0
  %1145 = vmatprep.subr.bf16.mxu0 0
  %1146 = vmatpush1.bf16.msra.mxu0 0
  %1147 = vmatprep.subr.bf16.mxu0 0
  %1148 = vmatpush1.bf16.msra.mxu0 0
  %1149 = vmatprep.subr.bf16.mxu0 0
  %1150 = vmatpush1.bf16.msra.mxu0 0
  %1151 = vmatprep.subr.bf16.mxu0 0
  %1152 = vmatpush1.bf16.msra.mxu0 0
  %1153 = vmatprep.subr.bf16.mxu0 0
  %1154 = vmatpush1.bf16.msra.mxu0 0
  %1155 = vmatprep.subr.bf16.mxu0 0
  %1156 = vmatpush1.bf16.msra.mxu0 0
  %1157 = vmatprep.subr.bf16.mxu0 0
  %1158 = vmatpush1.bf16.msra.mxu0 0
  %1159 = vmatprep.subr.bf16.mxu0 0
  %1160 = vmatpush1.bf16.msra.mxu0 0
  %1161 = vmatprep.subr.bf16.mxu0 0
  %1162 = vmatpush1.bf16.msra.mxu0 0
  %1163 = vmatprep.subr.bf16.mxu0 0
  %1164 = vmatpush1.bf16.msra.mxu0 0
  %1165 = vmatprep.subr.bf16.mxu0 0
  %1166 = vmatpush1.bf16.msra.mxu0 0
  %1167 = vmatprep.subr.bf16.mxu0 0
  %1168 = vmatpush1.bf16.msra.mxu0 0
  %1169 = vmatprep.subr.bf16.mxu0 0
  %1170 = vmatpush1.bf16.msra.mxu0 0
  %1171 = vmatprep.mubr.bf16.mxu0 0
  %1172 = vmatmul.mubr.bf16.gmra.mrb[0].mxu0 %v1134
  %v1173 = vpop.f32.mrb[0].mxu0
  %v1174 = vadd.f32 0.0, %v1173
  %v1175 = vpop.f32.mrb[0].mxu0
  %v1176 = vpop.f32.mrb[0].mxu0
  %v1177 = vpop.f32.mrb[0].mxu0
  %1178 = vdwg.mxu0
  %1179 = vrot.lane.b32.xlu0 %v399, 120
  %v1180 = vpop.permute.xlu0 %1179
  %v1182 = vsel %vm401, %v1081, 0
  %v1185 = vsel %vm641, %v1180, 0
  %1187 = vmatprep.subr.bf16.mxu0 0
  %1188 = vmatpush1.bf16.msra.mxu0 %v1185
  %1189 = vmatprep.subr.bf16.mxu0 0
  %1190 = vmatpush1.bf16.msra.mxu0 0
  %1191 = vmatprep.subr.bf16.mxu0 0
  %1192 = vmatpush1.bf16.msra.mxu0 0
  %1193 = vmatprep.subr.bf16.mxu0 0
  %1194 = vmatpush1.bf16.msra.mxu0 0
  %1195 = vmatprep.subr.bf16.mxu0 0
  %1196 = vmatpush1.bf16.msra.mxu0 0
  %1197 = vmatprep.subr.bf16.mxu0 0
  %1198 = vmatpush1.bf16.msra.mxu0 0
  %1199 = vmatprep.subr.bf16.mxu0 0
  %1200 = vmatpush1.bf16.msra.mxu0 0
  %1201 = vmatprep.subr.bf16.mxu0 0
  %1202 = vmatpush1.bf16.msra.mxu0 0
  %1203 = vmatprep.subr.bf16.mxu0 0
  %1204 = vmatpush1.bf16.msra.mxu0 0
  %1205 = vmatprep.subr.bf16.mxu0 0
  %1206 = vmatpush1.bf16.msra.mxu0 0
  %1207 = vmatprep.subr.bf16.mxu0 0
  %1208 = vmatpush1.bf16.msra.mxu0 0
  %1209 = vmatprep.subr.bf16.mxu0 0
  %1210 = vmatpush1.bf16.msra.mxu0 0
  %1211 = vmatprep.subr.bf16.mxu0 0
  %1212 = vmatpush1.bf16.msra.mxu0 0
  %1213 = vmatprep.subr.bf16.mxu0 0
  %1214 = vmatpush1.bf16.msra.mxu0 0
  %1215 = vmatprep.subr.bf16.mxu0 0
  %1216 = vmatpush1.bf16.msra.mxu0 0
  %1217 = vmatprep.subr.bf16.mxu0 0
  %1218 = vmatpush1.bf16.msra.mxu0 0
  %1219 = vmatprep.mubr.bf16.mxu0 0
  %1220 = vmatmul.mubr.bf16.gmra.mrb[0].mxu0 %v1182
  %v1221 = vpop.f32.mrb[0].mxu0
  %v1222 = vadd.f32 0.0, %v1221
  %v1223 = vpop.f32.mrb[0].mxu0
  %v1224 = vpop.f32.mrb[0].mxu0
  %v1225 = vpop.f32.mrb[0].mxu0
  %1226 = vdwg.mxu0
  %1227 = vrot.lane.b32.xlu0 %v400, 120
  %v1228 = vpop.permute.xlu0 %1227
  %v1230 = vsel %vm401, %v1082, 0
  %v1233 = vsel %vm641, %v1228, 0
  %1235 = vmatprep.subr.bf16.mxu0 0
  %1236 = vmatpush1.bf16.msra.mxu0 %v1233
  %1237 = vmatprep.subr.bf16.mxu0 0
  %1238 = vmatpush1.bf16.msra.mxu0 0
  %1239 = vmatprep.subr.bf16.mxu0 0
  %1240 = vmatpush1.bf16.msra.mxu0 0
  %1241 = vmatprep.subr.bf16.mxu0 0
  %1242 = vmatpush1.bf16.msra.mxu0 0
  %1243 = vmatprep.subr.bf16.mxu0 0
  %1244 = vmatpush1.bf16.msra.mxu0 0
  %1245 = vmatprep.subr.bf16.mxu0 0
  %1246 = vmatpush1.bf16.msra.mxu0 0
  %1247 = vmatprep.subr.bf16.mxu0 0
  %1248 = vmatpush1.bf16.msra.mxu0 0
  %1249 = vmatprep.subr.bf16.mxu0 0
  %1250 = vmatpush1.bf16.msra.mxu0 0
  %1251 = vmatprep.subr.bf16.mxu0 0
  %1252 = vmatpush1.bf16.msra.mxu0 0
  %1253 = vmatprep.subr.bf16.mxu0 0
  %1254 = vmatpush1.bf16.msra.mxu0 0
  %1255 = vmatprep.subr.bf16.mxu0 0
  %1256 = vmatpush1.bf16.msra.mxu0 0
  %1257 = vmatprep.subr.bf16.mxu0 0
  %1258 = vmatpush1.bf16.msra.mxu0 0
  %1259 = vmatprep.subr.bf16.mxu0 0
  %1260 = vmatpush1.bf16.msra.mxu0 0
  %1261 = vmatprep.subr.bf16.mxu0 0
  %1262 = vmatpush1.bf16.msra.mxu0 0
  %1263 = vmatprep.subr.bf16.mxu0 0
  %1264 = vmatpush1.bf16.msra.mxu0 0
  %1265 = vmatprep.subr.bf16.mxu0 0
  %1266 = vmatpush1.bf16.msra.mxu0 0
  %1267 = vmatprep.mubr.bf16.mxu0 0
  %1268 = vmatmul.mubr.bf16.gmra.mrb[0].mxu0 %v1230
  %v1269 = vpop.f32.mrb[0].mxu0
  %v1270 = vadd.f32 0.0, %v1269
  %v1271 = vpop.f32.mrb[0].mxu0
  %v1272 = vpop.f32.mrb[0].mxu0
  %v1273 = vpop.f32.mrb[0].mxu0
  %1274 = vdwg.mxu0
  %v1275 = vmul.f32 %v1126, %v1075
  %v1276 = vmul.f32 %v1174, %v1076
  %v1277 = vmul.f32 %v1222, %v1077
  %v1278 = vmul.f32 %v1270, %v1078
  %v1279 = vpack.c.bf16 %v1276, %v1275
  %v1280 = vpack.c.bf16 %v1278, %v1277
  %1283 = vrot.lane.b32.xlu0 %v1279, 8
  %v1284 = vpop.permute.xlu0 %1283
  %1285 = vrot.lane.b32.xlu0 %v1280, 8
  %v1286 = vpop.permute.xlu0 %1285
  %vm1289 = vcmask 130112
  %1290 = vst.msk [vmem:[#allocation2] sm:$0xff] %vm1289, %v1284
  %1291 = vst.msk [vmem:[#allocation2 + $0x8] sm:$0xff] %vm1289, %v1286
  %1292 = vrot.lane.b32.xlu0 %v377, 112
  %v1293 = vpop.permute.xlu0 %1292
  %1294 = vrot.lane.b32.xlu0 %v387, 112
  %v1295 = vpop.permute.xlu0 %1294
  %v1297 = vsel %vm401, %v1293, 0
  %v1300 = vsel %vm401, %v1295, 0
  %1302 = vmatprep.subr.bf16.mxu0 0
  %1303 = vmatpush1.bf16.xpose.msra.mxu0 %v1300
  %1304 = vmatprep.subr.bf16.mxu0 0
  %1305 = vmatpush1.bf16.xpose.msra.mxu0 0
  %1306 = vmatprep.subr.bf16.mxu0 0
  %1307 = vmatpush1.bf16.xpose.msra.mxu0 0
  %1308 = vmatprep.subr.bf16.mxu0 0
  %1309 = vmatpush1.bf16.xpose.msra.mxu0 0
  %1310 = vmatprep.subr.bf16.mxu0 0
  %1311 = vmatpush1.bf16.xpose.msra.mxu0 0
  %1312 = vmatprep.subr.bf16.mxu0 0
  %1313 = vmatpush1.bf16.xpose.msra.mxu0 0
  %1314 = vmatprep.subr.bf16.mxu0 0
  %1315 = vmatpush1.bf16.xpose.msra.mxu0 0
  %1316 = vmatprep.subr.bf16.mxu0 0
  %1317 = vmatpush1.bf16.xpose.msra.mxu0 0
  %1318 = vmatprep.subr.bf16.mxu0 0
  %1319 = vmatpush1.bf16.xpose.msra.mxu0 0
  %1320 = vmatprep.subr.bf16.mxu0 0
  %1321 = vmatpush1.bf16.xpose.msra.mxu0 0
  %1322 = vmatprep.subr.bf16.mxu0 0
  %1323 = vmatpush1.bf16.xpose.msra.mxu0 0
  %1324 = vmatprep.subr.bf16.mxu0 0
  %1325 = vmatpush1.bf16.xpose.msra.mxu0 0
  %1326 = vmatprep.subr.bf16.mxu0 0
  %1327 = vmatpush1.bf16.xpose.msra.mxu0 0
  %1328 = vmatprep.subr.bf16.mxu0 0
  %1329 = vmatpush1.bf16.xpose.msra.mxu0 0
  %1330 = vmatprep.subr.bf16.mxu0 0
  %1331 = vmatpush1.bf16.xpose.msra.mxu0 0
  %1332 = vmatprep.subr.bf16.mxu0 0
  %1333 = vmatpush1.bf16.xpose.msra.mxu0 0
  %1334 = vmatprep.mubr.bf16.mxu0 0
  %1335 = vmatmul.mubr.bf16.gmra.mrb[0].mxu0 %v1297
  %v1336 = vpop.f32.mrb[0].mxu0
  %v1337 = vadd.f32 0.0, %v1336
  %v1338 = vpop.f32.mrb[0].mxu0
  %v1339 = vpop.f32.mrb[0].mxu0
  %v1340 = vpop.f32.mrb[0].mxu0
  %1341 = vdwg.mxu0
  %1342 = vrot.lane.b32.xlu0 %v378, 112
  %v1343 = vpop.permute.xlu0 %1342
  %1344 = vrot.lane.b32.xlu0 %v388, 112
  %v1345 = vpop.permute.xlu0 %1344
  %v1347 = vsel %vm401, %v1343, 0
  %v1350 = vsel %vm401, %v1345, 0
  %1352 = vmatprep.subr.bf16.mxu0 0
  %1353 = vmatpush1.bf16.xpose.msra.mxu0 %v1350
  %1354 = vmatprep.subr.bf16.mxu0 0
  %1355 = vmatpush1.bf16.xpose.msra.mxu0 0
  %1356 = vmatprep.subr.bf16.mxu0 0
  %1357 = vmatpush1.bf16.xpose.msra.mxu0 0
  %1358 = vmatprep.subr.bf16.mxu0 0
  %1359 = vmatpush1.bf16.xpose.msra.mxu0 0
  %1360 = vmatprep.subr.bf16.mxu0 0
  %1361 = vmatpush1.bf16.xpose.msra.mxu0 0
  %1362 = vmatprep.subr.bf16.mxu0 0
  %1363 = vmatpush1.bf16.xpose.msra.mxu0 0
  %1364 = vmatprep.subr.bf16.mxu0 0
  %1365 = vmatpush1.bf16.xpose.msra.mxu0 0
  %1366 = vmatprep.subr.bf16.mxu0 0
  %1367 = vmatpush1.bf16.xpose.msra.mxu0 0
  %1368 = vmatprep.subr.bf16.mxu0 0
  %1369 = vmatpush1.bf16.xpose.msra.mxu0 0
  %1370 = vmatprep.subr.bf16.mxu0 0
  %1371 = vmatpush1.bf16.xpose.msra.mxu0 0
  %1372 = vmatprep.subr.bf16.mxu0 0
  %1373 = vmatpush1.bf16.xpose.msra.mxu0 0
  %1374 = vmatprep.subr.bf16.mxu0 0
  %1375 = vmatpush1.bf16.xpose.msra.mxu0 0
  %1376 = vmatprep.subr.bf16.mxu0 0
  %1377 = vmatpush1.bf16.xpose.msra.mxu0 0
  %1378 = vmatprep.subr.bf16.mxu0 0
  %1379 = vmatpush1.bf16.xpose.msra.mxu0 0
  %1380 = vmatprep.subr.bf16.mxu0 0
  %1381 = vmatpush1.bf16.xpose.msra.mxu0 0
  %1382 = vmatprep.subr.bf16.mxu0 0
  %1383 = vmatpush1.bf16.xpose.msra.mxu0 0
  %1384 = vmatprep.mubr.bf16.mxu0 0
  %1385 = vmatmul.mubr.bf16.gmra.mrb[0].mxu0 %v1347
  %v1386 = vpop.f32.mrb[0].mxu0
  %v1387 = vadd.f32 0.0, %v1386
  %v1388 = vpop.f32.mrb[0].mxu0
  %v1389 = vpop.f32.mrb[0].mxu0
  %v1390 = vpop.f32.mrb[0].mxu0
  %1391 = vdwg.mxu0
  %1392 = vrot.lane.b32.xlu0 %v379, 112
  %v1393 = vpop.permute.xlu0 %1392
  %1394 = vrot.lane.b32.xlu0 %v389, 112
  %v1395 = vpop.permute.xlu0 %1394
  %v1397 = vsel %vm401, %v1393, 0
  %v1400 = vsel %vm401, %v1395, 0
  %1402 = vmatprep.subr.bf16.mxu0 0
  %1403 = vmatpush1.bf16.xpose.msra.mxu0 %v1400
  %1404 = vmatprep.subr.bf16.mxu0 0
  %1405 = vmatpush1.bf16.xpose.msra.mxu0 0
  %1406 = vmatprep.subr.bf16.mxu0 0
  %1407 = vmatpush1.bf16.xpose.msra.mxu0 0
  %1408 = vmatprep.subr.bf16.mxu0 0
  %1409 = vmatpush1.bf16.xpose.msra.mxu0 0
  %1410 = vmatprep.subr.bf16.mxu0 0
  %1411 = vmatpush1.bf16.xpose.msra.mxu0 0
  %1412 = vmatprep.subr.bf16.mxu0 0
  %1413 = vmatpush1.bf16.xpose.msra.mxu0 0
  %1414 = vmatprep.subr.bf16.mxu0 0
  %1415 = vmatpush1.bf16.xpose.msra.mxu0 0
  %1416 = vmatprep.subr.bf16.mxu0 0
  %1417 = vmatpush1.bf16.xpose.msra.mxu0 0
  %1418 = vmatprep.subr.bf16.mxu0 0
  %1419 = vmatpush1.bf16.xpose.msra.mxu0 0
  %1420 = vmatprep.subr.bf16.mxu0 0
  %1421 = vmatpush1.bf16.xpose.msra.mxu0 0
  %1422 = vmatprep.subr.bf16.mxu0 0
  %1423 = vmatpush1.bf16.xpose.msra.mxu0 0
  %1424 = vmatprep.subr.bf16.mxu0 0
  %1425 = vmatpush1.bf16.xpose.msra.mxu0 0
  %1426 = vmatprep.subr.bf16.mxu0 0
  %1427 = vmatpush1.bf16.xpose.msra.mxu0 0
  %1428 = vmatprep.subr.bf16.mxu0 0
  %1429 = vmatpush1.bf16.xpose.msra.mxu0 0
  %1430 = vmatprep.subr.bf16.mxu0 0
  %1431 = vmatpush1.bf16.xpose.msra.mxu0 0
  %1432 = vmatprep.subr.bf16.mxu0 0
  %1433 = vmatpush1.bf16.xpose.msra.mxu0 0
  %1434 = vmatprep.mubr.bf16.mxu0 0
  %1435 = vmatmul.mubr.bf16.gmra.mrb[0].mxu0 %v1397
  %v1436 = vpop.f32.mrb[0].mxu0
  %v1437 = vadd.f32 0.0, %v1436
  %v1438 = vpop.f32.mrb[0].mxu0
  %v1439 = vpop.f32.mrb[0].mxu0
  %v1440 = vpop.f32.mrb[0].mxu0
  %1441 = vdwg.mxu0
  %1442 = vrot.lane.b32.xlu0 %v380, 112
  %v1443 = vpop.permute.xlu0 %1442
  %1444 = vrot.lane.b32.xlu0 %v390, 112
  %v1445 = vpop.permute.xlu0 %1444
  %v1447 = vsel %vm401, %v1443, 0
  %v1450 = vsel %vm401, %v1445, 0
  %1452 = vmatprep.subr.bf16.mxu0 0
  %1453 = vmatpush1.bf16.xpose.msra.mxu0 %v1450
  %1454 = vmatprep.subr.bf16.mxu0 0
  %1455 = vmatpush1.bf16.xpose.msra.mxu0 0
  %1456 = vmatprep.subr.bf16.mxu0 0
  %1457 = vmatpush1.bf16.xpose.msra.mxu0 0
  %1458 = vmatprep.subr.bf16.mxu0 0
  %1459 = vmatpush1.bf16.xpose.msra.mxu0 0
  %1460 = vmatprep.subr.bf16.mxu0 0
  %1461 = vmatpush1.bf16.xpose.msra.mxu0 0
  %1462 = vmatprep.subr.bf16.mxu0 0
  %1463 = vmatpush1.bf16.xpose.msra.mxu0 0
  %1464 = vmatprep.subr.bf16.mxu0 0
  %1465 = vmatpush1.bf16.xpose.msra.mxu0 0
  %1466 = vmatprep.subr.bf16.mxu0 0
  %1467 = vmatpush1.bf16.xpose.msra.mxu0 0
  %1468 = vmatprep.subr.bf16.mxu0 0
  %1469 = vmatpush1.bf16.xpose.msra.mxu0 0
  %1470 = vmatprep.subr.bf16.mxu0 0
  %1471 = vmatpush1.bf16.xpose.msra.mxu0 0
  %1472 = vmatprep.subr.bf16.mxu0 0
  %1473 = vmatpush1.bf16.xpose.msra.mxu0 0
  %1474 = vmatprep.subr.bf16.mxu0 0
  %1475 = vmatpush1.bf16.xpose.msra.mxu0 0
  %1476 = vmatprep.subr.bf16.mxu0 0
  %1477 = vmatpush1.bf16.xpose.msra.mxu0 0
  %1478 = vmatprep.subr.bf16.mxu0 0
  %1479 = vmatpush1.bf16.xpose.msra.mxu0 0
  %1480 = vmatprep.subr.bf16.mxu0 0
  %1481 = vmatpush1.bf16.xpose.msra.mxu0 0
  %1482 = vmatprep.subr.bf16.mxu0 0
  %1483 = vmatpush1.bf16.xpose.msra.mxu0 0
  %1484 = vmatprep.mubr.bf16.mxu0 0
  %1485 = vmatmul.mubr.bf16.gmra.mrb[0].mxu0 %v1447
  %v1486 = vpop.f32.mrb[0].mxu0
  %v1487 = vadd.f32 0.0, %v1486
  %v1488 = vpop.f32.mrb[0].mxu0
  %v1489 = vpop.f32.mrb[0].mxu0
  %v1490 = vpop.f32.mrb[0].mxu0
  %1491 = vdwg.mxu0
  %v1492 = vmul.f32 %v1337, 0.35355338
  %v1493 = vmul.f32 %v1387, 0.35355338
  %v1494 = vmul.f32 %v1437, 0.35355338
  %v1495 = vmul.f32 %v1487, 0.35355338
  %v1496 = vadd.f32 %v1492, %v370
  %v1497 = vadd.f32 %v1493, %v370
  %v1498 = vadd.f32 %v1494, %v370
  %v1499 = vadd.f32 %v1495, %v370
  %v1500 = vsel %vm401, %v1496, -inf
  %1501 = vmax.xlane.f32.xlu0 %v1500
  %v1502 = vpop.xlane.xlu0 %1501
  %v1503 = vsel %vm401, %v1497, -inf
  %1504 = vmax.xlane.f32.xlu0 %v1503
  %v1505 = vpop.xlane.xlu0 %1504
  %v1506 = vsel %vm401, %v1498, -inf
  %1507 = vmax.xlane.f32.xlu0 %v1506
  %v1508 = vpop.xlane.xlu0 %1507
  %v1509 = vsel %vm401, %v1499, -inf
  %1510 = vmax.xlane.f32.xlu0 %v1509
  %v1511 = vpop.xlane.xlu0 %1510
  %v1512 = vsub.f32 %v1496, %v1502
  %v1513 = vsub.f32 %v1497, %v1505
  %v1514 = vsub.f32 %v1498, %v1508
  %v1515 = vsub.f32 %v1499, %v1511
  %v1516 = vmul.f32 %v1512, 1.442695
  %v1517 = vpow.pop %v1516
  %v1518 = vmul.f32 %v1513, 1.442695
  %v1519 = vpow.pop %v1518
  %v1520 = vmul.f32 %v1514, 1.442695
  %v1521 = vpow.pop %v1520
  %v1522 = vmul.f32 %v1515, 1.442695
  %v1523 = vpow.pop %v1522
  %v1524 = vsel %vm401, %v1517, 0.0
  %1525 = vadd.xlane.f32.xlu0 %v1524
  %v1526 = vpop.xlane.xlu0 %1525
  %v1527 = vsel %vm401, %v1519, 0.0
  %1528 = vadd.xlane.f32.xlu0 %v1527
  %v1529 = vpop.xlane.xlu0 %1528
  %v1530 = vsel %vm401, %v1521, 0.0
  %1531 = vadd.xlane.f32.xlu0 %v1530
  %v1532 = vpop.xlane.xlu0 %1531
  %v1533 = vsel %vm401, %v1523, 0.0
  %1534 = vadd.xlane.f32.xlu0 %v1533
  %v1535 = vpop.xlane.xlu0 %1534
  %v1536 = vrcp.pop %v1526
  %v1537 = vrcp.pop %v1529
  %v1538 = vrcp.pop %v1532
  %v1539 = vrcp.pop %v1535
  %v1540 = vpack.c.bf16 %v1517, %v1517
  %v1541 = vpack.c.bf16 %v1519, %v1519
  %v1542 = vpack.c.bf16 %v1521, %v1521
  %v1543 = vpack.c.bf16 %v1523, %v1523
  %1544 = vrot.lane.b32.xlu0 %v397, 112
  %v1545 = vpop.permute.xlu0 %1544
  %v1547 = vsel %vm401, %v1540, 0
  %v1550 = vsel %vm641, %v1545, 0
  %1552 = vmatprep.subr.bf16.mxu0 0
  %1553 = vmatpush1.bf16.msra.mxu0 %v1550
  %1554 = vmatprep.subr.bf16.mxu0 0
  %1555 = vmatpush1.bf16.msra.mxu0 0
  %1556 = vmatprep.subr.bf16.mxu0 0
  %1557 = vmatpush1.bf16.msra.mxu0 0
  %1558 = vmatprep.subr.bf16.mxu0 0
  %1559 = vmatpush1.bf16.msra.mxu0 0
  %1560 = vmatprep.subr.bf16.mxu0 0
  %1561 = vmatpush1.bf16.msra.mxu0 0
  %1562 = vmatprep.subr.bf16.mxu0 0
  %1563 = vmatpush1.bf16.msra.mxu0 0
  %1564 = vmatprep.subr.bf16.mxu0 0
  %1565 = vmatpush1.bf16.msra.mxu0 0
  %1566 = vmatprep.subr.bf16.mxu0 0
  %1567 = vmatpush1.bf16.msra.mxu0 0
  %1568 = vmatprep.subr.bf16.mxu0 0
  %1569 = vmatpush1.bf16.msra.mxu0 0
  %1570 = vmatprep.subr.bf16.mxu0 0
  %1571 = vmatpush1.bf16.msra.mxu0 0
  %1572 = vmatprep.subr.bf16.mxu0 0
  %1573 = vmatpush1.bf16.msra.mxu0 0
  %1574 = vmatprep.subr.bf16.mxu0 0
  %1575 = vmatpush1.bf16.msra.mxu0 0
  %1576 = vmatprep.subr.bf16.mxu0 0
  %1577 = vmatpush1.bf16.msra.mxu0 0
  %1578 = vmatprep.subr.bf16.mxu0 0
  %1579 = vmatpush1.bf16.msra.mxu0 0
  %1580 = vmatprep.subr.bf16.mxu0 0
  %1581 = vmatpush1.bf16.msra.mxu0 0
  %1582 = vmatprep.subr.bf16.mxu0 0
  %1583 = vmatpush1.bf16.msra.mxu0 0
  %1584 = vmatprep.mubr.bf16.mxu0 0
  %1585 = vmatmul.mubr.bf16.gmra.mrb[0].mxu0 %v1547
  %v1586 = vpop.f32.mrb[0].mxu0
  %v1587 = vadd.f32 0.0, %v1586
  %v1588 = vpop.f32.mrb[0].mxu0
  %v1589 = vpop.f32.mrb[0].mxu0
  %v1590 = vpop.f32.mrb[0].mxu0
  %1591 = vdwg.mxu0
  %1592 = vrot.lane.b32.xlu0 %v398, 112
  %v1593 = vpop.permute.xlu0 %1592
  %v1595 = vsel %vm401, %v1541, 0
  %v1598 = vsel %vm641, %v1593, 0
  %1600 = vmatprep.subr.bf16.mxu0 0
  %1601 = vmatpush1.bf16.msra.mxu0 %v1598
  %1602 = vmatprep.subr.bf16.mxu0 0
  %1603 = vmatpush1.bf16.msra.mxu0 0
  %1604 = vmatprep.subr.bf16.mxu0 0
  %1605 = vmatpush1.bf16.msra.mxu0 0
  %1606 = vmatprep.subr.bf16.mxu0 0
  %1607 = vmatpush1.bf16.msra.mxu0 0
  %1608 = vmatprep.subr.bf16.mxu0 0
  %1609 = vmatpush1.bf16.msra.mxu0 0
  %1610 = vmatprep.subr.bf16.mxu0 0
  %1611 = vmatpush1.bf16.msra.mxu0 0
  %1612 = vmatprep.subr.bf16.mxu0 0
  %1613 = vmatpush1.bf16.msra.mxu0 0
  %1614 = vmatprep.subr.bf16.mxu0 0
  %1615 = vmatpush1.bf16.msra.mxu0 0
  %1616 = vmatprep.subr.bf16.mxu0 0
  %1617 = vmatpush1.bf16.msra.mxu0 0
  %1618 = vmatprep.subr.bf16.mxu0 0
  %1619 = vmatpush1.bf16.msra.mxu0 0
  %1620 = vmatprep.subr.bf16.mxu0 0
  %1621 = vmatpush1.bf16.msra.mxu0 0
  %1622 = vmatprep.subr.bf16.mxu0 0
  %1623 = vmatpush1.bf16.msra.mxu0 0
  %1624 = vmatprep.subr.bf16.mxu0 0
  %1625 = vmatpush1.bf16.msra.mxu0 0
  %1626 = vmatprep.subr.bf16.mxu0 0
  %1627 = vmatpush1.bf16.msra.mxu0 0
  %1628 = vmatprep.subr.bf16.mxu0 0
  %1629 = vmatpush1.bf16.msra.mxu0 0
  %1630 = vmatprep.subr.bf16.mxu0 0
  %1631 = vmatpush1.bf16.msra.mxu0 0
  %1632 = vmatprep.mubr.bf16.mxu0 0
  %1633 = vmatmul.mubr.bf16.gmra.mrb[0].mxu0 %v1595
  %v1634 = vpop.f32.mrb[0].mxu0
  %v1635 = vadd.f32 0.0, %v1634
  %v1636 = vpop.f32.mrb[0].mxu0
  %v1637 = vpop.f32.mrb[0].mxu0
  %v1638 = vpop.f32.mrb[0].mxu0
  %1639 = vdwg.mxu0
  %1640 = vrot.lane.b32.xlu0 %v399, 112
  %v1641 = vpop.permute.xlu0 %1640
  %v1643 = vsel %vm401, %v1542, 0
  %v1646 = vsel %vm641, %v1641, 0
  %1648 = vmatprep.subr.bf16.mxu0 0
  %1649 = vmatpush1.bf16.msra.mxu0 %v1646
  %1650 = vmatprep.subr.bf16.mxu0 0
  %1651 = vmatpush1.bf16.msra.mxu0 0
  %1652 = vmatprep.subr.bf16.mxu0 0
  %1653 = vmatpush1.bf16.msra.mxu0 0
  %1654 = vmatprep.subr.bf16.mxu0 0
  %1655 = vmatpush1.bf16.msra.mxu0 0
  %1656 = vmatprep.subr.bf16.mxu0 0
  %1657 = vmatpush1.bf16.msra.mxu0 0
  %1658 = vmatprep.subr.bf16.mxu0 0
  %1659 = vmatpush1.bf16.msra.mxu0 0
  %1660 = vmatprep.subr.bf16.mxu0 0
  %1661 = vmatpush1.bf16.msra.mxu0 0
  %1662 = vmatprep.subr.bf16.mxu0 0
  %1663 = vmatpush1.bf16.msra.mxu0 0
  %1664 = vmatprep.subr.bf16.mxu0 0
  %1665 = vmatpush1.bf16.msra.mxu0 0
  %1666 = vmatprep.subr.bf16.mxu0 0
  %1667 = vmatpush1.bf16.msra.mxu0 0
  %1668 = vmatprep.subr.bf16.mxu0 0
  %1669 = vmatpush1.bf16.msra.mxu0 0
  %1670 = vmatprep.subr.bf16.mxu0 0
  %1671 = vmatpush1.bf16.msra.mxu0 0
  %1672 = vmatprep.subr.bf16.mxu0 0
  %1673 = vmatpush1.bf16.msra.mxu0 0
  %1674 = vmatprep.subr.bf16.mxu0 0
  %1675 = vmatpush1.bf16.msra.mxu0 0
  %1676 = vmatprep.subr.bf16.mxu0 0
  %1677 = vmatpush1.bf16.msra.mxu0 0
  %1678 = vmatprep.subr.bf16.mxu0 0
  %1679 = vmatpush1.bf16.msra.mxu0 0
  %1680 = vmatprep.mubr.bf16.mxu0 0
  %1681 = vmatmul.mubr.bf16.gmra.mrb[0].mxu0 %v1643
  %v1682 = vpop.f32.mrb[0].mxu0
  %v1683 = vadd.f32 0.0, %v1682
  %v1684 = vpop.f32.mrb[0].mxu0
  %v1685 = vpop.f32.mrb[0].mxu0
  %v1686 = vpop.f32.mrb[0].mxu0
  %1687 = vdwg.mxu0
  %1688 = vrot.lane.b32.xlu0 %v400, 112
  %v1689 = vpop.permute.xlu0 %1688
  %v1691 = vsel %vm401, %v1543, 0
  %v1694 = vsel %vm641, %v1689, 0
  %1696 = vmatprep.subr.bf16.mxu0 0
  %1697 = vmatpush1.bf16.msra.mxu0 %v1694
  %1698 = vmatprep.subr.bf16.mxu0 0
  %1699 = vmatpush1.bf16.msra.mxu0 0
  %1700 = vmatprep.subr.bf16.mxu0 0
  %1701 = vmatpush1.bf16.msra.mxu0 0
  %1702 = vmatprep.subr.bf16.mxu0 0
  %1703 = vmatpush1.bf16.msra.mxu0 0
  %1704 = vmatprep.subr.bf16.mxu0 0
  %1705 = vmatpush1.bf16.msra.mxu0 0
  %1706 = vmatprep.subr.bf16.mxu0 0
  %1707 = vmatpush1.bf16.msra.mxu0 0
  %1708 = vmatprep.subr.bf16.mxu0 0
  %1709 = vmatpush1.bf16.msra.mxu0 0
  %1710 = vmatprep.subr.bf16.mxu0 0
  %1711 = vmatpush1.bf16.msra.mxu0 0
  %1712 = vmatprep.subr.bf16.mxu0 0
  %1713 = vmatpush1.bf16.msra.mxu0 0
  %1714 = vmatprep.subr.bf16.mxu0 0
  %1715 = vmatpush1.bf16.msra.mxu0 0
  %1716 = vmatprep.subr.bf16.mxu0 0
  %1717 = vmatpush1.bf16.msra.mxu0 0
  %1718 = vmatprep.subr.bf16.mxu0 0
  %1719 = vmatpush1.bf16.msra.mxu0 0
  %1720 = vmatprep.subr.bf16.mxu0 0
  %1721 = vmatpush1.bf16.msra.mxu0 0
  %1722 = vmatprep.subr.bf16.mxu0 0
  %1723 = vmatpush1.bf16.msra.mxu0 0
  %1724 = vmatprep.subr.bf16.mxu0 0
  %1725 = vmatpush1.bf16.msra.mxu0 0
  %1726 = vmatprep.subr.bf16.mxu0 0
  %1727 = vmatpush1.bf16.msra.mxu0 0
  %1728 = vmatprep.mubr.bf16.mxu0 0
  %1729 = vmatmul.mubr.bf16.gmra.mrb[0].mxu0 %v1691
  %v1730 = vpop.f32.mrb[0].mxu0
  %v1731 = vadd.f32 0.0, %v1730
  %v1732 = vpop.f32.mrb[0].mxu0
  %v1733 = vpop.f32.mrb[0].mxu0
  %v1734 = vpop.f32.mrb[0].mxu0
  %1735 = vdwg.mxu0
  %v1736 = vmul.f32 %v1587, %v1536
  %v1737 = vmul.f32 %v1635, %v1537
  %v1738 = vmul.f32 %v1683, %v1538
  %v1739 = vmul.f32 %v1731, %v1539
  %v1740 = vpack.c.bf16 %v1737, %v1736
  %v1741 = vpack.c.bf16 %v1739, %v1738
  %1744 = vrot.lane.b32.xlu0 %v1740, 16
  %v1745 = vpop.permute.xlu0 %1744
  %1746 = vrot.lane.b32.xlu0 %v1741, 16
  %v1747 = vpop.permute.xlu0 %1746
  %vm1750 = vcmask 195712
  %1751 = vst.msk [vmem:[#allocation2] sm:$0xff] %vm1750, %v1745
  %1752 = vst.msk [vmem:[#allocation2 + $0x8] sm:$0xff] %vm1750, %v1747
  %1753 = vrot.lane.b32.xlu0 %v377, 104
  %v1754 = vpop.permute.xlu0 %1753
  %1755 = vrot.lane.b32.xlu0 %v387, 104
  %v1756 = vpop.permute.xlu0 %1755
  %v1758 = vsel %vm401, %v1754, 0
  %v1761 = vsel %vm401, %v1756, 0
  %1763 = vmatprep.subr.bf16.mxu0 0
  %1764 = vmatpush1.bf16.xpose.msra.mxu0 %v1761
  %1765 = vmatprep.subr.bf16.mxu0 0
  %1766 = vmatpush1.bf16.xpose.msra.mxu0 0
  %1767 = vmatprep.subr.bf16.mxu0 0
  %1768 = vmatpush1.bf16.xpose.msra.mxu0 0
  %1769 = vmatprep.subr.bf16.mxu0 0
  %1770 = vmatpush1.bf16.xpose.msra.mxu0 0
  %1771 = vmatprep.subr.bf16.mxu0 0
  %1772 = vmatpush1.bf16.xpose.msra.mxu0 0
  %1773 = vmatprep.subr.bf16.mxu0 0
  %1774 = vmatpush1.bf16.xpose.msra.mxu0 0
  %1775 = vmatprep.subr.bf16.mxu0 0
  %1776 = vmatpush1.bf16.xpose.msra.mxu0 0
  %1777 = vmatprep.subr.bf16.mxu0 0
  %1778 = vmatpush1.bf16.xpose.msra.mxu0 0
  %1779 = vmatprep.subr.bf16.mxu0 0
  %1780 = vmatpush1.bf16.xpose.msra.mxu0 0
  %1781 = vmatprep.subr.bf16.mxu0 0
  %1782 = vmatpush1.bf16.xpose.msra.mxu0 0
  %1783 = vmatprep.subr.bf16.mxu0 0
  %1784 = vmatpush1.bf16.xpose.msra.mxu0 0
  %1785 = vmatprep.subr.bf16.mxu0 0
  %1786 = vmatpush1.bf16.xpose.msra.mxu0 0
  %1787 = vmatprep.subr.bf16.mxu0 0
  %1788 = vmatpush1.bf16.xpose.msra.mxu0 0
  %1789 = vmatprep.subr.bf16.mxu0 0
  %1790 = vmatpush1.bf16.xpose.msra.mxu0 0
  %1791 = vmatprep.subr.bf16.mxu0 0
  %1792 = vmatpush1.bf16.xpose.msra.mxu0 0
  %1793 = vmatprep.subr.bf16.mxu0 0
  %1794 = vmatpush1.bf16.xpose.msra.mxu0 0
  %1795 = vmatprep.mubr.bf16.mxu0 0
  %1796 = vmatmul.mubr.bf16.gmra.mrb[0].mxu0 %v1758
  %v1797 = vpop.f32.mrb[0].mxu0
  %v1798 = vadd.f32 0.0, %v1797
  %v1799 = vpop.f32.mrb[0].mxu0
  %v1800 = vpop.f32.mrb[0].mxu0
  %v1801 = vpop.f32.mrb[0].mxu0
  %1802 = vdwg.mxu0
  %1803 = vrot.lane.b32.xlu0 %v378, 104
  %v1804 = vpop.permute.xlu0 %1803
  %1805 = vrot.lane.b32.xlu0 %v388, 104
  %v1806 = vpop.permute.xlu0 %1805
  %v1808 = vsel %vm401, %v1804, 0
  %v1811 = vsel %vm401, %v1806, 0
  %1813 = vmatprep.subr.bf16.mxu0 0
  %1814 = vmatpush1.bf16.xpose.msra.mxu0 %v1811
  %1815 = vmatprep.subr.bf16.mxu0 0
  %1816 = vmatpush1.bf16.xpose.msra.mxu0 0
  %1817 = vmatprep.subr.bf16.mxu0 0
  %1818 = vmatpush1.bf16.xpose.msra.mxu0 0
  %1819 = vmatprep.subr.bf16.mxu0 0
  %1820 = vmatpush1.bf16.xpose.msra.mxu0 0
  %1821 = vmatprep.subr.bf16.mxu0 0
  %1822 = vmatpush1.bf16.xpose.msra.mxu0 0
  %1823 = vmatprep.subr.bf16.mxu0 0
  %1824 = vmatpush1.bf16.xpose.msra.mxu0 0
  %1825 = vmatprep.subr.bf16.mxu0 0
  %1826 = vmatpush1.bf16.xpose.msra.mxu0 0
  %1827 = vmatprep.subr.bf16.mxu0 0
  %1828 = vmatpush1.bf16.xpose.msra.mxu0 0
  %1829 = vmatprep.subr.bf16.mxu0 0
  %1830 = vmatpush1.bf16.xpose.msra.mxu0 0
  %1831 = vmatprep.subr.bf16.mxu0 0
  %1832 = vmatpush1.bf16.xpose.msra.mxu0 0
  %1833 = vmatprep.subr.bf16.mxu0 0
  %1834 = vmatpush1.bf16.xpose.msra.mxu0 0
  %1835 = vmatprep.subr.bf16.mxu0 0
  %1836 = vmatpush1.bf16.xpose.msra.mxu0 0
  %1837 = vmatprep.subr.bf16.mxu0 0
  %1838 = vmatpush1.bf16.xpose.msra.mxu0 0
  %1839 = vmatprep.subr.bf16.mxu0 0
  %1840 = vmatpush1.bf16.xpose.msra.mxu0 0
  %1841 = vmatprep.subr.bf16.mxu0 0
  %1842 = vmatpush1.bf16.xpose.msra.mxu0 0
  %1843 = vmatprep.subr.bf16.mxu0 0
  %1844 = vmatpush1.bf16.xpose.msra.mxu0 0
  %1845 = vmatprep.mubr.bf16.mxu0 0
  %1846 = vmatmul.mubr.bf16.gmra.mrb[0].mxu0 %v1808
  %v1847 = vpop.f32.mrb[0].mxu0
  %v1848 = vadd.f32 0.0, %v1847
  %v1849 = vpop.f32.mrb[0].mxu0
  %v1850 = vpop.f32.mrb[0].mxu0
  %v1851 = vpop.f32.mrb[0].mxu0
  %1852 = vdwg.mxu0
  %1853 = vrot.lane.b32.xlu0 %v379, 104
  %v1854 = vpop.permute.xlu0 %1853
  %1855 = vrot.lane.b32.xlu0 %v389, 104
  %v1856 = vpop.permute.xlu0 %1855
  %v1858 = vsel %vm401, %v1854, 0
  %v1861 = vsel %vm401, %v1856, 0
  %1863 = vmatprep.subr.bf16.mxu0 0
  %1864 = vmatpush1.bf16.xpose.msra.mxu0 %v1861
  %1865 = vmatprep.subr.bf16.mxu0 0
  %1866 = vmatpush1.bf16.xpose.msra.mxu0 0
  %1867 = vmatprep.subr.bf16.mxu0 0
  %1868 = vmatpush1.bf16.xpose.msra.mxu0 0
  %1869 = vmatprep.subr.bf16.mxu0 0
  %1870 = vmatpush1.bf16.xpose.msra.mxu0 0
  %1871 = vmatprep.subr.bf16.mxu0 0
  %1872 = vmatpush1.bf16.xpose.msra.mxu0 0
  %1873 = vmatprep.subr.bf16.mxu0 0
  %1874 = vmatpush1.bf16.xpose.msra.mxu0 0
  %1875 = vmatprep.subr.bf16.mxu0 0
  %1876 = vmatpush1.bf16.xpose.msra.mxu0 0
  %1877 = vmatprep.subr.bf16.mxu0 0
  %1878 = vmatpush1.bf16.xpose.msra.mxu0 0
  %1879 = vmatprep.subr.bf16.mxu0 0
  %1880 = vmatpush1.bf16.xpose.msra.mxu0 0
  %1881 = vmatprep.subr.bf16.mxu0 0
  %1882 = vmatpush1.bf16.xpose.msra.mxu0 0
  %1883 = vmatprep.subr.bf16.mxu0 0
  %1884 = vmatpush1.bf16.xpose.msra.mxu0 0
  %1885 = vmatprep.subr.bf16.mxu0 0
  %1886 = vmatpush1.bf16.xpose.msra.mxu0 0
  %1887 = vmatprep.subr.bf16.mxu0 0
  %1888 = vmatpush1.bf16.xpose.msra.mxu0 0
  %1889 = vmatprep.subr.bf16.mxu0 0
  %1890 = vmatpush1.bf16.xpose.msra.mxu0 0
  %1891 = vmatprep.subr.bf16.mxu0 0
  %1892 = vmatpush1.bf16.xpose.msra.mxu0 0
  %1893 = vmatprep.subr.bf16.mxu0 0
  %1894 = vmatpush1.bf16.xpose.msra.mxu0 0
  %1895 = vmatprep.mubr.bf16.mxu0 0
  %1896 = vmatmul.mubr.bf16.gmra.mrb[0].mxu0 %v1858
  %v1897 = vpop.f32.mrb[0].mxu0
  %v1898 = vadd.f32 0.0, %v1897
  %v1899 = vpop.f32.mrb[0].mxu0
  %v1900 = vpop.f32.mrb[0].mxu0
  %v1901 = vpop.f32.mrb[0].mxu0
  %1902 = vdwg.mxu0
  %1903 = vrot.lane.b32.xlu0 %v380, 104
  %v1904 = vpop.permute.xlu0 %1903
  %1905 = vrot.lane.b32.xlu0 %v390, 104
  %v1906 = vpop.permute.xlu0 %1905
  %v1908 = vsel %vm401, %v1904, 0
  %v1911 = vsel %vm401, %v1906, 0
  %1913 = vmatprep.subr.bf16.mxu0 0
  %1914 = vmatpush1.bf16.xpose.msra.mxu0 %v1911
  %1915 = vmatprep.subr.bf16.mxu0 0
  %1916 = vmatpush1.bf16.xpose.msra.mxu0 0
  %1917 = vmatprep.subr.bf16.mxu0 0
  %1918 = vmatpush1.bf16.xpose.msra.mxu0 0
  %1919 = vmatprep.subr.bf16.mxu0 0
  %1920 = vmatpush1.bf16.xpose.msra.mxu0 0
  %1921 = vmatprep.subr.bf16.mxu0 0
  %1922 = vmatpush1.bf16.xpose.msra.mxu0 0
  %1923 = vmatprep.subr.bf16.mxu0 0
  %1924 = vmatpush1.bf16.xpose.msra.mxu0 0
  %1925 = vmatprep.subr.bf16.mxu0 0
  %1926 = vmatpush1.bf16.xpose.msra.mxu0 0
  %1927 = vmatprep.subr.bf16.mxu0 0
  %1928 = vmatpush1.bf16.xpose.msra.mxu0 0
  %1929 = vmatprep.subr.bf16.mxu0 0
  %1930 = vmatpush1.bf16.xpose.msra.mxu0 0
  %1931 = vmatprep.subr.bf16.mxu0 0
  %1932 = vmatpush1.bf16.xpose.msra.mxu0 0
  %1933 = vmatprep.subr.bf16.mxu0 0
  %1934 = vmatpush1.bf16.xpose.msra.mxu0 0
  %1935 = vmatprep.subr.bf16.mxu0 0
  %1936 = vmatpush1.bf16.xpose.msra.mxu0 0
  %1937 = vmatprep.subr.bf16.mxu0 0
  %1938 = vmatpush1.bf16.xpose.msra.mxu0 0
  %1939 = vmatprep.subr.bf16.mxu0 0
  %1940 = vmatpush1.bf16.xpose.msra.mxu0 0
  %1941 = vmatprep.subr.bf16.mxu0 0
  %1942 = vmatpush1.bf16.xpose.msra.mxu0 0
  %1943 = vmatprep.subr.bf16.mxu0 0
  %1944 = vmatpush1.bf16.xpose.msra.mxu0 0
  %1945 = vmatprep.mubr.bf16.mxu0 0
  %1946 = vmatmul.mubr.bf16.gmra.mrb[0].mxu0 %v1908
  %v1947 = vpop.f32.mrb[0].mxu0
  %v1948 = vadd.f32 0.0, %v1947
  %v1949 = vpop.f32.mrb[0].mxu0
  %v1950 = vpop.f32.mrb[0].mxu0
  %v1951 = vpop.f32.mrb[0].mxu0
  %1952 = vdwg.mxu0
  %v1953 = vmul.f32 %v1798, 0.35355338
  %v1954 = vmul.f32 %v1848, 0.35355338
  %v1955 = vmul.f32 %v1898, 0.35355338
  %v1956 = vmul.f32 %v1948, 0.35355338
  %v1957 = vadd.f32 %v1953, %v370
  %v1958 = vadd.f32 %v1954, %v370
  %v1959 = vadd.f32 %v1955, %v370
  %v1960 = vadd.f32 %v1956, %v370
  %v1961 = vsel %vm401, %v1957, -inf
  %1962 = vmax.xlane.f32.xlu0 %v1961
  %v1963 = vpop.xlane.xlu0 %1962
  %v1964 = vsel %vm401, %v1958, -inf
  %1965 = vmax.xlane.f32.xlu0 %v1964
  %v1966 = vpop.xlane.xlu0 %1965
  %v1967 = vsel %vm401, %v1959, -inf
  %1968 = vmax.xlane.f32.xlu0 %v1967
  %v1969 = vpop.xlane.xlu0 %1968
  %v1970 = vsel %vm401, %v1960, -inf
  %1971 = vmax.xlane.f32.xlu0 %v1970
  %v1972 = vpop.xlane.xlu0 %1971
  %v1973 = vsub.f32 %v1957, %v1963
  %v1974 = vsub.f32 %v1958, %v1966
  %v1975 = vsub.f32 %v1959, %v1969
  %v1976 = vsub.f32 %v1960, %v1972
  %v1977 = vmul.f32 %v1973, 1.442695
  %v1978 = vpow.pop %v1977
  %v1979 = vmul.f32 %v1974, 1.442695
  %v1980 = vpow.pop %v1979
  %v1981 = vmul.f32 %v1975, 1.442695
  %v1982 = vpow.pop %v1981
  %v1983 = vmul.f32 %v1976, 1.442695
  %v1984 = vpow.pop %v1983
  %v1985 = vsel %vm401, %v1978, 0.0
  %1986 = vadd.xlane.f32.xlu0 %v1985
  %v1987 = vpop.xlane.xlu0 %1986
  %v1988 = vsel %vm401, %v1980, 0.0
  %1989 = vadd.xlane.f32.xlu0 %v1988
  %v1990 = vpop.xlane.xlu0 %1989
  %v1991 = vsel %vm401, %v1982, 0.0
  %1992 = vadd.xlane.f32.xlu0 %v1991
  %v1993 = vpop.xlane.xlu0 %1992
  %v1994 = vsel %vm401, %v1984, 0.0
  %1995 = vadd.xlane.f32.xlu0 %v1994
  %v1996 = vpop.xlane.xlu0 %1995
  %v1997 = vrcp.pop %v1987
  %v1998 = vrcp.pop %v1990
  %v1999 = vrcp.pop %v1993
  %v2000 = vrcp.pop %v1996
  %v2001 = vpack.c.bf16 %v1978, %v1978
  %v2002 = vpack.c.bf16 %v1980, %v1980
  %v2003 = vpack.c.bf16 %v1982, %v1982
  %v2004 = vpack.c.bf16 %v1984, %v1984
  %2005 = vrot.lane.b32.xlu0 %v397, 104
  %v2006 = vpop.permute.xlu0 %2005
  %v2008 = vsel %vm401, %v2001, 0
  %v2011 = vsel %vm641, %v2006, 0
  %2013 = vmatprep.subr.bf16.mxu0 0
  %2014 = vmatpush1.bf16.msra.mxu0 %v2011
  %2015 = vmatprep.subr.bf16.mxu0 0
  %2016 = vmatpush1.bf16.msra.mxu0 0
  %2017 = vmatprep.subr.bf16.mxu0 0
  %2018 = vmatpush1.bf16.msra.mxu0 0
  %2019 = vmatprep.subr.bf16.mxu0 0
  %2020 = vmatpush1.bf16.msra.mxu0 0
  %2021 = vmatprep.subr.bf16.mxu0 0
  %2022 = vmatpush1.bf16.msra.mxu0 0
  %2023 = vmatprep.subr.bf16.mxu0 0
  %2024 = vmatpush1.bf16.msra.mxu0 0
  %2025 = vmatprep.subr.bf16.mxu0 0
  %2026 = vmatpush1.bf16.msra.mxu0 0
  %2027 = vmatprep.subr.bf16.mxu0 0
  %2028 = vmatpush1.bf16.msra.mxu0 0
  %2029 = vmatprep.subr.bf16.mxu0 0
  %2030 = vmatpush1.bf16.msra.mxu0 0
  %2031 = vmatprep.subr.bf16.mxu0 0
  %2032 = vmatpush1.bf16.msra.mxu0 0
  %2033 = vmatprep.subr.bf16.mxu0 0
  %2034 = vmatpush1.bf16.msra.mxu0 0
  %2035 = vmatprep.subr.bf16.mxu0 0
  %2036 = vmatpush1.bf16.msra.mxu0 0
  %2037 = vmatprep.subr.bf16.mxu0 0
  %2038 = vmatpush1.bf16.msra.mxu0 0
  %2039 = vmatprep.subr.bf16.mxu0 0
  %2040 = vmatpush1.bf16.msra.mxu0 0
  %2041 = vmatprep.subr.bf16.mxu0 0
  %2042 = vmatpush1.bf16.msra.mxu0 0
  %2043 = vmatprep.subr.bf16.mxu0 0
  %2044 = vmatpush1.bf16.msra.mxu0 0
  %2045 = vmatprep.mubr.bf16.mxu0 0
  %2046 = vmatmul.mubr.bf16.gmra.mrb[0].mxu0 %v2008
  %v2047 = vpop.f32.mrb[0].mxu0
  %v2048 = vadd.f32 0.0, %v2047
  %v2049 = vpop.f32.mrb[0].mxu0
  %v2050 = vpop.f32.mrb[0].mxu0
  %v2051 = vpop.f32.mrb[0].mxu0
  %2052 = vdwg.mxu0
  %2053 = vrot.lane.b32.xlu0 %v398, 104
  %v2054 = vpop.permute.xlu0 %2053
  %v2056 = vsel %vm401, %v2002, 0
  %v2059 = vsel %vm641, %v2054, 0
  %2061 = vmatprep.subr.bf16.mxu0 0
  %2062 = vmatpush1.bf16.msra.mxu0 %v2059
  %2063 = vmatprep.subr.bf16.mxu0 0
  %2064 = vmatpush1.bf16.msra.mxu0 0
  %2065 = vmatprep.subr.bf16.mxu0 0
  %2066 = vmatpush1.bf16.msra.mxu0 0
  %2067 = vmatprep.subr.bf16.mxu0 0
  %2068 = vmatpush1.bf16.msra.mxu0 0
  %2069 = vmatprep.subr.bf16.mxu0 0
  %2070 = vmatpush1.bf16.msra.mxu0 0
  %2071 = vmatprep.subr.bf16.mxu0 0
  %2072 = vmatpush1.bf16.msra.mxu0 0
  %2073 = vmatprep.subr.bf16.mxu0 0
  %2074 = vmatpush1.bf16.msra.mxu0 0
  %2075 = vmatprep.subr.bf16.mxu0 0
  %2076 = vmatpush1.bf16.msra.mxu0 0
  %2077 = vmatprep.subr.bf16.mxu0 0
  %2078 = vmatpush1.bf16.msra.mxu0 0
  %2079 = vmatprep.subr.bf16.mxu0 0
  %2080 = vmatpush1.bf16.msra.mxu0 0
  %2081 = vmatprep.subr.bf16.mxu0 0
  %2082 = vmatpush1.bf16.msra.mxu0 0
  %2083 = vmatprep.subr.bf16.mxu0 0
  %2084 = vmatpush1.bf16.msra.mxu0 0
  %2085 = vmatprep.subr.bf16.mxu0 0
  %2086 = vmatpush1.bf16.msra.mxu0 0
  %2087 = vmatprep.subr.bf16.mxu0 0
  %2088 = vmatpush1.bf16.msra.mxu0 0
  %2089 = vmatprep.subr.bf16.mxu0 0
  %2090 = vmatpush1.bf16.msra.mxu0 0
  %2091 = vmatprep.subr.bf16.mxu0 0
  %2092 = vmatpush1.bf16.msra.mxu0 0
  %2093 = vmatprep.mubr.bf16.mxu0 0
  %2094 = vmatmul.mubr.bf16.gmra.mrb[0].mxu0 %v2056
  %v2095 = vpop.f32.mrb[0].mxu0
  %v2096 = vadd.f32 0.0, %v2095
  %v2097 = vpop.f32.mrb[0].mxu0
  %v2098 = vpop.f32.mrb[0].mxu0
  %v2099 = vpop.f32.mrb[0].mxu0
  %2100 = vdwg.mxu0
  %2101 = vrot.lane.b32.xlu0 %v399, 104
  %v2102 = vpop.permute.xlu0 %2101
  %v2104 = vsel %vm401, %v2003, 0
  %v2107 = vsel %vm641, %v2102, 0
  %2109 = vmatprep.subr.bf16.mxu0 0
  %2110 = vmatpush1.bf16.msra.mxu0 %v2107
  %2111 = vmatprep.subr.bf16.mxu0 0
  %2112 = vmatpush1.bf16.msra.mxu0 0
  %2113 = vmatprep.subr.bf16.mxu0 0
  %2114 = vmatpush1.bf16.msra.mxu0 0
  %2115 = vmatprep.subr.bf16.mxu0 0
  %2116 = vmatpush1.bf16.msra.mxu0 0
  %2117 = vmatprep.subr.bf16.mxu0 0
  %2118 = vmatpush1.bf16.msra.mxu0 0
  %2119 = vmatprep.subr.bf16.mxu0 0
  %2120 = vmatpush1.bf16.msra.mxu0 0
  %2121 = vmatprep.subr.bf16.mxu0 0
  %2122 = vmatpush1.bf16.msra.mxu0 0
  %2123 = vmatprep.subr.bf16.mxu0 0
  %2124 = vmatpush1.bf16.msra.mxu0 0
  %2125 = vmatprep.subr.bf16.mxu0 0
  %2126 = vmatpush1.bf16.msra.mxu0 0
  %2127 = vmatprep.subr.bf16.mxu0 0
  %2128 = vmatpush1.bf16.msra.mxu0 0
  %2129 = vmatprep.subr.bf16.mxu0 0
  %2130 = vmatpush1.bf16.msra.mxu0 0
  %2131 = vmatprep.subr.bf16.mxu0 0
  %2132 = vmatpush1.bf16.msra.mxu0 0
  %2133 = vmatprep.subr.bf16.mxu0 0
  %2134 = vmatpush1.bf16.msra.mxu0 0
  %2135 = vmatprep.subr.bf16.mxu0 0
  %2136 = vmatpush1.bf16.msra.mxu0 0
  %2137 = vmatprep.subr.bf16.mxu0 0
  %2138 = vmatpush1.bf16.msra.mxu0 0
  %2139 = vmatprep.subr.bf16.mxu0 0
  %2140 = vmatpush1.bf16.msra.mxu0 0
  %2141 = vmatprep.mubr.bf16.mxu0 0
  %2142 = vmatmul.mubr.bf16.gmra.mrb[0].mxu0 %v2104
  %v2143 = vpop.f32.mrb[0].mxu0
  %v2144 = vadd.f32 0.0, %v2143
  %v2145 = vpop.f32.mrb[0].mxu0
  %v2146 = vpop.f32.mrb[0].mxu0
  %v2147 = vpop.f32.mrb[0].mxu0
  %2148 = vdwg.mxu0
  %2149 = vrot.lane.b32.xlu0 %v400, 104
  %v2150 = vpop.permute.xlu0 %2149
  %v2152 = vsel %vm401, %v2004, 0
  %v2155 = vsel %vm641, %v2150, 0
  %2157 = vmatprep.subr.bf16.mxu0 0
  %2158 = vmatpush1.bf16.msra.mxu0 %v2155
  %2159 = vmatprep.subr.bf16.mxu0 0
  %2160 = vmatpush1.bf16.msra.mxu0 0
  %2161 = vmatprep.subr.bf16.mxu0 0
  %2162 = vmatpush1.bf16.msra.mxu0 0
  %2163 = vmatprep.subr.bf16.mxu0 0
  %2164 = vmatpush1.bf16.msra.mxu0 0
  %2165 = vmatprep.subr.bf16.mxu0 0
  %2166 = vmatpush1.bf16.msra.mxu0 0
  %2167 = vmatprep.subr.bf16.mxu0 0
  %2168 = vmatpush1.bf16.msra.mxu0 0
  %2169 = vmatprep.subr.bf16.mxu0 0
  %2170 = vmatpush1.bf16.msra.mxu0 0
  %2171 = vmatprep.subr.bf16.mxu0 0
  %2172 = vmatpush1.bf16.msra.mxu0 0
  %2173 = vmatprep.subr.bf16.mxu0 0
  %2174 = vmatpush1.bf16.msra.mxu0 0
  %2175 = vmatprep.subr.bf16.mxu0 0
  %2176 = vmatpush1.bf16.msra.mxu0 0
  %2177 = vmatprep.subr.bf16.mxu0 0
  %2178 = vmatpush1.bf16.msra.mxu0 0
  %2179 = vmatprep.subr.bf16.mxu0 0
  %2180 = vmatpush1.bf16.msra.mxu0 0
  %2181 = vmatprep.subr.bf16.mxu0 0
  %2182 = vmatpush1.bf16.msra.mxu0 0
  %2183 = vmatprep.subr.bf16.mxu0 0
  %2184 = vmatpush1.bf16.msra.mxu0 0
  %2185 = vmatprep.subr.bf16.mxu0 0
  %2186 = vmatpush1.bf16.msra.mxu0 0
  %2187 = vmatprep.subr.bf16.mxu0 0
  %2188 = vmatpush1.bf16.msra.mxu0 0
  %2189 = vmatprep.mubr.bf16.mxu0 0
  %2190 = vmatmul.mubr.bf16.gmra.mrb[0].mxu0 %v2152
  %v2191 = vpop.f32.mrb[0].mxu0
  %v2192 = vadd.f32 0.0, %v2191
  %v2193 = vpop.f32.mrb[0].mxu0
  %v2194 = vpop.f32.mrb[0].mxu0
  %v2195 = vpop.f32.mrb[0].mxu0
  %2196 = vdwg.mxu0
  %v2197 = vmul.f32 %v2048, %v1997
  %v2198 = vmul.f32 %v2096, %v1998
  %v2199 = vmul.f32 %v2144, %v1999
  %v2200 = vmul.f32 %v2192, %v2000
  %v2201 = vpack.c.bf16 %v2198, %v2197
  %v2202 = vpack.c.bf16 %v2200, %v2199
  %2205 = vrot.lane.b32.xlu0 %v2201, 24
  %v2206 = vpop.permute.xlu0 %2205
  %2207 = vrot.lane.b32.xlu0 %v2202, 24
  %v2208 = vpop.permute.xlu0 %2207
  %vm2211 = vcmask 261312
  %2212 = vst.msk [vmem:[#allocation2] sm:$0xff] %vm2211, %v2206
  %2213 = vst.msk [vmem:[#allocation2 + $0x8] sm:$0xff] %vm2211, %v2208
  %v2214 = vld [vmem:[#allocation2] sm:$0xff]
  %v2215 = vld [vmem:[#allocation2 + $0x8] sm:$0xff]
  %v2216 = vld [vmem:[%s9] sm:$0xf]
  %v2217 = vld [vmem:[%s9 + $0x4] sm:$0xf]
  %v2218 = vld [vmem:[%s9 + $0x8] sm:$0xf]
  %v2219 = vld [vmem:[%s9 + $0xc] sm:$0xf]
  %v2224 = vunpack.c.l.b16 %v2216
  %v2225 = vunpack.c.l.b16 %v2217
  %v2226 = vunpack.c.l.b16 %v2218
  %v2227 = vunpack.c.l.b16 %v2219
  %v2228 = vpack.c.b16 %v2225, %v2224
  %v2229 = vpack.c.b16 %v2227, %v2226
  %v2233 = vsel %vm61, %v2214, 0
  %v2236 = vsel %vm61, %v2215, 0
  %2238 = vmatprep.subr.bf16.mxu0 0
  %2239 = vmatpush1.bf16.msra.mxu0 %v2228
  %2240 = vmatprep.subr.bf16.mxu0 0
  %2241 = vmatpush1.bf16.msra.mxu0 %v2229
  %2242 = vmatprep.subr.bf16.mxu0 0
  %2243 = vmatpush1.bf16.msra.mxu0 0
  %2244 = vmatprep.subr.bf16.mxu0 0
  %2245 = vmatpush1.bf16.msra.mxu0 0
  %2246 = vmatprep.subr.bf16.mxu0 0
  %2247 = vmatpush1.bf16.msra.mxu0 0
  %2248 = vmatprep.subr.bf16.mxu0 0
  %2249 = vmatpush1.bf16.msra.mxu0 0
  %2250 = vmatprep.subr.bf16.mxu0 0
  %2251 = vmatpush1.bf16.msra.mxu0 0
  %2252 = vmatprep.subr.bf16.mxu0 0
  %2253 = vmatpush1.bf16.msra.mxu0 0
  %2254 = vmatprep.subr.bf16.mxu0 0
  %2255 = vmatpush1.bf16.msra.mxu0 0
  %2256 = vmatprep.subr.bf16.mxu0 0
  %2257 = vmatpush1.bf16.msra.mxu0 0
  %2258 = vmatprep.subr.bf16.mxu0 0
  %2259 = vmatpush1.bf16.msra.mxu0 0
  %2260 = vmatprep.subr.bf16.mxu0 0
  %2261 = vmatpush1.bf16.msra.mxu0 0
  %2262 = vmatprep.subr.bf16.mxu0 0
  %2263 = vmatpush1.bf16.msra.mxu0 0
  %2264 = vmatprep.subr.bf16.mxu0 0
  %2265 = vmatpush1.bf16.msra.mxu0 0
  %2266 = vmatprep.subr.bf16.mxu0 0
  %2267 = vmatpush1.bf16.msra.mxu0 0
  %2268 = vmatprep.subr.bf16.mxu0 0
  %2269 = vmatpush1.bf16.msra.mxu0 0
  %2270 = vmatprep.mubr.bf16.mxu0 0
  %2271 = vmatmul.mubr.bf16.gmra.mrb[0].mxu0 %v2233
  %v2272 = vpop.f32.mrb[0].mxu0
  %v2273 = vadd.f32 0.0, %v2272
  %v2274 = vpop.f32.mrb[0].mxu0
  %v2275 = vpop.f32.mrb[0].mxu0
  %v2276 = vadd.f32 0.0, %v2275
  %v2277 = vpop.f32.mrb[0].mxu0
  %2278 = vmatprep.mubr.bf16.mxu0 0
  %2279 = vmatmul.mubr.bf16.gmra.mrb[0].mxu0 %v2236
  %v2280 = vpop.f32.mrb[0].mxu0
  %v2281 = vadd.f32 0.0, %v2280
  %v2282 = vpop.f32.mrb[0].mxu0
  %v2283 = vpop.f32.mrb[0].mxu0
  %v2284 = vadd.f32 0.0, %v2283
  %v2285 = vpop.f32.mrb[0].mxu0
  %2286 = vdwg.mxu0
  %v2287 = vadd.f32 %v57, %v2273
  %v2288 = vadd.f32 %v58, %v2276
  %v2289 = vadd.f32 %v59, %v2281
  %v2290 = vadd.f32 %v60, %v2284
  %v2291 = vld [vmem:[%s10] sm:$0x1]
  %v2293 = vlaneseq
  %v2294 = vshrl.u32 %v2293, 7
  %v2295 = vsub.s32 0, %v2294
  %v2296 = vrot.slane %v2291, %v2295
  %v2298 = vadd.f32 %v2287, %v2296
  %v2299 = vadd.f32 %v2288, %v2296
  %v2300 = vadd.f32 %v2289, %v2296
  %v2301 = vadd.f32 %v2290, %v2296
  %v2302 = vsel %vm61, %v2298, 0.0
  %2303 = vadd.xlane.f32.xlu0 %v2302
  %v2304 = vpop.xlane.xlu0 %2303
  %v2305 = vsel %vm61, %v2299, 0.0
  %2306 = vadd.xlane.f32.xlu0 %v2305
  %v2307 = vpop.xlane.xlu0 %2306
  %v2308 = vsel %vm61, %v2300, 0.0
  %2309 = vadd.xlane.f32.xlu0 %v2308
  %v2310 = vpop.xlane.xlu0 %2309
  %v2311 = vsel %vm61, %v2301, 0.0
  %2312 = vadd.xlane.f32.xlu0 %v2311
  %v2313 = vpop.xlane.xlu0 %2312
  %v2314 = vmul.f32 %v2304, %v74
  %v2315 = vmul.f32 %v2307, %v74
  %v2316 = vmul.f32 %v2310, %v74
  %v2317 = vmul.f32 %v2313, %v74
  %v2318 = vsub.f32 %v2298, %v2314
  %v2319 = vsub.f32 %v2299, %v2315
  %v2320 = vsub.f32 %v2300, %v2316
  %v2321 = vsub.f32 %v2301, %v2317
  %v2322 = vmul.f32 %v2318, %v2318
  %v2323 = vmul.f32 %v2319, %v2319
  %v2324 = vmul.f32 %v2320, %v2320
  %v2325 = vmul.f32 %v2321, %v2321
  %v2326 = vsel %vm61, %v2322, 0.0
  %2327 = vadd.xlane.f32.xlu0 %v2326
  %v2328 = vpop.xlane.xlu0 %2327
  %v2329 = vsel %vm61, %v2323, 0.0
  %2330 = vadd.xlane.f32.xlu0 %v2329
  %v2331 = vpop.xlane.xlu0 %2330
  %v2332 = vsel %vm61, %v2324, 0.0
  %2333 = vadd.xlane.f32.xlu0 %v2332
  %v2334 = vpop.xlane.xlu0 %2333
  %v2335 = vsel %vm61, %v2325, 0.0
  %2336 = vadd.xlane.f32.xlu0 %v2335
  %v2337 = vpop.xlane.xlu0 %2336
  %v2338 = vmul.f32 %v2328, %v74
  %v2339 = vmul.f32 %v2331, %v74
  %v2340 = vmul.f32 %v2334, %v74
  %v2341 = vmul.f32 %v2337, %v74
  %v2342 = vadd.f32 %v2338, 1e-05
  %v2343 = vadd.f32 %v2339, 1e-05
  %v2344 = vadd.f32 %v2340, 1e-05
  %v2345 = vadd.f32 %v2341, 1e-05
  %v2346 = vrsqrt.pop %v2342
  %v2347 = vrsqrt.pop %v2343
  %v2348 = vrsqrt.pop %v2344
  %v2349 = vrsqrt.pop %v2345
  %v2350 = vmul.f32 %v2318, %v2346
  %v2351 = vmul.f32 %v2319, %v2347
  %v2352 = vmul.f32 %v2320, %v2348
  %v2353 = vmul.f32 %v2321, %v2349
  %v2354 = vld [vmem:[%s11] sm:$0x1]
  %v2356 = vlaneseq
  %v2357 = vshrl.u32 %v2356, 7
  %v2358 = vsub.s32 0, %v2357
  %v2359 = vrot.slane %v2354, %v2358
  %v2361 = vmul.f32 %v2350, %v2359
  %v2362 = vmul.f32 %v2351, %v2359
  %v2363 = vmul.f32 %v2352, %v2359
  %v2364 = vmul.f32 %v2353, %v2359
  %v2365 = vld [vmem:[%s12] sm:$0x1]
  %v2367 = vlaneseq
  %v2368 = vshrl.u32 %v2367, 7
  %v2369 = vsub.s32 0, %v2368
  %v2370 = vrot.slane %v2365, %v2369
  %v2372 = vadd.f32 %v2361, %v2370
  %v2373 = vadd.f32 %v2362, %v2370
  %v2374 = vadd.f32 %v2363, %v2370
  %v2375 = vadd.f32 %v2364, %v2370
  %v2376 = vpack.c.bf16 %v2373, %v2372
  %v2377 = vpack.c.bf16 %v2375, %v2374
  %v2378 = vld [vmem:[%s13] sm:$0xf]
  %v2379 = vld [vmem:[%s13 + $0x4] sm:$0xf]
  %v2380 = vld [vmem:[%s13 + $0x8] sm:$0xf]
  %v2381 = vld [vmem:[%s13 + $0xc] sm:$0xf]
  %v2382 = vld [vmem:[%s14] sm:$0x1]
  %v2384 = vlaneseq
  %v2385 = vshrl.u32 %v2384, 7
  %v2386 = vsub.s32 0, %v2385
  %v2387 = vrot.slane %v2382, %v2386
  %v2393 = vunpack.c.l.b16 %v2378
  %v2394 = vunpack.c.l.b16 %v2379
  %v2395 = vunpack.c.l.b16 %v2380
  %v2396 = vunpack.c.l.b16 %v2381
  %v2397 = vpack.c.b16 %v2394, %v2393
  %v2398 = vpack.c.b16 %v2396, %v2395
  %v2402 = vsel %vm61, %v2376, 0
  %v2405 = vsel %vm61, %v2377, 0
  %2407 = vmatprep.subr.bf16.mxu0 0
  %2408 = vmatpush1.bf16.msra.mxu0 %v2397
  %2409 = vmatprep.subr.bf16.mxu0 0
  %2410 = vmatpush1.bf16.msra.mxu0 %v2398
  %2411 = vmatprep.subr.bf16.mxu0 0
  %2412 = vmatpush1.bf16.msra.mxu0 0
  %2413 = vmatprep.subr.bf16.mxu0 0
  %2414 = vmatpush1.bf16.msra.mxu0 0
  %2415 = vmatprep.subr.bf16.mxu0 0
  %2416 = vmatpush1.bf16.msra.mxu0 0
  %2417 = vmatprep.subr.bf16.mxu0 0
  %2418 = vmatpush1.bf16.msra.mxu0 0
  %2419 = vmatprep.subr.bf16.mxu0 0
  %2420 = vmatpush1.bf16.msra.mxu0 0
  %2421 = vmatprep.subr.bf16.mxu0 0
  %2422 = vmatpush1.bf16.msra.mxu0 0
  %2423 = vmatprep.subr.bf16.mxu0 0
  %2424 = vmatpush1.bf16.msra.mxu0 0
  %2425 = vmatprep.subr.bf16.mxu0 0
  %2426 = vmatpush1.bf16.msra.mxu0 0
  %2427 = vmatprep.subr.bf16.mxu0 0
  %2428 = vmatpush1.bf16.msra.mxu0 0
  %2429 = vmatprep.subr.bf16.mxu0 0
  %2430 = vmatpush1.bf16.msra.mxu0 0
  %2431 = vmatprep.subr.bf16.mxu0 0
  %2432 = vmatpush1.bf16.msra.mxu0 0
  %2433 = vmatprep.subr.bf16.mxu0 0
  %2434 = vmatpush1.bf16.msra.mxu0 0
  %2435 = vmatprep.subr.bf16.mxu0 0
  %2436 = vmatpush1.bf16.msra.mxu0 0
  %2437 = vmatprep.subr.bf16.mxu0 0
  %2438 = vmatpush1.bf16.msra.mxu0 0
  %2439 = vmatprep.mubr.bf16.mxu0 0
  %2440 = vmatmul.mubr.bf16.gmra.mrb[0].mxu0 %v2402
  %v2441 = vpop.f32.mrb[0].mxu0
  %v2442 = vadd.f32 %v2387, %v2441
  %v2443 = vpop.f32.mrb[0].mxu0
  %v2444 = vpop.f32.mrb[0].mxu0
  %v2445 = vadd.f32 %v2387, %v2444
  %v2446 = vpop.f32.mrb[0].mxu0
  %2447 = vmatprep.mubr.bf16.mxu0 0
  %2448 = vmatmul.mubr.bf16.gmra.mrb[0].mxu0 %v2405
  %v2449 = vpop.f32.mrb[0].mxu0
  %v2450 = vadd.f32 %v2387, %v2449
  %v2451 = vpop.f32.mrb[0].mxu0
  %v2452 = vpop.f32.mrb[0].mxu0
  %v2453 = vadd.f32 %v2387, %v2452
  %v2454 = vpop.f32.mrb[0].mxu0
  %2455 = vdwg.mxu0
  %v2456 = vmul.f32 %v2442, %v2442
  %v2457 = vmul.f32 %v2445, %v2445
  %v2458 = vmul.f32 %v2450, %v2450
  %v2459 = vmul.f32 %v2453, %v2453
  %v2460 = vmul.f32 %v2442, %v2456
  %v2461 = vmul.f32 %v2445, %v2457
  %v2462 = vmul.f32 %v2450, %v2458
  %v2463 = vmul.f32 %v2453, %v2459
  %v2464 = vmul.f32 %v2460, 0.044715
  %v2465 = vmul.f32 %v2461, 0.044715
  %v2466 = vmul.f32 %v2462, 0.044715
  %v2467 = vmul.f32 %v2463, 0.044715
  %v2468 = vadd.f32 %v2442, %v2464
  %v2469 = vadd.f32 %v2445, %v2465
  %v2470 = vadd.f32 %v2450, %v2466
  %v2471 = vadd.f32 %v2453, %v2467
  %v2472 = vmul.f32 %v2468, 0.7978846
  %v2473 = vmul.f32 %v2469, 0.7978846
  %v2474 = vmul.f32 %v2470, 0.7978846
  %v2475 = vmul.f32 %v2471, 0.7978846
  %v2476 = vtanh.pop %v2472
  %v2477 = vtanh.pop %v2473
  %v2478 = vtanh.pop %v2474
  %v2479 = vtanh.pop %v2475
  %v2480 = vadd.f32 %v2476, 1.0
  %v2481 = vadd.f32 %v2477, 1.0
  %v2482 = vadd.f32 %v2478, 1.0
  %v2483 = vadd.f32 %v2479, 1.0
  %v2484 = vmul.f32 %v2480, 0.5
  %v2485 = vmul.f32 %v2481, 0.5
  %v2486 = vmul.f32 %v2482, 0.5
  %v2487 = vmul.f32 %v2483, 0.5
  %v2488 = vmul.f32 %v2442, %v2484
  %v2489 = vmul.f32 %v2445, %v2485
  %v2490 = vmul.f32 %v2450, %v2486
  %v2491 = vmul.f32 %v2453, %v2487
  %v2492 = vpack.c.bf16 %v2489, %v2488
  %v2493 = vpack.c.bf16 %v2491, %v2490
  %v2494 = vld [vmem:[%s15] sm:$0xf]
  %v2495 = vld [vmem:[%s15 + $0x4] sm:$0xf]
  %v2496 = vld [vmem:[%s15 + $0x8] sm:$0xf]
  %v2497 = vld [vmem:[%s15 + $0xc] sm:$0xf]
  %v2498 = vld [vmem:[%s15 + $0x10] sm:$0xf]
  %v2499 = vld [vmem:[%s15 + $0x14] sm:$0xf]
  %v2500 = vld [vmem:[%s15 + $0x18] sm:$0xf]
  %v2501 = vld [vmem:[%s15 + $0x1c] sm:$0xf]
  %v2502 = vld [vmem:[%s15 + $0x20] sm:$0xf]
  %v2503 = vld [vmem:[%s15 + $0x24] sm:$0xf]
  %v2504 = vld [vmem:[%s15 + $0x28] sm:$0xf]
  %v2505 = vld [vmem:[%s15 + $0x2c] sm:$0xf]
  %v2506 = vld [vmem:[%s15 + $0x30] sm:$0xf]
  %v2507 = vld [vmem:[%s15 + $0x34] sm:$0xf]
  %v2508 = vld [vmem:[%s15 + $0x38] sm:$0xf]
  %v2509 = vld [vmem:[%s15 + $0x3c] sm:$0xf]
  %v2510 = vld [vmem:[%s16] sm:$0x1]
  %v2512 = vlaneseq
  %v2513 = vshrl.u32 %v2512, 7
  %v2514 = vsub.s32 0, %v2513
  %v2515 = vrot.slane %v2510, %v2514
  %v2533 = vunpack.c.l.b16 %v2494
  %v2534 = vunpack.c.l.b16 %v2495
  %v2535 = vunpack.c.l.b16 %v2496
  %v2536 = vunpack.c.l.b16 %v2497
  %v2537 = vunpack.c.l.b16 %v2498
  %v2538 = vunpack.c.l.b16 %v2499
  %v2539 = vunpack.c.l.b16 %v2500
  %v2540 = vunpack.c.l.b16 %v2501
  %v2541 = vunpack.c.l.b16 %v2502
  %v2542 = vunpack.c.l.b16 %v2503
  %v2543 = vunpack.c.l.b16 %v2504
  %v2544 = vunpack.c.l.b16 %v2505
  %v2545 = vunpack.c.l.b16 %v2506
  %v2546 = vunpack.c.l.b16 %v2507
  %v2547 = vunpack.c.l.b16 %v2508
  %v2548 = vunpack.c.l.b16 %v2509
  %v2549 = vpack.c.b16 %v2534, %v2533
  %v2550 = vpack.c.b16 %v2536, %v2535
  %v2551 = vpack.c.b16 %v2538, %v2537
  %v2552 = vpack.c.b16 %v2540, %v2539
  %v2553 = vpack.c.b16 %v2542, %v2541
  %v2554 = vpack.c.b16 %v2544, %v2543
  %v2555 = vpack.c.b16 %v2546, %v2545
  %v2556 = vpack.c.b16 %v2548, %v2547
  %2565 = vmatprep.subr.bf16.mxu0 0
  %2566 = vmatpush1.bf16.msra.mxu0 %v2549
  %2567 = vmatprep.subr.bf16.mxu0 0
  %2568 = vmatpush1.bf16.msra.mxu0 %v2550
  %2569 = vmatprep.subr.bf16.mxu0 0
  %2570 = vmatpush1.bf16.msra.mxu0 %v2551
  %2571 = vmatprep.subr.bf16.mxu0 0
  %2572 = vmatpush1.bf16.msra.mxu0 %v2552
  %2573 = vmatprep.subr.bf16.mxu0 0
  %2574 = vmatpush1.bf16.msra.mxu0 %v2553
  %2575 = vmatprep.subr.bf16.mxu0 0
  %2576 = vmatpush1.bf16.msra.mxu0 %v2554
  %2577 = vmatprep.subr.bf16.mxu0 0
  %2578 = vmatpush1.bf16.msra.mxu0 %v2555
  %2579 = vmatprep.subr.bf16.mxu0 0
  %2580 = vmatpush1.bf16.msra.mxu0 %v2556
  %2581 = vmatprep.subr.bf16.mxu0 0
  %2582 = vmatpush1.bf16.msra.mxu0 0
  %2583 = vmatprep.subr.bf16.mxu0 0
  %2584 = vmatpush1.bf16.msra.mxu0 0
  %2585 = vmatprep.subr.bf16.mxu0 0
  %2586 = vmatpush1.bf16.msra.mxu0 0
  %2587 = vmatprep.subr.bf16.mxu0 0
  %2588 = vmatpush1.bf16.msra.mxu0 0
  %2589 = vmatprep.subr.bf16.mxu0 0
  %2590 = vmatpush1.bf16.msra.mxu0 0
  %2591 = vmatprep.subr.bf16.mxu0 0
  %2592 = vmatpush1.bf16.msra.mxu0 0
  %2593 = vmatprep.subr.bf16.mxu0 0
  %2594 = vmatpush1.bf16.msra.mxu0 0
  %2595 = vmatprep.subr.bf16.mxu0 0
  %2596 = vmatpush1.bf16.msra.mxu0 0
  %2597 = vmatprep.mubr.bf16.mxu0 0
  %2598 = vmatmul.mubr.bf16.gmra.mrb[0].mxu0 %v2492
  %v2599 = vpop.f32.mrb[0].mxu0
  %v2600 = vadd.f32 %v2515, %v2599
  %v2601 = vpop.f32.mrb[0].mxu0
  %v2602 = vpop.f32.mrb[0].mxu0
  %v2603 = vadd.f32 %v2515, %v2602
  %v2604 = vpop.f32.mrb[0].mxu0
  %2605 = vmatprep.mubr.bf16.mxu0 0
  %2606 = vmatmul.mubr.bf16.gmra.mrb[0].mxu0 %v2493
  %v2607 = vpop.f32.mrb[0].mxu0
  %v2608 = vadd.f32 %v2515, %v2607
  %v2609 = vpop.f32.mrb[0].mxu0
  %v2610 = vpop.f32.mrb[0].mxu0
  %v2611 = vadd.f32 %v2515, %v2610
  %v2612 = vpop.f32.mrb[0].mxu0
  %2613 = vdwg.mxu0
  %v2614 = vadd.f32 %v2298, %v2600
  %v2615 = vadd.f32 %v2299, %v2603
  %v2616 = vadd.f32 %v2300, %v2608
  %v2617 = vadd.f32 %v2301, %v2611
  %2618 = vst.msk [vmem:[%s17] sm:$0xff] %vm61, %v2614
  %2619 = vst.msk [vmem:[%s17 + $0x8] sm:$0xff] %vm61, %v2615
  %2620 = vst.msk [vmem:[%s17 + $0x10] sm:$0xff] %vm61, %v2616
  %2621 = vst.msk [vmem:[%s17 + $0x18] sm:$0xff] %vm61, %v2617
  // Predicated region
  $region70: #{_lambda_.9} parent=0 // pred_check
    _
  $region71: #{_lambda_.9} parent=0 // pred_check_branch
    %2623 = sbr.rel (0) target = $region73
  $region72: #{_lambda_.9} parent=0 // pred_region
    _
  $region73: #{_lambda_.9} parent=0 // pred_fallthru
    _
  // Predicated region
  $region74: #{_lambda_.9} parent=0 // pred_check
    _
  $region75: #{_lambda_.9} parent=0 // pred_check_branch
    %2625 = sbr.rel (0) target = $region77
  $region76: #{_lambda_.9} parent=0 // pred_region
    _
  $region77: #{_lambda_.9} parent=0 // pred_fallthru
    _

</llo_original>
